<compile_context>
chip_gen: v5e
topology: v5e:2x2
jax: 0.10.0
libtpu: 0.0.40
codegen_flags: <defaults>
</compile_context>

<pallas_src>
import math

import jax
import jax.numpy as jnp
from jax.experimental import pallas as pl
from jax.experimental.pallas import tpu as pltpu

# ---------------- small config (consistent with the module's forward) ----------------
VOCAB = 64
BLOCK_SIZE = 16
N_LAYER = 2
N_HEAD = 4
N_EMBD = 32
HEAD_DIM = N_EMBD // N_HEAD
N_CLASSES = 5
LOGIT_PAD = 128          # lane-dense logits slab; wrapper slices [:, :N_CLASSES]
EPS = 1e-5


def _layernorm(h, w, b):
    mu = jnp.mean(h, axis=-1, keepdims=True)
    var = jnp.mean((h - mu) ** 2, axis=-1, keepdims=True)
    return (h - mu) * jax.lax.rsqrt(var + EPS) * w + b


def _gelu_exact(x):
    # nn.GELU() default = exact erf formulation
    return 0.5 * x * (1.0 + jax.lax.erf(x * (1.0 / math.sqrt(2.0))))


# ---------------- fused Pallas kernel ----------------
def gpt_fused_kernel(tok_ref, wpe_ref,
                     ln1w_ref, ln1b_ref, wqkv_ref, bqkv_ref, wproj_ref, bproj_ref,
                     ln2w_ref, ln2b_ref, wfc_ref, bfc_ref, wfc2_ref, bfc2_ref,
                     lnfw_ref, lnfb_ref, wscore_ref,
                     logits_ref, y_sc):
    B, T, C = tok_ref.shape
    BT = B * T

    # Embedding add (dropout p=0.0 -> identity), flattened to a (B*T, C) slab.
    x = (tok_ref[...] + wpe_ref[...]).reshape(BT, C)

    # Hoisted causal additive bias: built once, reused by every layer / head.
    row = jax.lax.broadcasted_iota(jnp.int32, (T, T), 0)
    col = jax.lax.broadcasted_iota(jnp.int32, (T, T), 1)
    causal_bias = jnp.where(row >= col, 0.0, -jnp.inf)[None, :, :]   # (1, T, T)
    scale = 1.0 / math.sqrt(HEAD_DIM)

    for li in range(N_LAYER):                    # static unroll over layers
        # ---------------- attention branch ----------------
        h = _layernorm(x, ln1w_ref[li], ln1b_ref[li])
        qkv = jnp.dot(h.astype(jnp.bfloat16), wqkv_ref[li],
                      preferred_element_type=jnp.float32) + bqkv_ref[li]
        qkv3 = qkv.reshape(B, T, 3 * C)
        # fold attention scale once into Q (instead of once per head on the att matrix)
        q3 = (qkv3[:, :, 0 * C:1 * C] * scale).astype(jnp.bfloat16)
        k3 = qkv3[:, :, 1 * C:2 * C].astype(jnp.bfloat16)
        v3 = qkv3[:, :, 2 * C:3 * C].astype(jnp.bfloat16)

        for hi in range(N_HEAD):                 # heads: batched-over-B contractions,
            sl = slice(hi * HEAD_DIM, (hi + 1) * HEAD_DIM)   # outputs -> scratch slices
            qh, kh, vh = q3[:, :, sl], k3[:, :, sl], v3[:, :, sl]
            att = jnp.einsum('btd,bsd->bts', qh, kh,
                             preferred_element_type=jnp.float32) + causal_bias
            att = jax.nn.softmax(att, axis=-1)
            yh = jnp.einsum('bts,bsd->btd', att.astype(jnp.bfloat16), vh,
                            preferred_element_type=jnp.float32)
            y_sc[:, :, sl] = yh                  # no concatenate

        y2 = y_sc[...].reshape(BT, C)
        y = jnp.dot(y2.astype(jnp.bfloat16), wproj_ref[li],
                    preferred_element_type=jnp.float32) + bproj_ref[li]
        x = x + y

        # ---------------- MLP branch ----------------
        h2 = _layernorm(x, ln2w_ref[li], ln2b_ref[li])
        hfc = jnp.dot(h2.astype(jnp.bfloat16), wfc_ref[li],
                      preferred_element_type=jnp.float32) + bfc_ref[li]
        hfc = _gelu_exact(hfc)
        mlp = jnp.dot(hfc.astype(jnp.bfloat16), wfc2_ref[li],
                      preferred_element_type=jnp.float32) + bfc2_ref[li]
        x = x + mlp

    # ---------------- final LayerNorm + score head (last token, mask=None path) ----
    x_last = x.reshape(B, T, C)[:, T - 1, :]     # (B, C)
    hf = _layernorm(x_last, lnfw_ref[...], lnfb_ref[...])
    logits_ref[...] = jnp.dot(hf.astype(jnp.bfloat16), wscore_ref[...],
                              preferred_element_type=jnp.float32)


# ---------------- wrapper ----------------
def gpt_forward_pallas(idx, params):
    B, T = idx.shape
    C = N_EMBD

    # Data-dependent embedding gather stays in XLA; everything else is in the kernel.
    tok_emb = jnp.take(params["wte"], idx, axis=0)        # (B, T, C)
    wpe_t = params["wpe"][:T]                             # (T, C)

    args = (tok_emb, wpe_t,
            params["ln1_w"], params["ln1_b"],
            params["w_qkv"], params["b_qkv"],
            params["w_proj"], params["b_proj"],
            params["ln2_w"], params["ln2_b"],
            params["w_fc"], params["b_fc"],
            params["w_fc2"], params["b_fc2"],
            params["lnf_w"], params["lnf_b"],
            params["w_score"])

    def full_spec(a):
        shape = a.shape
        return pl.BlockSpec(shape, lambda i, _n=len(shape): (0,) * _n)

    logits_pad = pl.pallas_call(
        gpt_fused_kernel,
        out_shape=jax.ShapeDtypeStruct((B, LOGIT_PAD), jnp.float32),
        grid=(1,),
        in_specs=[full_spec(a) for a in args],
        out_specs=pl.BlockSpec((B, LOGIT_PAD), lambda i: (0, 0)),
        scratch_shapes=[pltpu.VMEM((B, T, C), jnp.float32)],
        compiler_params=pltpu.CompilerParams(dimension_semantics=("arbitrary",)),
    )(*args)
    return logits_pad[:, :N_CLASSES]


gpt_forward = jax.jit(gpt_forward_pallas)
# TODO(synk): mask-based eos-index gathering and the generate() sampling loop are
# host-side control flow and are not implemented in the kernel (mask=None path only).
# TODO(synk): on v7x a leading parallel batch axis could split the batch rows across
# the two TensorCores; kept single-step here for v5e/v6e simplicity at these shapes.


# ---------------- parameter init (deterministic, synthetic) ----------------
def init_params(key):
    kit = iter(jax.random.split(key, 40))
    nrm = lambda k, shape, s=0.02: (s * jax.random.normal(k, shape)).astype(jnp.float32)
    C = N_EMBD

    params = {
        "wte": nrm(next(kit), (VOCAB, C)),
        "wpe": nrm(next(kit), (BLOCK_SIZE, C)),
        "lnf_w": jnp.ones((1, C), jnp.float32),
        "lnf_b": jnp.zeros((1, C), jnp.float32),
    }
    # score weight stored transposed (C, 5), zero-padded to 128 lanes, bf16 for the MXU.
    w_score = nrm(next(kit), (C, N_CLASSES), 0.1)
    w_score_pad = jnp.zeros((C, LOGIT_PAD), jnp.float32).at[:, :N_CLASSES].set(w_score)
    params["w_score"] = w_score_pad.astype(jnp.bfloat16)

    ln1_w, ln1_b, ln2_w, ln2_b = [], [], [], []
    w_qkv, b_qkv, w_proj, b_proj = [], [], [], []
    w_fc, b_fc, w_fc2, b_fc2 = [], [], [], []
    for _ in range(N_LAYER):
        ln1_w.append(jnp.ones((1, C), jnp.float32))
        ln1_b.append(jnp.zeros((1, C), jnp.float32))
        ln2_w.append(jnp.ones((1, C), jnp.float32))
        ln2_b.append(jnp.zeros((1, C), jnp.float32))
        w_qkv.append(nrm(next(kit), (C, 3 * C)))      # c_attn.weight (transposed)
        b_qkv.append(nrm(next(kit), (1, 3 * C)))
        w_proj.append(nrm(next(kit), (C, C)))         # c_proj.weight (transposed)
        b_proj.append(nrm(next(kit), (1, C)))
        w_fc.append(nrm(next(kit), (C, 4 * C)))       # c_fc.weight (transposed)
        b_fc.append(nrm(next(kit), (1, 4 * C)))
        w_fc2.append(nrm(next(kit), (4 * C, C)))      # mlp c_proj.weight (transposed)
        b_fc2.append(nrm(next(kit), (1, C)))

    params.update({
        "ln1_w": jnp.stack(ln1_w), "ln1_b": jnp.stack(ln1_b),
        "ln2_w": jnp.stack(ln2_w), "ln2_b": jnp.stack(ln2_b),
        "w_qkv": jnp.stack(w_qkv).astype(jnp.bfloat16), "b_qkv": jnp.stack(b_qkv),
        "w_proj": jnp.stack(w_proj).astype(jnp.bfloat16), "b_proj": jnp.stack(b_proj),
        "w_fc": jnp.stack(w_fc).astype(jnp.bfloat16), "b_fc": jnp.stack(b_fc),
        "w_fc2": jnp.stack(w_fc2).astype(jnp.bfloat16), "b_fc2": jnp.stack(b_fc2),
    })
    return params


# ---------------- pure-JAX f32 reference for verification ----------------
def reference_forward(idx, params):
    B, T = idx.shape
    C = N_EMBD
    f32 = lambda a: a.astype(jnp.float32)
    x = jnp.take(params["wte"], idx, axis=0) + params["wpe"][:T][None]
    causal = jnp.tril(jnp.ones((T, T), bool))
    for li in range(N_LAYER):
        h = _layernorm(x, params["ln1_w"][li], params["ln1_b"][li])
        qkv = h @ f32(params["w_qkv"][li]) + params["b_qkv"][li]
        q, k, v = jnp.split(qkv, 3, axis=-1)
        q = q.reshape(B, T, N_HEAD, HEAD_DIM).transpose(0, 2, 1, 3)
        k = k.reshape(B, T, N_HEAD, HEAD_DIM).transpose(0, 2, 1, 3)
        v = v.reshape(B, T, N_HEAD, HEAD_DIM).transpose(0, 2, 1, 3)
        att = jnp.einsum("bhqd,bhkd->bhqk", q, k) / math.sqrt(HEAD_DIM)
        att = jnp.where(causal, att, -jnp.inf)
        att = jax.nn.softmax(att, axis=-1)
        y = jnp.einsum("bhqk,bhkd->bhqd", att, v).transpose(0, 2, 1, 3).reshape(B, T, C)
        x = x + (y @ f32(params["w_proj"][li]) + params["b_proj"][li])
        h2 = _layernorm(x, params["ln2_w"][li], params["ln2_b"][li])
        hfc = _gelu_exact(h2 @ f32(params["w_fc"][li]) + params["b_fc"][li])
        x = x + (hfc @ f32(params["w_fc2"][li]) + params["b_fc2"][li])
    x = _layernorm(x, params["lnf_w"], params["lnf_b"])
    return x[:, -1, :] @ f32(params["w_score"])[:, :N_CLASSES]


if __name__ == "__main__":
    key = jax.random.PRNGKey(0)
    k_param, k_idx = jax.random.split(key)
    params = init_params(k_param)

    B, T = 2, 8
    idx = jax.random.randint(k_idx, (B, T), 0, VOCAB, dtype=jnp.int32)

    logits = gpt_forward(idx, params)
    jax.block_until_ready(logits)

    ref = reference_forward(idx, params)
    assert logits.shape == (B, N_CLASSES)
    # bf16 matmul operands inside the kernel vs f32 reference -> small tolerance.
    assert jnp.allclose(logits, ref, atol=2e-2, rtol=2e-2), (logits, ref)

    print("KERNEL_OK")
</pallas_src>

<mosaic_0001>
module attributes {stable_mosaic.version = 11 : i64} {
  func.func @gpt_fused_kernel(%arg0: i32, %arg1: memref<2x8x32xf32, #tpu.memory_space<vmem>>, %arg2: memref<8x32xf32, #tpu.memory_space<vmem>>, %arg3: memref<2x1x32xf32, #tpu.memory_space<vmem>>, %arg4: memref<2x1x32xf32, #tpu.memory_space<vmem>>, %arg5: memref<2x32x96xbf16, #tpu.memory_space<vmem>>, %arg6: memref<2x1x96xf32, #tpu.memory_space<vmem>>, %arg7: memref<2x32x32xbf16, #tpu.memory_space<vmem>>, %arg8: memref<2x1x32xf32, #tpu.memory_space<vmem>>, %arg9: memref<2x1x32xf32, #tpu.memory_space<vmem>>, %arg10: memref<2x1x32xf32, #tpu.memory_space<vmem>>, %arg11: memref<2x32x128xbf16, #tpu.memory_space<vmem>>, %arg12: memref<2x1x128xf32, #tpu.memory_space<vmem>>, %arg13: memref<2x128x32xbf16, #tpu.memory_space<vmem>>, %arg14: memref<2x1x32xf32, #tpu.memory_space<vmem>>, %arg15: memref<1x32xf32, #tpu.memory_space<vmem>>, %arg16: memref<1x32xf32, #tpu.memory_space<vmem>>, %arg17: memref<32x128xbf16, #tpu.memory_space<vmem>>, %arg18: memref<2x128xf32, #tpu.memory_space<vmem>>, %arg19: memref<2x8x32xf32, #tpu.memory_space<vmem>>) attributes {dimension_semantics = [#tpu.dimension_semantics<arbitrary>], iteration_bounds = array<i64: 1>, scalar_prefetch = 0 : i64, scratch_operands = 1 : i64, tpu.core_type = #tpu.core_type<tc>, window_params = [{pipeline_mode = #tpu.pipeline_mode<synchronous>, transform_indices = @transform_0, window_bounds = array<i64: 2, 8, 32>}, {pipeline_mode = #tpu.pipeline_mode<synchronous>, transform_indices = @transform_1, window_bounds = array<i64: 8, 32>}, {pipeline_mode = #tpu.pipeline_mode<synchronous>, transform_indices = @transform_2, window_bounds = array<i64: 2, 1, 32>}, {pipeline_mode = #tpu.pipeline_mode<synchronous>, transform_indices = @transform_3, window_bounds = array<i64: 2, 1, 32>}, {pipeline_mode = #tpu.pipeline_mode<synchronous>, transform_indices = @transform_4, window_bounds = array<i64: 2, 32, 96>}, {pipeline_mode = #tpu.pipeline_mode<synchronous>, transform_indices = @transform_5, window_bounds = array<i64: 2, 1, 96>}, {pipeline_mode = #tpu.pipeline_mode<synchronous>, transform_indices = @transform_6, window_bounds = array<i64: 2, 32, 32>}, {pipeline_mode = #tpu.pipeline_mode<synchronous>, transform_indices = @transform_7, window_bounds = array<i64: 2, 1, 32>}, {pipeline_mode = #tpu.pipeline_mode<synchronous>, transform_indices = @transform_8, window_bounds = array<i64: 2, 1, 32>}, {pipeline_mode = #tpu.pipeline_mode<synchronous>, transform_indices = @transform_9, window_bounds = array<i64: 2, 1, 32>}, {pipeline_mode = #tpu.pipeline_mode<synchronous>, transform_indices = @transform_10, window_bounds = array<i64: 2, 32, 128>}, {pipeline_mode = #tpu.pipeline_mode<synchronous>, transform_indices = @transform_11, window_bounds = array<i64: 2, 1, 128>}, {pipeline_mode = #tpu.pipeline_mode<synchronous>, transform_indices = @transform_12, window_bounds = array<i64: 2, 128, 32>}, {pipeline_mode = #tpu.pipeline_mode<synchronous>, transform_indices = @transform_13, window_bounds = array<i64: 2, 1, 32>}, {pipeline_mode = #tpu.pipeline_mode<synchronous>, transform_indices = @transform_14, window_bounds = array<i64: 1, 32>}, {pipeline_mode = #tpu.pipeline_mode<synchronous>, transform_indices = @transform_15, window_bounds = array<i64: 1, 32>}, {pipeline_mode = #tpu.pipeline_mode<synchronous>, transform_indices = @transform_16, window_bounds = array<i64: 32, 128>}, {pipeline_mode = #tpu.pipeline_mode<synchronous>, transform_indices = @transform_17, window_bounds = array<i64: 2, 128>}]} {
    %c0 = arith.constant 0 : index
    %c0_0 = arith.constant 0 : index
    %c0_1 = arith.constant 0 : index
    %0 = vector.load %arg1[%c0, %c0_0, %c0_1] : memref<2x8x32xf32, #tpu.memory_space<vmem>>, vector<2x8x32xf32>
    %c0_2 = arith.constant 0 : index
    %c0_3 = arith.constant 0 : index
    %1 = vector.load %arg2[%c0_2, %c0_3] : memref<8x32xf32, #tpu.memory_space<vmem>>, vector<8x32xf32>
    %2 = vector.shape_cast %1 : vector<8x32xf32> to vector<1x8x32xf32>
    %3 = vector.broadcast %2 : vector<1x8x32xf32> to vector<2x8x32xf32>
    %4 = arith.addf %0, %3 : vector<2x8x32xf32>
    %5 = vector.shape_cast %4 : vector<2x8x32xf32> to vector<16x32xf32>
    %6 = tpu.iota {dimensions = array<i32: 0>} : vector<8x8xi32>
    %7 = tpu.iota {dimensions = array<i32: 1>} : vector<8x8xi32>
    %8 = arith.cmpi sge, %6, %7 : vector<8x8xi32>
    %cst = arith.constant 0.000000e+00 : f32
    %cst_4 = arith.constant 0xFF800000 : f32
    %9 = vector.broadcast %cst : f32 to vector<8x8xf32>
    %10 = vector.broadcast %cst_4 : f32 to vector<8x8xf32>
    %11 = arith.select %8, %9, %10 : vector<8x8xi1>, vector<8x8xf32>
    %12 = vector.shape_cast %11 : vector<8x8xf32> to vector<1x8x8xf32>
    %c0_5 = arith.constant 0 : index
    %c0_6 = arith.constant 0 : index
    %c0_7 = arith.constant 0 : index
    %13 = vector.load %arg3[%c0_5, %c0_6, %c0_7] : memref<2x1x32xf32, #tpu.memory_space<vmem>>, vector<1x1x32xf32>
    %14 = vector.shape_cast %13 : vector<1x1x32xf32> to vector<1x32xf32>
    %c0_8 = arith.constant 0 : index
    %c0_9 = arith.constant 0 : index
    %c0_10 = arith.constant 0 : index
    %15 = vector.load %arg4[%c0_8, %c0_9, %c0_10] : memref<2x1x32xf32, #tpu.memory_space<vmem>>, vector<1x1x32xf32>
    %16 = vector.shape_cast %15 : vector<1x1x32xf32> to vector<1x32xf32>
    %cst_11 = arith.constant dense<0.000000e+00> : vector<16xf32>
    %17 = vector.multi_reduction <add>, %5, %cst_11 [1] : vector<16x32xf32> to vector<16xf32>
    %18 = vector.shape_cast %17 : vector<16xf32> to vector<16x1xf32>
    %cst_12 = arith.constant 3.200000e+01 : f32
    %19 = vector.broadcast %cst_12 : f32 to vector<16x1xf32>
    %20 = arith.divf %18, %19 : vector<16x1xf32>
    %21 = vector.broadcast %20 : vector<16x1xf32> to vector<16x32xf32>
    %22 = arith.subf %5, %21 : vector<16x32xf32>
    %23 = arith.mulf %22, %22 : vector<16x32xf32>
    %cst_13 = arith.constant dense<0.000000e+00> : vector<16xf32>
    %24 = vector.multi_reduction <add>, %23, %cst_13 [1] : vector<16x32xf32> to vector<16xf32>
    %25 = vector.shape_cast %24 : vector<16xf32> to vector<16x1xf32>
    %cst_14 = arith.constant 3.200000e+01 : f32
    %26 = vector.broadcast %cst_14 : f32 to vector<16x1xf32>
    %27 = arith.divf %25, %26 : vector<16x1xf32>
    %28 = vector.broadcast %20 : vector<16x1xf32> to vector<16x32xf32>
    %29 = arith.subf %5, %28 : vector<16x32xf32>
    %cst_15 = arith.constant 9.99999974E-6 : f32
    %30 = vector.broadcast %cst_15 : f32 to vector<16x1xf32>
    %31 = arith.addf %27, %30 : vector<16x1xf32>
    %32 = math.rsqrt %31 : vector<16x1xf32>
    %33 = vector.broadcast %32 : vector<16x1xf32> to vector<16x32xf32>
    %34 = arith.mulf %29, %33 : vector<16x32xf32>
    %35 = vector.broadcast %14 : vector<1x32xf32> to vector<16x32xf32>
    %36 = arith.mulf %34, %35 : vector<16x32xf32>
    %37 = vector.broadcast %16 : vector<1x32xf32> to vector<16x32xf32>
    %38 = arith.addf %36, %37 : vector<16x32xf32>
    %39 = arith.truncf %38 : vector<16x32xf32> to vector<16x32xbf16>
    %c0_16 = arith.constant 0 : index
    %c0_17 = arith.constant 0 : index
    %c0_18 = arith.constant 0 : index
    %40 = vector.load %arg5[%c0_16, %c0_17, %c0_18] : memref<2x32x96xbf16, #tpu.memory_space<vmem>>, vector<1x32x96xbf16>
    %41 = vector.shape_cast %40 : vector<1x32x96xbf16> to vector<32x96xbf16>
    %cst_19 = arith.constant dense<0.000000e+00> : vector<16x96xf32>
    %42 = tpu.matmul %39, %41, %cst_19 {dimension_numbers = #tpu.dot_dimension_numbers<[1], [0], [0], [1], [0, 0, 1, 1], [], []>} : vector<16x32xbf16>, vector<32x96xbf16>, vector<16x96xf32> -> vector<16x96xf32>
    %c0_20 = arith.constant 0 : index
    %c0_21 = arith.constant 0 : index
    %c0_22 = arith.constant 0 : index
    %43 = vector.load %arg6[%c0_20, %c0_21, %c0_22] : memref<2x1x96xf32, #tpu.memory_space<vmem>>, vector<1x1x96xf32>
    %44 = vector.shape_cast %43 : vector<1x1x96xf32> to vector<1x96xf32>
    %45 = vector.broadcast %44 : vector<1x96xf32> to vector<16x96xf32>
    %46 = arith.addf %42, %45 : vector<16x96xf32>
    %47 = vector.shape_cast %46 : vector<16x96xf32> to vector<2x8x96xf32>
    %48 = vector.extract_strided_slice %47 {offsets = [0, 0, 0], sizes = [2, 8, 32], strides = [1, 1, 1]} : vector<2x8x96xf32> to vector<2x8x32xf32>
    %cst_23 = arith.constant 0.353553385 : f32
    %49 = vector.broadcast %cst_23 : f32 to vector<2x8x32xf32>
    %50 = arith.mulf %48, %49 : vector<2x8x32xf32>
    %51 = arith.truncf %50 : vector<2x8x32xf32> to vector<2x8x32xbf16>
    %52 = vector.extract_strided_slice %47 {offsets = [0, 0, 32], sizes = [2, 8, 32], strides = [1, 1, 1]} : vector<2x8x96xf32> to vector<2x8x32xf32>
    %53 = arith.truncf %52 : vector<2x8x32xf32> to vector<2x8x32xbf16>
    %54 = vector.extract_strided_slice %47 {offsets = [0, 0, 64], sizes = [2, 8, 32], strides = [1, 1, 1]} : vector<2x8x96xf32> to vector<2x8x32xf32>
    %55 = arith.truncf %54 : vector<2x8x32xf32> to vector<2x8x32xbf16>
    %56 = vector.extract_strided_slice %51 {offsets = [0, 0, 0], sizes = [2, 8, 8], strides = [1, 1, 1]} : vector<2x8x32xbf16> to vector<2x8x8xbf16>
    %57 = vector.extract_strided_slice %53 {offsets = [0, 0, 0], sizes = [2, 8, 8], strides = [1, 1, 1]} : vector<2x8x32xbf16> to vector<2x8x8xbf16>
    %58 = vector.extract_strided_slice %55 {offsets = [0, 0, 0], sizes = [2, 8, 8], strides = [1, 1, 1]} : vector<2x8x32xbf16> to vector<2x8x8xbf16>
    "tpu.trace_start"() <{level = 10 : i32, message = "btd,bsd->bts"}> : () -> ()
    %cst_24 = arith.constant dense<0.000000e+00> : vector<2x8x8xf32>
    %59 = tpu.matmul %56, %57, %cst_24 {dimension_numbers = #tpu.dot_dimension_numbers<[2], [2], [1], [1], [0, 0, 0, 1, 1, 1], [0], [0]>} : vector<2x8x8xbf16>, vector<2x8x8xbf16>, vector<2x8x8xf32> -> vector<2x8x8xf32>
    "tpu.trace_stop"() : () -> ()
    %60 = vector.broadcast %12 : vector<1x8x8xf32> to vector<2x8x8xf32>
    %61 = arith.addf %59, %60 : vector<2x8x8xf32>
    %cst_25 = arith.constant dense<0xFF800000> : vector<2x8xf32>
    %62 = vector.multi_reduction <maximumf>, %61, %cst_25 [2] : vector<2x8x8xf32> to vector<2x8xf32>
    %cst_26 = arith.constant 0xFF800000 : f32
    %63 = vector.broadcast %cst_26 : f32 to vector<2x8xf32>
    %64 = arith.maximumf %63, %62 : vector<2x8xf32>
    %65 = vector.shape_cast %64 : vector<2x8xf32> to vector<2x8x1xf32>
    %66 = vector.broadcast %65 : vector<2x8x1xf32> to vector<2x8x8xf32>
    %67 = arith.subf %61, %66 : vector<2x8x8xf32>
    %68 = math.exp %67 : vector<2x8x8xf32>
    %cst_27 = arith.constant dense<0.000000e+00> : vector<2x8xf32>
    %69 = vector.multi_reduction <add>, %68, %cst_27 [2] : vector<2x8x8xf32> to vector<2x8xf32>
    %70 = vector.shape_cast %69 : vector<2x8xf32> to vector<2x8x1xf32>
    %71 = vector.broadcast %70 : vector<2x8x1xf32> to vector<2x8x8xf32>
    %72 = arith.divf %68, %71 : vector<2x8x8xf32>
    %73 = arith.truncf %72 : vector<2x8x8xf32> to vector<2x8x8xbf16>
    "tpu.trace_start"() <{level = 10 : i32, message = "bts,bsd->btd"}> : () -> ()
    %cst_28 = arith.constant dense<0.000000e+00> : vector<2x8x8xf32>
    %74 = tpu.matmul %73, %58, %cst_28 {dimension_numbers = #tpu.dot_dimension_numbers<[2], [1], [1], [2], [0, 0, 0, 1, 1, 2], [0], [0]>} : vector<2x8x8xbf16>, vector<2x8x8xbf16>, vector<2x8x8xf32> -> vector<2x8x8xf32>
    "tpu.trace_stop"() : () -> ()
    %c0_29 = arith.constant 0 : index
    %c0_30 = arith.constant 0 : index
    %c0_31 = arith.constant 0 : index
    %75 = vector.load %arg19[%c0_29, %c0_30, %c0_31] : memref<2x8x32xf32, #tpu.memory_space<vmem>>, vector<2x8x8xf32>
    tpu.vector_store %arg19[%c0_29, %c0_30, %c0_31], %74 {strides = array<i32>} : memref<2x8x32xf32, #tpu.memory_space<vmem>>, vector<2x8x8xf32>,
    %76 = vector.extract_strided_slice %51 {offsets = [0, 0, 8], sizes = [2, 8, 8], strides = [1, 1, 1]} : vector<2x8x32xbf16> to vector<2x8x8xbf16>
    %77 = vector.extract_strided_slice %53 {offsets = [0, 0, 8], sizes = [2, 8, 8], strides = [1, 1, 1]} : vector<2x8x32xbf16> to vector<2x8x8xbf16>
    %78 = vector.extract_strided_slice %55 {offsets = [0, 0, 8], sizes = [2, 8, 8], strides = [1, 1, 1]} : vector<2x8x32xbf16> to vector<2x8x8xbf16>
    "tpu.trace_start"() <{level = 10 : i32, message = "btd,bsd->bts"}> : () -> ()
    %cst_32 = arith.constant dense<0.000000e+00> : vector<2x8x8xf32>
    %79 = tpu.matmul %76, %77, %cst_32 {dimension_numbers = #tpu.dot_dimension_numbers<[2], [2], [1], [1], [0, 0, 0, 1, 1, 1], [0], [0]>} : vector<2x8x8xbf16>, vector<2x8x8xbf16>, vector<2x8x8xf32> -> vector<2x8x8xf32>
    "tpu.trace_stop"() : () -> ()
    %80 = vector.broadcast %12 : vector<1x8x8xf32> to vector<2x8x8xf32>
    %81 = arith.addf %79, %80 : vector<2x8x8xf32>
    %cst_33 = arith.constant dense<0xFF800000> : vector<2x8xf32>
    %82 = vector.multi_reduction <maximumf>, %81, %cst_33 [2] : vector<2x8x8xf32> to vector<2x8xf32>
    %cst_34 = arith.constant 0xFF800000 : f32
    %83 = vector.broadcast %cst_34 : f32 to vector<2x8xf32>
    %84 = arith.maximumf %83, %82 : vector<2x8xf32>
    %85 = vector.shape_cast %84 : vector<2x8xf32> to vector<2x8x1xf32>
    %86 = vector.broadcast %85 : vector<2x8x1xf32> to vector<2x8x8xf32>
    %87 = arith.subf %81, %86 : vector<2x8x8xf32>
    %88 = math.exp %87 : vector<2x8x8xf32>
    %cst_35 = arith.constant dense<0.000000e+00> : vector<2x8xf32>
    %89 = vector.multi_reduction <add>, %88, %cst_35 [2] : vector<2x8x8xf32> to vector<2x8xf32>
    %90 = vector.shape_cast %89 : vector<2x8xf32> to vector<2x8x1xf32>
    %91 = vector.broadcast %90 : vector<2x8x1xf32> to vector<2x8x8xf32>
    %92 = arith.divf %88, %91 : vector<2x8x8xf32>
    %93 = arith.truncf %92 : vector<2x8x8xf32> to vector<2x8x8xbf16>
    "tpu.trace_start"() <{level = 10 : i32, message = "bts,bsd->btd"}> : () -> ()
    %cst_36 = arith.constant dense<0.000000e+00> : vector<2x8x8xf32>
    %94 = tpu.matmul %93, %78, %cst_36 {dimension_numbers = #tpu.dot_dimension_numbers<[2], [1], [1], [2], [0, 0, 0, 1, 1, 2], [0], [0]>} : vector<2x8x8xbf16>, vector<2x8x8xbf16>, vector<2x8x8xf32> -> vector<2x8x8xf32>
    "tpu.trace_stop"() : () -> ()
    %c0_37 = arith.constant 0 : index
    %c0_38 = arith.constant 0 : index
    %c8 = arith.constant 8 : index
    %95 = vector.load %arg19[%c0_37, %c0_38, %c8] : memref<2x8x32xf32, #tpu.memory_space<vmem>>, vector<2x8x8xf32>
    tpu.vector_store %arg19[%c0_37, %c0_38, %c8], %94 {strides = array<i32>} : memref<2x8x32xf32, #tpu.memory_space<vmem>>, vector<2x8x8xf32>,
    %96 = vector.extract_strided_slice %51 {offsets = [0, 0, 16], sizes = [2, 8, 8], strides = [1, 1, 1]} : vector<2x8x32xbf16> to vector<2x8x8xbf16>
    %97 = vector.extract_strided_slice %53 {offsets = [0, 0, 16], sizes = [2, 8, 8], strides = [1, 1, 1]} : vector<2x8x32xbf16> to vector<2x8x8xbf16>
    %98 = vector.extract_strided_slice %55 {offsets = [0, 0, 16], sizes = [2, 8, 8], strides = [1, 1, 1]} : vector<2x8x32xbf16> to vector<2x8x8xbf16>
    "tpu.trace_start"() <{level = 10 : i32, message = "btd,bsd->bts"}> : () -> ()
    %cst_39 = arith.constant dense<0.000000e+00> : vector<2x8x8xf32>
    %99 = tpu.matmul %96, %97, %cst_39 {dimension_numbers = #tpu.dot_dimension_numbers<[2], [2], [1], [1], [0, 0, 0, 1, 1, 1], [0], [0]>} : vector<2x8x8xbf16>, vector<2x8x8xbf16>, vector<2x8x8xf32> -> vector<2x8x8xf32>
    "tpu.trace_stop"() : () -> ()
    %100 = vector.broadcast %12 : vector<1x8x8xf32> to vector<2x8x8xf32>
    %101 = arith.addf %99, %100 : vector<2x8x8xf32>
    %cst_40 = arith.constant dense<0xFF800000> : vector<2x8xf32>
    %102 = vector.multi_reduction <maximumf>, %101, %cst_40 [2] : vector<2x8x8xf32> to vector<2x8xf32>
    %cst_41 = arith.constant 0xFF800000 : f32
    %103 = vector.broadcast %cst_41 : f32 to vector<2x8xf32>
    %104 = arith.maximumf %103, %102 : vector<2x8xf32>
    %105 = vector.shape_cast %104 : vector<2x8xf32> to vector<2x8x1xf32>
    %106 = vector.broadcast %105 : vector<2x8x1xf32> to vector<2x8x8xf32>
    %107 = arith.subf %101, %106 : vector<2x8x8xf32>
    %108 = math.exp %107 : vector<2x8x8xf32>
    %cst_42 = arith.constant dense<0.000000e+00> : vector<2x8xf32>
    %109 = vector.multi_reduction <add>, %108, %cst_42 [2] : vector<2x8x8xf32> to vector<2x8xf32>
    %110 = vector.shape_cast %109 : vector<2x8xf32> to vector<2x8x1xf32>
    %111 = vector.broadcast %110 : vector<2x8x1xf32> to vector<2x8x8xf32>
    %112 = arith.divf %108, %111 : vector<2x8x8xf32>
    %113 = arith.truncf %112 : vector<2x8x8xf32> to vector<2x8x8xbf16>
    "tpu.trace_start"() <{level = 10 : i32, message = "bts,bsd->btd"}> : () -> ()
    %cst_43 = arith.constant dense<0.000000e+00> : vector<2x8x8xf32>
    %114 = tpu.matmul %113, %98, %cst_43 {dimension_numbers = #tpu.dot_dimension_numbers<[2], [1], [1], [2], [0, 0, 0, 1, 1, 2], [0], [0]>} : vector<2x8x8xbf16>, vector<2x8x8xbf16>, vector<2x8x8xf32> -> vector<2x8x8xf32>
    "tpu.trace_stop"() : () -> ()
    %c0_44 = arith.constant 0 : index
    %c0_45 = arith.constant 0 : index
    %c16 = arith.constant 16 : index
    %115 = vector.load %arg19[%c0_44, %c0_45, %c16] : memref<2x8x32xf32, #tpu.memory_space<vmem>>, vector<2x8x8xf32>
    tpu.vector_store %arg19[%c0_44, %c0_45, %c16], %114 {strides = array<i32>} : memref<2x8x32xf32, #tpu.memory_space<vmem>>, vector<2x8x8xf32>,
    %116 = vector.extract_strided_slice %51 {offsets = [0, 0, 24], sizes = [2, 8, 8], strides = [1, 1, 1]} : vector<2x8x32xbf16> to vector<2x8x8xbf16>
    %117 = vector.extract_strided_slice %53 {offsets = [0, 0, 24], sizes = [2, 8, 8], strides = [1, 1, 1]} : vector<2x8x32xbf16> to vector<2x8x8xbf16>
    %118 = vector.extract_strided_slice %55 {offsets = [0, 0, 24], sizes = [2, 8, 8], strides = [1, 1, 1]} : vector<2x8x32xbf16> to vector<2x8x8xbf16>
    "tpu.trace_start"() <{level = 10 : i32, message = "btd,bsd->bts"}> : () -> ()
    %cst_46 = arith.constant dense<0.000000e+00> : vector<2x8x8xf32>
    %119 = tpu.matmul %116, %117, %cst_46 {dimension_numbers = #tpu.dot_dimension_numbers<[2], [2], [1], [1], [0, 0, 0, 1, 1, 1], [0], [0]>} : vector<2x8x8xbf16>, vector<2x8x8xbf16>, vector<2x8x8xf32> -> vector<2x8x8xf32>
    "tpu.trace_stop"() : () -> ()
    %120 = vector.broadcast %12 : vector<1x8x8xf32> to vector<2x8x8xf32>
    %121 = arith.addf %119, %120 : vector<2x8x8xf32>
    %cst_47 = arith.constant dense<0xFF800000> : vector<2x8xf32>
    %122 = vector.multi_reduction <maximumf>, %121, %cst_47 [2] : vector<2x8x8xf32> to vector<2x8xf32>
    %cst_48 = arith.constant 0xFF800000 : f32
    %123 = vector.broadcast %cst_48 : f32 to vector<2x8xf32>
    %124 = arith.maximumf %123, %122 : vector<2x8xf32>
    %125 = vector.shape_cast %124 : vector<2x8xf32> to vector<2x8x1xf32>
    %126 = vector.broadcast %125 : vector<2x8x1xf32> to vector<2x8x8xf32>
    %127 = arith.subf %121, %126 : vector<2x8x8xf32>
    %128 = math.exp %127 : vector<2x8x8xf32>
    %cst_49 = arith.constant dense<0.000000e+00> : vector<2x8xf32>
    %129 = vector.multi_reduction <add>, %128, %cst_49 [2] : vector<2x8x8xf32> to vector<2x8xf32>
    %130 = vector.shape_cast %129 : vector<2x8xf32> to vector<2x8x1xf32>
    %131 = vector.broadcast %130 : vector<2x8x1xf32> to vector<2x8x8xf32>
    %132 = arith.divf %128, %131 : vector<2x8x8xf32>
    %133 = arith.truncf %132 : vector<2x8x8xf32> to vector<2x8x8xbf16>
    "tpu.trace_start"() <{level = 10 : i32, message = "bts,bsd->btd"}> : () -> ()
    %cst_50 = arith.constant dense<0.000000e+00> : vector<2x8x8xf32>
    %134 = tpu.matmul %133, %118, %cst_50 {dimension_numbers = #tpu.dot_dimension_numbers<[2], [1], [1], [2], [0, 0, 0, 1, 1, 2], [0], [0]>} : vector<2x8x8xbf16>, vector<2x8x8xbf16>, vector<2x8x8xf32> -> vector<2x8x8xf32>
    "tpu.trace_stop"() : () -> ()
    %c0_51 = arith.constant 0 : index
    %c0_52 = arith.constant 0 : index
    %c24 = arith.constant 24 : index
    %135 = vector.load %arg19[%c0_51, %c0_52, %c24] : memref<2x8x32xf32, #tpu.memory_space<vmem>>, vector<2x8x8xf32>
    tpu.vector_store %arg19[%c0_51, %c0_52, %c24], %134 {strides = array<i32>} : memref<2x8x32xf32, #tpu.memory_space<vmem>>, vector<2x8x8xf32>,
    %c0_53 = arith.constant 0 : index
    %c0_54 = arith.constant 0 : index
    %c0_55 = arith.constant 0 : index
    %136 = vector.load %arg19[%c0_53, %c0_54, %c0_55] : memref<2x8x32xf32, #tpu.memory_space<vmem>>, vector<2x8x32xf32>
    %137 = vector.shape_cast %136 : vector<2x8x32xf32> to vector<16x32xf32>
    %138 = arith.truncf %137 : vector<16x32xf32> to vector<16x32xbf16>
    %c0_56 = arith.constant 0 : index
    %c0_57 = arith.constant 0 : index
    %c0_58 = arith.constant 0 : index
    %139 = vector.load %arg7[%c0_56, %c0_57, %c0_58] : memref<2x32x32xbf16, #tpu.memory_space<vmem>>, vector<1x32x32xbf16>
    %140 = vector.shape_cast %139 : vector<1x32x32xbf16> to vector<32x32xbf16>
    %cst_59 = arith.constant dense<0.000000e+00> : vector<16x32xf32>
    %141 = tpu.matmul %138, %140, %cst_59 {dimension_numbers = #tpu.dot_dimension_numbers<[1], [0], [0], [1], [0, 0, 1, 1], [], []>} : vector<16x32xbf16>, vector<32x32xbf16>, vector<16x32xf32> -> vector<16x32xf32>
    %c0_60 = arith.constant 0 : index
    %c0_61 = arith.constant 0 : index
    %c0_62 = arith.constant 0 : index
    %142 = vector.load %arg8[%c0_60, %c0_61, %c0_62] : memref<2x1x32xf32, #tpu.memory_space<vmem>>, vector<1x1x32xf32>
    %143 = vector.shape_cast %142 : vector<1x1x32xf32> to vector<1x32xf32>
    %144 = vector.broadcast %143 : vector<1x32xf32> to vector<16x32xf32>
    %145 = arith.addf %141, %144 : vector<16x32xf32>
    %146 = arith.addf %5, %145 : vector<16x32xf32>
    %c0_63 = arith.constant 0 : index
    %c0_64 = arith.constant 0 : index
    %c0_65 = arith.constant 0 : index
    %147 = vector.load %arg9[%c0_63, %c0_64, %c0_65] : memref<2x1x32xf32, #tpu.memory_space<vmem>>, vector<1x1x32xf32>
    %148 = vector.shape_cast %147 : vector<1x1x32xf32> to vector<1x32xf32>
    %c0_66 = arith.constant 0 : index
    %c0_67 = arith.constant 0 : index
    %c0_68 = arith.constant 0 : index
    %149 = vector.load %arg10[%c0_66, %c0_67, %c0_68] : memref<2x1x32xf32, #tpu.memory_space<vmem>>, vector<1x1x32xf32>
    %150 = vector.shape_cast %149 : vector<1x1x32xf32> to vector<1x32xf32>
    %cst_69 = arith.constant dense<0.000000e+00> : vector<16xf32>
    %151 = vector.multi_reduction <add>, %146, %cst_69 [1] : vector<16x32xf32> to vector<16xf32>
    %152 = vector.shape_cast %151 : vector<16xf32> to vector<16x1xf32>
    %cst_70 = arith.constant 3.200000e+01 : f32
    %153 = vector.broadcast %cst_70 : f32 to vector<16x1xf32>
    %154 = arith.divf %152, %153 : vector<16x1xf32>
    %155 = vector.broadcast %154 : vector<16x1xf32> to vector<16x32xf32>
    %156 = arith.subf %146, %155 : vector<16x32xf32>
    %157 = arith.mulf %156, %156 : vector<16x32xf32>
    %cst_71 = arith.constant dense<0.000000e+00> : vector<16xf32>
    %158 = vector.multi_reduction <add>, %157, %cst_71 [1] : vector<16x32xf32> to vector<16xf32>
    %159 = vector.shape_cast %158 : vector<16xf32> to vector<16x1xf32>
    %cst_72 = arith.constant 3.200000e+01 : f32
    %160 = vector.broadcast %cst_72 : f32 to vector<16x1xf32>
    %161 = arith.divf %159, %160 : vector<16x1xf32>
    %162 = vector.broadcast %154 : vector<16x1xf32> to vector<16x32xf32>
    %163 = arith.subf %146, %162 : vector<16x32xf32>
    %cst_73 = arith.constant 9.99999974E-6 : f32
    %164 = vector.broadcast %cst_73 : f32 to vector<16x1xf32>
    %165 = arith.addf %161, %164 : vector<16x1xf32>
    %166 = math.rsqrt %165 : vector<16x1xf32>
    %167 = vector.broadcast %166 : vector<16x1xf32> to vector<16x32xf32>
    %168 = arith.mulf %163, %167 : vector<16x32xf32>
    %169 = vector.broadcast %148 : vector<1x32xf32> to vector<16x32xf32>
    %170 = arith.mulf %168, %169 : vector<16x32xf32>
    %171 = vector.broadcast %150 : vector<1x32xf32> to vector<16x32xf32>
    %172 = arith.addf %170, %171 : vector<16x32xf32>
    %173 = arith.truncf %172 : vector<16x32xf32> to vector<16x32xbf16>
    %c0_74 = arith.constant 0 : index
    %c0_75 = arith.constant 0 : index
    %c0_76 = arith.constant 0 : index
    %174 = vector.load %arg11[%c0_74, %c0_75, %c0_76] : memref<2x32x128xbf16, #tpu.memory_space<vmem>>, vector<1x32x128xbf16>
    %175 = vector.shape_cast %174 : vector<1x32x128xbf16> to vector<32x128xbf16>
    %cst_77 = arith.constant dense<0.000000e+00> : vector<16x128xf32>
    %176 = tpu.matmul %173, %175, %cst_77 {dimension_numbers = #tpu.dot_dimension_numbers<[1], [0], [0], [1], [0, 0, 1, 1], [], []>} : vector<16x32xbf16>, vector<32x128xbf16>, vector<16x128xf32> -> vector<16x128xf32>
    %c0_78 = arith.constant 0 : index
    %c0_79 = arith.constant 0 : index
    %c0_80 = arith.constant 0 : index
    %177 = vector.load %arg12[%c0_78, %c0_79, %c0_80] : memref<2x1x128xf32, #tpu.memory_space<vmem>>, vector<1x1x128xf32>
    %178 = vector.shape_cast %177 : vector<1x1x128xf32> to vector<1x128xf32>
    %179 = vector.broadcast %178 : vector<1x128xf32> to vector<16x128xf32>
    %180 = arith.addf %176, %179 : vector<16x128xf32>
    %cst_81 = arith.constant 5.000000e-01 : f32
    %181 = vector.broadcast %cst_81 : f32 to vector<16x128xf32>
    %182 = arith.mulf %181, %180 : vector<16x128xf32>
    %cst_82 = arith.constant 0.707106769 : f32
    %183 = vector.broadcast %cst_82 : f32 to vector<16x128xf32>
    %184 = arith.mulf %180, %183 : vector<16x128xf32>
    %185 = math.erf %184 : vector<16x128xf32>
    %cst_83 = arith.constant 1.000000e+00 : f32
    %186 = vector.broadcast %cst_83 : f32 to vector<16x128xf32>
    %187 = arith.addf %186, %185 : vector<16x128xf32>
    %188 = arith.mulf %182, %187 : vector<16x128xf32>
    %189 = arith.truncf %188 : vector<16x128xf32> to vector<16x128xbf16>
    %c0_84 = arith.constant 0 : index
    %c0_85 = arith.constant 0 : index
    %c0_86 = arith.constant 0 : index
    %190 = vector.load %arg13[%c0_84, %c0_85, %c0_86] : memref<2x128x32xbf16, #tpu.memory_space<vmem>>, vector<1x128x32xbf16>
    %191 = vector.shape_cast %190 : vector<1x128x32xbf16> to vector<128x32xbf16>
    %cst_87 = arith.constant dense<0.000000e+00> : vector<16x32xf32>
    %192 = tpu.matmul %189, %191, %cst_87 {dimension_numbers = #tpu.dot_dimension_numbers<[1], [0], [0], [1], [0, 0, 1, 1], [], []>} : vector<16x128xbf16>, vector<128x32xbf16>, vector<16x32xf32> -> vector<16x32xf32>
    %c0_88 = arith.constant 0 : index
    %c0_89 = arith.constant 0 : index
    %c0_90 = arith.constant 0 : index
    %193 = vector.load %arg14[%c0_88, %c0_89, %c0_90] : memref<2x1x32xf32, #tpu.memory_space<vmem>>, vector<1x1x32xf32>
    %194 = vector.shape_cast %193 : vector<1x1x32xf32> to vector<1x32xf32>
    %195 = vector.broadcast %194 : vector<1x32xf32> to vector<16x32xf32>
    %196 = arith.addf %192, %195 : vector<16x32xf32>
    %197 = arith.addf %146, %196 : vector<16x32xf32>
    %c1 = arith.constant 1 : index
    %c0_91 = arith.constant 0 : index
    %c0_92 = arith.constant 0 : index
    %198 = vector.load %arg3[%c1, %c0_91, %c0_92] : memref<2x1x32xf32, #tpu.memory_space<vmem>>, vector<1x1x32xf32>
    %199 = vector.shape_cast %198 : vector<1x1x32xf32> to vector<1x32xf32>
    %c1_93 = arith.constant 1 : index
    %c0_94 = arith.constant 0 : index
    %c0_95 = arith.constant 0 : index
    %200 = vector.load %arg4[%c1_93, %c0_94, %c0_95] : memref<2x1x32xf32, #tpu.memory_space<vmem>>, vector<1x1x32xf32>
    %201 = vector.shape_cast %200 : vector<1x1x32xf32> to vector<1x32xf32>
    %cst_96 = arith.constant dense<0.000000e+00> : vector<16xf32>
    %202 = vector.multi_reduction <add>, %197, %cst_96 [1] : vector<16x32xf32> to vector<16xf32>
    %203 = vector.shape_cast %202 : vector<16xf32> to vector<16x1xf32>
    %cst_97 = arith.constant 3.200000e+01 : f32
    %204 = vector.broadcast %cst_97 : f32 to vector<16x1xf32>
    %205 = arith.divf %203, %204 : vector<16x1xf32>
    %206 = vector.broadcast %205 : vector<16x1xf32> to vector<16x32xf32>
    %207 = arith.subf %197, %206 : vector<16x32xf32>
    %208 = arith.mulf %207, %207 : vector<16x32xf32>
    %cst_98 = arith.constant dense<0.000000e+00> : vector<16xf32>
    %209 = vector.multi_reduction <add>, %208, %cst_98 [1] : vector<16x32xf32> to vector<16xf32>
    %210 = vector.shape_cast %209 : vector<16xf32> to vector<16x1xf32>
    %cst_99 = arith.constant 3.200000e+01 : f32
    %211 = vector.broadcast %cst_99 : f32 to vector<16x1xf32>
    %212 = arith.divf %210, %211 : vector<16x1xf32>
    %213 = vector.broadcast %205 : vector<16x1xf32> to vector<16x32xf32>
    %214 = arith.subf %197, %213 : vector<16x32xf32>
    %cst_100 = arith.constant 9.99999974E-6 : f32
    %215 = vector.broadcast %cst_100 : f32 to vector<16x1xf32>
    %216 = arith.addf %212, %215 : vector<16x1xf32>
    %217 = math.rsqrt %216 : vector<16x1xf32>
    %218 = vector.broadcast %217 : vector<16x1xf32> to vector<16x32xf32>
    %219 = arith.mulf %214, %218 : vector<16x32xf32>
    %220 = vector.broadcast %199 : vector<1x32xf32> to vector<16x32xf32>
    %221 = arith.mulf %219, %220 : vector<16x32xf32>
    %222 = vector.broadcast %201 : vector<1x32xf32> to vector<16x32xf32>
    %223 = arith.addf %221, %222 : vector<16x32xf32>
    %224 = arith.truncf %223 : vector<16x32xf32> to vector<16x32xbf16>
    %c1_101 = arith.constant 1 : index
    %c0_102 = arith.constant 0 : index
    %c0_103 = arith.constant 0 : index
    %225 = vector.load %arg5[%c1_101, %c0_102, %c0_103] : memref<2x32x96xbf16, #tpu.memory_space<vmem>>, vector<1x32x96xbf16>
    %226 = vector.shape_cast %225 : vector<1x32x96xbf16> to vector<32x96xbf16>
    %cst_104 = arith.constant dense<0.000000e+00> : vector<16x96xf32>
    %227 = tpu.matmul %224, %226, %cst_104 {dimension_numbers = #tpu.dot_dimension_numbers<[1], [0], [0], [1], [0, 0, 1, 1], [], []>} : vector<16x32xbf16>, vector<32x96xbf16>, vector<16x96xf32> -> vector<16x96xf32>
    %c1_105 = arith.constant 1 : index
    %c0_106 = arith.constant 0 : index
    %c0_107 = arith.constant 0 : index
    %228 = vector.load %arg6[%c1_105, %c0_106, %c0_107] : memref<2x1x96xf32, #tpu.memory_space<vmem>>, vector<1x1x96xf32>
    %229 = vector.shape_cast %228 : vector<1x1x96xf32> to vector<1x96xf32>
    %230 = vector.broadcast %229 : vector<1x96xf32> to vector<16x96xf32>
    %231 = arith.addf %227, %230 : vector<16x96xf32>
    %232 = vector.shape_cast %231 : vector<16x96xf32> to vector<2x8x96xf32>
    %233 = vector.extract_strided_slice %232 {offsets = [0, 0, 0], sizes = [2, 8, 32], strides = [1, 1, 1]} : vector<2x8x96xf32> to vector<2x8x32xf32>
    %cst_108 = arith.constant 0.353553385 : f32
    %234 = vector.broadcast %cst_108 : f32 to vector<2x8x32xf32>
    %235 = arith.mulf %233, %234 : vector<2x8x32xf32>
    %236 = arith.truncf %235 : vector<2x8x32xf32> to vector<2x8x32xbf16>
    %237 = vector.extract_strided_slice %232 {offsets = [0, 0, 32], sizes = [2, 8, 32], strides = [1, 1, 1]} : vector<2x8x96xf32> to vector<2x8x32xf32>
    %238 = arith.truncf %237 : vector<2x8x32xf32> to vector<2x8x32xbf16>
    %239 = vector.extract_strided_slice %232 {offsets = [0, 0, 64], sizes = [2, 8, 32], strides = [1, 1, 1]} : vector<2x8x96xf32> to vector<2x8x32xf32>
    %240 = arith.truncf %239 : vector<2x8x32xf32> to vector<2x8x32xbf16>
    %241 = vector.extract_strided_slice %236 {offsets = [0, 0, 0], sizes = [2, 8, 8], strides = [1, 1, 1]} : vector<2x8x32xbf16> to vector<2x8x8xbf16>
    %242 = vector.extract_strided_slice %238 {offsets = [0, 0, 0], sizes = [2, 8, 8], strides = [1, 1, 1]} : vector<2x8x32xbf16> to vector<2x8x8xbf16>
    %243 = vector.extract_strided_slice %240 {offsets = [0, 0, 0], sizes = [2, 8, 8], strides = [1, 1, 1]} : vector<2x8x32xbf16> to vector<2x8x8xbf16>
    "tpu.trace_start"() <{level = 10 : i32, message = "btd,bsd->bts"}> : () -> ()
    %cst_109 = arith.constant dense<0.000000e+00> : vector<2x8x8xf32>
    %244 = tpu.matmul %241, %242, %cst_109 {dimension_numbers = #tpu.dot_dimension_numbers<[2], [2], [1], [1], [0, 0, 0, 1, 1, 1], [0], [0]>} : vector<2x8x8xbf16>, vector<2x8x8xbf16>, vector<2x8x8xf32> -> vector<2x8x8xf32>
    "tpu.trace_stop"() : () -> ()
    %245 = vector.broadcast %12 : vector<1x8x8xf32> to vector<2x8x8xf32>
    %246 = arith.addf %244, %245 : vector<2x8x8xf32>
    %cst_110 = arith.constant dense<0xFF800000> : vector<2x8xf32>
    %247 = vector.multi_reduction <maximumf>, %246, %cst_110 [2] : vector<2x8x8xf32> to vector<2x8xf32>
    %cst_111 = arith.constant 0xFF800000 : f32
    %248 = vector.broadcast %cst_111 : f32 to vector<2x8xf32>
    %249 = arith.maximumf %248, %247 : vector<2x8xf32>
    %250 = vector.shape_cast %249 : vector<2x8xf32> to vector<2x8x1xf32>
    %251 = vector.broadcast %250 : vector<2x8x1xf32> to vector<2x8x8xf32>
    %252 = arith.subf %246, %251 : vector<2x8x8xf32>
    %253 = math.exp %252 : vector<2x8x8xf32>
    %cst_112 = arith.constant dense<0.000000e+00> : vector<2x8xf32>
    %254 = vector.multi_reduction <add>, %253, %cst_112 [2] : vector<2x8x8xf32> to vector<2x8xf32>
    %255 = vector.shape_cast %254 : vector<2x8xf32> to vector<2x8x1xf32>
    %256 = vector.broadcast %255 : vector<2x8x1xf32> to vector<2x8x8xf32>
    %257 = arith.divf %253, %256 : vector<2x8x8xf32>
    %258 = arith.truncf %257 : vector<2x8x8xf32> to vector<2x8x8xbf16>
    "tpu.trace_start"() <{level = 10 : i32, message = "bts,bsd->btd"}> : () -> ()
    %cst_113 = arith.constant dense<0.000000e+00> : vector<2x8x8xf32>
    %259 = tpu.matmul %258, %243, %cst_113 {dimension_numbers = #tpu.dot_dimension_numbers<[2], [1], [1], [2], [0, 0, 0, 1, 1, 2], [0], [0]>} : vector<2x8x8xbf16>, vector<2x8x8xbf16>, vector<2x8x8xf32> -> vector<2x8x8xf32>
    "tpu.trace_stop"() : () -> ()
    %c0_114 = arith.constant 0 : index
    %c0_115 = arith.constant 0 : index
    %c0_116 = arith.constant 0 : index
    %260 = vector.load %arg19[%c0_114, %c0_115, %c0_116] : memref<2x8x32xf32, #tpu.memory_space<vmem>>, vector<2x8x8xf32>
    tpu.vector_store %arg19[%c0_114, %c0_115, %c0_116], %259 {strides = array<i32>} : memref<2x8x32xf32, #tpu.memory_space<vmem>>, vector<2x8x8xf32>,
    %261 = vector.extract_strided_slice %236 {offsets = [0, 0, 8], sizes = [2, 8, 8], strides = [1, 1, 1]} : vector<2x8x32xbf16> to vector<2x8x8xbf16>
    %262 = vector.extract_strided_slice %238 {offsets = [0, 0, 8], sizes = [2, 8, 8], strides = [1, 1, 1]} : vector<2x8x32xbf16> to vector<2x8x8xbf16>
    %263 = vector.extract_strided_slice %240 {offsets = [0, 0, 8], sizes = [2, 8, 8], strides = [1, 1, 1]} : vector<2x8x32xbf16> to vector<2x8x8xbf16>
    "tpu.trace_start"() <{level = 10 : i32, message = "btd,bsd->bts"}> : () -> ()
    %cst_117 = arith.constant dense<0.000000e+00> : vector<2x8x8xf32>
    %264 = tpu.matmul %261, %262, %cst_117 {dimension_numbers = #tpu.dot_dimension_numbers<[2], [2], [1], [1], [0, 0, 0, 1, 1, 1], [0], [0]>} : vector<2x8x8xbf16>, vector<2x8x8xbf16>, vector<2x8x8xf32> -> vector<2x8x8xf32>
    "tpu.trace_stop"() : () -> ()
    %265 = vector.broadcast %12 : vector<1x8x8xf32> to vector<2x8x8xf32>
    %266 = arith.addf %264, %265 : vector<2x8x8xf32>
    %cst_118 = arith.constant dense<0xFF800000> : vector<2x8xf32>
    %267 = vector.multi_reduction <maximumf>, %266, %cst_118 [2] : vector<2x8x8xf32> to vector<2x8xf32>
    %cst_119 = arith.constant 0xFF800000 : f32
    %268 = vector.broadcast %cst_119 : f32 to vector<2x8xf32>
    %269 = arith.maximumf %268, %267 : vector<2x8xf32>
    %270 = vector.shape_cast %269 : vector<2x8xf32> to vector<2x8x1xf32>
    %271 = vector.broadcast %270 : vector<2x8x1xf32> to vector<2x8x8xf32>
    %272 = arith.subf %266, %271 : vector<2x8x8xf32>
    %273 = math.exp %272 : vector<2x8x8xf32>
    %cst_120 = arith.constant dense<0.000000e+00> : vector<2x8xf32>
    %274 = vector.multi_reduction <add>, %273, %cst_120 [2] : vector<2x8x8xf32> to vector<2x8xf32>
    %275 = vector.shape_cast %274 : vector<2x8xf32> to vector<2x8x1xf32>
    %276 = vector.broadcast %275 : vector<2x8x1xf32> to vector<2x8x8xf32>
    %277 = arith.divf %273, %276 : vector<2x8x8xf32>
    %278 = arith.truncf %277 : vector<2x8x8xf32> to vector<2x8x8xbf16>
    "tpu.trace_start"() <{level = 10 : i32, message = "bts,bsd->btd"}> : () -> ()
    %cst_121 = arith.constant dense<0.000000e+00> : vector<2x8x8xf32>
    %279 = tpu.matmul %278, %263, %cst_121 {dimension_numbers = #tpu.dot_dimension_numbers<[2], [1], [1], [2], [0, 0, 0, 1, 1, 2], [0], [0]>} : vector<2x8x8xbf16>, vector<2x8x8xbf16>, vector<2x8x8xf32> -> vector<2x8x8xf32>
    "tpu.trace_stop"() : () -> ()
    %c0_122 = arith.constant 0 : index
    %c0_123 = arith.constant 0 : index
    %c8_124 = arith.constant 8 : index
    %280 = vector.load %arg19[%c0_122, %c0_123, %c8_124] : memref<2x8x32xf32, #tpu.memory_space<vmem>>, vector<2x8x8xf32>
    tpu.vector_store %arg19[%c0_122, %c0_123, %c8_124], %279 {strides = array<i32>} : memref<2x8x32xf32, #tpu.memory_space<vmem>>, vector<2x8x8xf32>,
    %281 = vector.extract_strided_slice %236 {offsets = [0, 0, 16], sizes = [2, 8, 8], strides = [1, 1, 1]} : vector<2x8x32xbf16> to vector<2x8x8xbf16>
    %282 = vector.extract_strided_slice %238 {offsets = [0, 0, 16], sizes = [2, 8, 8], strides = [1, 1, 1]} : vector<2x8x32xbf16> to vector<2x8x8xbf16>
    %283 = vector.extract_strided_slice %240 {offsets = [0, 0, 16], sizes = [2, 8, 8], strides = [1, 1, 1]} : vector<2x8x32xbf16> to vector<2x8x8xbf16>
    "tpu.trace_start"() <{level = 10 : i32, message = "btd,bsd->bts"}> : () -> ()
    %cst_125 = arith.constant dense<0.000000e+00> : vector<2x8x8xf32>
    %284 = tpu.matmul %281, %282, %cst_125 {dimension_numbers = #tpu.dot_dimension_numbers<[2], [2], [1], [1], [0, 0, 0, 1, 1, 1], [0], [0]>} : vector<2x8x8xbf16>, vector<2x8x8xbf16>, vector<2x8x8xf32> -> vector<2x8x8xf32>
    "tpu.trace_stop"() : () -> ()
    %285 = vector.broadcast %12 : vector<1x8x8xf32> to vector<2x8x8xf32>
    %286 = arith.addf %284, %285 : vector<2x8x8xf32>
    %cst_126 = arith.constant dense<0xFF800000> : vector<2x8xf32>
    %287 = vector.multi_reduction <maximumf>, %286, %cst_126 [2] : vector<2x8x8xf32> to vector<2x8xf32>
    %cst_127 = arith.constant 0xFF800000 : f32
    %288 = vector.broadcast %cst_127 : f32 to vector<2x8xf32>
    %289 = arith.maximumf %288, %287 : vector<2x8xf32>
    %290 = vector.shape_cast %289 : vector<2x8xf32> to vector<2x8x1xf32>
    %291 = vector.broadcast %290 : vector<2x8x1xf32> to vector<2x8x8xf32>
    %292 = arith.subf %286, %291 : vector<2x8x8xf32>
    %293 = math.exp %292 : vector<2x8x8xf32>
    %cst_128 = arith.constant dense<0.000000e+00> : vector<2x8xf32>
    %294 = vector.multi_reduction <add>, %293, %cst_128 [2] : vector<2x8x8xf32> to vector<2x8xf32>
    %295 = vector.shape_cast %294 : vector<2x8xf32> to vector<2x8x1xf32>
    %296 = vector.broadcast %295 : vector<2x8x1xf32> to vector<2x8x8xf32>
    %297 = arith.divf %293, %296 : vector<2x8x8xf32>
    %298 = arith.truncf %297 : vector<2x8x8xf32> to vector<2x8x8xbf16>
    "tpu.trace_start"() <{level = 10 : i32, message = "bts,bsd->btd"}> : () -> ()
    %cst_129 = arith.constant dense<0.000000e+00> : vector<2x8x8xf32>
    %299 = tpu.matmul %298, %283, %cst_129 {dimension_numbers = #tpu.dot_dimension_numbers<[2], [1], [1], [2], [0, 0, 0, 1, 1, 2], [0], [0]>} : vector<2x8x8xbf16>, vector<2x8x8xbf16>, vector<2x8x8xf32> -> vector<2x8x8xf32>
    "tpu.trace_stop"() : () -> ()
    %c0_130 = arith.constant 0 : index
    %c0_131 = arith.constant 0 : index
    %c16_132 = arith.constant 16 : index
    %300 = vector.load %arg19[%c0_130, %c0_131, %c16_132] : memref<2x8x32xf32, #tpu.memory_space<vmem>>, vector<2x8x8xf32>
    tpu.vector_store %arg19[%c0_130, %c0_131, %c16_132], %299 {strides = array<i32>} : memref<2x8x32xf32, #tpu.memory_space<vmem>>, vector<2x8x8xf32>,
    %301 = vector.extract_strided_slice %236 {offsets = [0, 0, 24], sizes = [2, 8, 8], strides = [1, 1, 1]} : vector<2x8x32xbf16> to vector<2x8x8xbf16>
    %302 = vector.extract_strided_slice %238 {offsets = [0, 0, 24], sizes = [2, 8, 8], strides = [1, 1, 1]} : vector<2x8x32xbf16> to vector<2x8x8xbf16>
    %303 = vector.extract_strided_slice %240 {offsets = [0, 0, 24], sizes = [2, 8, 8], strides = [1, 1, 1]} : vector<2x8x32xbf16> to vector<2x8x8xbf16>
    "tpu.trace_start"() <{level = 10 : i32, message = "btd,bsd->bts"}> : () -> ()
    %cst_133 = arith.constant dense<0.000000e+00> : vector<2x8x8xf32>
    %304 = tpu.matmul %301, %302, %cst_133 {dimension_numbers = #tpu.dot_dimension_numbers<[2], [2], [1], [1], [0, 0, 0, 1, 1, 1], [0], [0]>} : vector<2x8x8xbf16>, vector<2x8x8xbf16>, vector<2x8x8xf32> -> vector<2x8x8xf32>
    "tpu.trace_stop"() : () -> ()
    %305 = vector.broadcast %12 : vector<1x8x8xf32> to vector<2x8x8xf32>
    %306 = arith.addf %304, %305 : vector<2x8x8xf32>
    %cst_134 = arith.constant dense<0xFF800000> : vector<2x8xf32>
    %307 = vector.multi_reduction <maximumf>, %306, %cst_134 [2] : vector<2x8x8xf32> to vector<2x8xf32>
    %cst_135 = arith.constant 0xFF800000 : f32
    %308 = vector.broadcast %cst_135 : f32 to vector<2x8xf32>
    %309 = arith.maximumf %308, %307 : vector<2x8xf32>
    %310 = vector.shape_cast %309 : vector<2x8xf32> to vector<2x8x1xf32>
    %311 = vector.broadcast %310 : vector<2x8x1xf32> to vector<2x8x8xf32>
    %312 = arith.subf %306, %311 : vector<2x8x8xf32>
    %313 = math.exp %312 : vector<2x8x8xf32>
    %cst_136 = arith.constant dense<0.000000e+00> : vector<2x8xf32>
    %314 = vector.multi_reduction <add>, %313, %cst_136 [2] : vector<2x8x8xf32> to vector<2x8xf32>
    %315 = vector.shape_cast %314 : vector<2x8xf32> to vector<2x8x1xf32>
    %316 = vector.broadcast %315 : vector<2x8x1xf32> to vector<2x8x8xf32>
    %317 = arith.divf %313, %316 : vector<2x8x8xf32>
    %318 = arith.truncf %317 : vector<2x8x8xf32> to vector<2x8x8xbf16>
    "tpu.trace_start"() <{level = 10 : i32, message = "bts,bsd->btd"}> : () -> ()
    %cst_137 = arith.constant dense<0.000000e+00> : vector<2x8x8xf32>
    %319 = tpu.matmul %318, %303, %cst_137 {dimension_numbers = #tpu.dot_dimension_numbers<[2], [1], [1], [2], [0, 0, 0, 1, 1, 2], [0], [0]>} : vector<2x8x8xbf16>, vector<2x8x8xbf16>, vector<2x8x8xf32> -> vector<2x8x8xf32>
    "tpu.trace_stop"() : () -> ()
    %c0_138 = arith.constant 0 : index
    %c0_139 = arith.constant 0 : index
    %c24_140 = arith.constant 24 : index
    %320 = vector.load %arg19[%c0_138, %c0_139, %c24_140] : memref<2x8x32xf32, #tpu.memory_space<vmem>>, vector<2x8x8xf32>
    tpu.vector_store %arg19[%c0_138, %c0_139, %c24_140], %319 {strides = array<i32>} : memref<2x8x32xf32, #tpu.memory_space<vmem>>, vector<2x8x8xf32>,
    %c0_141 = arith.constant 0 : index
    %c0_142 = arith.constant 0 : index
    %c0_143 = arith.constant 0 : index
    %321 = vector.load %arg19[%c0_141, %c0_142, %c0_143] : memref<2x8x32xf32, #tpu.memory_space<vmem>>, vector<2x8x32xf32>
    %322 = vector.shape_cast %321 : vector<2x8x32xf32> to vector<16x32xf32>
    %323 = arith.truncf %322 : vector<16x32xf32> to vector<16x32xbf16>
    %c1_144 = arith.constant 1 : index
    %c0_145 = arith.constant 0 : index
    %c0_146 = arith.constant 0 : index
    %324 = vector.load %arg7[%c1_144, %c0_145, %c0_146] : memref<2x32x32xbf16, #tpu.memory_space<vmem>>, vector<1x32x32xbf16>
    %325 = vector.shape_cast %324 : vector<1x32x32xbf16> to vector<32x32xbf16>
    %cst_147 = arith.constant dense<0.000000e+00> : vector<16x32xf32>
    %326 = tpu.matmul %323, %325, %cst_147 {dimension_numbers = #tpu.dot_dimension_numbers<[1], [0], [0], [1], [0, 0, 1, 1], [], []>} : vector<16x32xbf16>, vector<32x32xbf16>, vector<16x32xf32> -> vector<16x32xf32>
    %c1_148 = arith.constant 1 : index
    %c0_149 = arith.constant 0 : index
    %c0_150 = arith.constant 0 : index
    %327 = vector.load %arg8[%c1_148, %c0_149, %c0_150] : memref<2x1x32xf32, #tpu.memory_space<vmem>>, vector<1x1x32xf32>
    %328 = vector.shape_cast %327 : vector<1x1x32xf32> to vector<1x32xf32>
    %329 = vector.broadcast %328 : vector<1x32xf32> to vector<16x32xf32>
    %330 = arith.addf %326, %329 : vector<16x32xf32>
    %331 = arith.addf %197, %330 : vector<16x32xf32>
    %c1_151 = arith.constant 1 : index
    %c0_152 = arith.constant 0 : index
    %c0_153 = arith.constant 0 : index
    %332 = vector.load %arg9[%c1_151, %c0_152, %c0_153] : memref<2x1x32xf32, #tpu.memory_space<vmem>>, vector<1x1x32xf32>
    %333 = vector.shape_cast %332 : vector<1x1x32xf32> to vector<1x32xf32>
    %c1_154 = arith.constant 1 : index
    %c0_155 = arith.constant 0 : index
    %c0_156 = arith.constant 0 : index
    %334 = vector.load %arg10[%c1_154, %c0_155, %c0_156] : memref<2x1x32xf32, #tpu.memory_space<vmem>>, vector<1x1x32xf32>
    %335 = vector.shape_cast %334 : vector<1x1x32xf32> to vector<1x32xf32>
    %cst_157 = arith.constant dense<0.000000e+00> : vector<16xf32>
    %336 = vector.multi_reduction <add>, %331, %cst_157 [1] : vector<16x32xf32> to vector<16xf32>
    %337 = vector.shape_cast %336 : vector<16xf32> to vector<16x1xf32>
    %cst_158 = arith.constant 3.200000e+01 : f32
    %338 = vector.broadcast %cst_158 : f32 to vector<16x1xf32>
    %339 = arith.divf %337, %338 : vector<16x1xf32>
    %340 = vector.broadcast %339 : vector<16x1xf32> to vector<16x32xf32>
    %341 = arith.subf %331, %340 : vector<16x32xf32>
    %342 = arith.mulf %341, %341 : vector<16x32xf32>
    %cst_159 = arith.constant dense<0.000000e+00> : vector<16xf32>
    %343 = vector.multi_reduction <add>, %342, %cst_159 [1] : vector<16x32xf32> to vector<16xf32>
    %344 = vector.shape_cast %343 : vector<16xf32> to vector<16x1xf32>
    %cst_160 = arith.constant 3.200000e+01 : f32
    %345 = vector.broadcast %cst_160 : f32 to vector<16x1xf32>
    %346 = arith.divf %344, %345 : vector<16x1xf32>
    %347 = vector.broadcast %339 : vector<16x1xf32> to vector<16x32xf32>
    %348 = arith.subf %331, %347 : vector<16x32xf32>
    %cst_161 = arith.constant 9.99999974E-6 : f32
    %349 = vector.broadcast %cst_161 : f32 to vector<16x1xf32>
    %350 = arith.addf %346, %349 : vector<16x1xf32>
    %351 = math.rsqrt %350 : vector<16x1xf32>
    %352 = vector.broadcast %351 : vector<16x1xf32> to vector<16x32xf32>
    %353 = arith.mulf %348, %352 : vector<16x32xf32>
    %354 = vector.broadcast %333 : vector<1x32xf32> to vector<16x32xf32>
    %355 = arith.mulf %353, %354 : vector<16x32xf32>
    %356 = vector.broadcast %335 : vector<1x32xf32> to vector<16x32xf32>
    %357 = arith.addf %355, %356 : vector<16x32xf32>
    %358 = arith.truncf %357 : vector<16x32xf32> to vector<16x32xbf16>
    %c1_162 = arith.constant 1 : index
    %c0_163 = arith.constant 0 : index
    %c0_164 = arith.constant 0 : index
    %359 = vector.load %arg11[%c1_162, %c0_163, %c0_164] : memref<2x32x128xbf16, #tpu.memory_space<vmem>>, vector<1x32x128xbf16>
    %360 = vector.shape_cast %359 : vector<1x32x128xbf16> to vector<32x128xbf16>
    %cst_165 = arith.constant dense<0.000000e+00> : vector<16x128xf32>
    %361 = tpu.matmul %358, %360, %cst_165 {dimension_numbers = #tpu.dot_dimension_numbers<[1], [0], [0], [1], [0, 0, 1, 1], [], []>} : vector<16x32xbf16>, vector<32x128xbf16>, vector<16x128xf32> -> vector<16x128xf32>
    %c1_166 = arith.constant 1 : index
    %c0_167 = arith.constant 0 : index
    %c0_168 = arith.constant 0 : index
    %362 = vector.load %arg12[%c1_166, %c0_167, %c0_168] : memref<2x1x128xf32, #tpu.memory_space<vmem>>, vector<1x1x128xf32>
    %363 = vector.shape_cast %362 : vector<1x1x128xf32> to vector<1x128xf32>
    %364 = vector.broadcast %363 : vector<1x128xf32> to vector<16x128xf32>
    %365 = arith.addf %361, %364 : vector<16x128xf32>
    %cst_169 = arith.constant 5.000000e-01 : f32
    %366 = vector.broadcast %cst_169 : f32 to vector<16x128xf32>
    %367 = arith.mulf %366, %365 : vector<16x128xf32>
    %cst_170 = arith.constant 0.707106769 : f32
    %368 = vector.broadcast %cst_170 : f32 to vector<16x128xf32>
    %369 = arith.mulf %365, %368 : vector<16x128xf32>
    %370 = math.erf %369 : vector<16x128xf32>
    %cst_171 = arith.constant 1.000000e+00 : f32
    %371 = vector.broadcast %cst_171 : f32 to vector<16x128xf32>
    %372 = arith.addf %371, %370 : vector<16x128xf32>
    %373 = arith.mulf %367, %372 : vector<16x128xf32>
    %374 = arith.truncf %373 : vector<16x128xf32> to vector<16x128xbf16>
    %c1_172 = arith.constant 1 : index
    %c0_173 = arith.constant 0 : index
    %c0_174 = arith.constant 0 : index
    %375 = vector.load %arg13[%c1_172, %c0_173, %c0_174] : memref<2x128x32xbf16, #tpu.memory_space<vmem>>, vector<1x128x32xbf16>
    %376 = vector.shape_cast %375 : vector<1x128x32xbf16> to vector<128x32xbf16>
    %cst_175 = arith.constant dense<0.000000e+00> : vector<16x32xf32>
    %377 = tpu.matmul %374, %376, %cst_175 {dimension_numbers = #tpu.dot_dimension_numbers<[1], [0], [0], [1], [0, 0, 1, 1], [], []>} : vector<16x128xbf16>, vector<128x32xbf16>, vector<16x32xf32> -> vector<16x32xf32>
    %c1_176 = arith.constant 1 : index
    %c0_177 = arith.constant 0 : index
    %c0_178 = arith.constant 0 : index
    %378 = vector.load %arg14[%c1_176, %c0_177, %c0_178] : memref<2x1x32xf32, #tpu.memory_space<vmem>>, vector<1x1x32xf32>
    %379 = vector.shape_cast %378 : vector<1x1x32xf32> to vector<1x32xf32>
    %380 = vector.broadcast %379 : vector<1x32xf32> to vector<16x32xf32>
    %381 = arith.addf %377, %380 : vector<16x32xf32>
    %382 = arith.addf %331, %381 : vector<16x32xf32>
    %383 = vector.shape_cast %382 : vector<16x32xf32> to vector<2x8x32xf32>
    %384 = vector.extract_strided_slice %383 {offsets = [0, 7, 0], sizes = [2, 1, 32], strides = [1, 1, 1]} : vector<2x8x32xf32> to vector<2x1x32xf32>
    %385 = vector.shape_cast %384 : vector<2x1x32xf32> to vector<2x32xf32>
    %c0_179 = arith.constant 0 : index
    %c0_180 = arith.constant 0 : index
    %386 = vector.load %arg15[%c0_179, %c0_180] : memref<1x32xf32, #tpu.memory_space<vmem>>, vector<1x32xf32>
    %c0_181 = arith.constant 0 : index
    %c0_182 = arith.constant 0 : index
    %387 = vector.load %arg16[%c0_181, %c0_182] : memref<1x32xf32, #tpu.memory_space<vmem>>, vector<1x32xf32>
    %cst_183 = arith.constant dense<0.000000e+00> : vector<2xf32>
    %388 = vector.multi_reduction <add>, %385, %cst_183 [1] : vector<2x32xf32> to vector<2xf32>
    %389 = vector.shape_cast %388 : vector<2xf32> to vector<2x1xf32>
    %cst_184 = arith.constant 3.200000e+01 : f32
    %390 = vector.broadcast %cst_184 : f32 to vector<2x1xf32>
    %391 = arith.divf %389, %390 : vector<2x1xf32>
    %392 = vector.broadcast %391 : vector<2x1xf32> to vector<2x32xf32>
    %393 = arith.subf %385, %392 : vector<2x32xf32>
    %394 = arith.mulf %393, %393 : vector<2x32xf32>
    %cst_185 = arith.constant dense<0.000000e+00> : vector<2xf32>
    %395 = vector.multi_reduction <add>, %394, %cst_185 [1] : vector<2x32xf32> to vector<2xf32>
    %396 = vector.shape_cast %395 : vector<2xf32> to vector<2x1xf32>
    %cst_186 = arith.constant 3.200000e+01 : f32
    %397 = vector.broadcast %cst_186 : f32 to vector<2x1xf32>
    %398 = arith.divf %396, %397 : vector<2x1xf32>
    %399 = vector.broadcast %391 : vector<2x1xf32> to vector<2x32xf32>
    %400 = arith.subf %385, %399 : vector<2x32xf32>
    %cst_187 = arith.constant 9.99999974E-6 : f32
    %401 = vector.broadcast %cst_187 : f32 to vector<2x1xf32>
    %402 = arith.addf %398, %401 : vector<2x1xf32>
    %403 = math.rsqrt %402 : vector<2x1xf32>
    %404 = vector.broadcast %403 : vector<2x1xf32> to vector<2x32xf32>
    %405 = arith.mulf %400, %404 : vector<2x32xf32>
    %406 = vector.broadcast %386 : vector<1x32xf32> to vector<2x32xf32>
    %407 = arith.mulf %405, %406 : vector<2x32xf32>
    %408 = vector.broadcast %387 : vector<1x32xf32> to vector<2x32xf32>
    %409 = arith.addf %407, %408 : vector<2x32xf32>
    %410 = arith.truncf %409 : vector<2x32xf32> to vector<2x32xbf16>
    %c0_188 = arith.constant 0 : index
    %c0_189 = arith.constant 0 : index
    %411 = vector.load %arg17[%c0_188, %c0_189] : memref<32x128xbf16, #tpu.memory_space<vmem>>, vector<32x128xbf16>
    %cst_190 = arith.constant dense<0.000000e+00> : vector<2x128xf32>
    %412 = tpu.matmul %410, %411, %cst_190 {dimension_numbers = #tpu.dot_dimension_numbers<[1], [0], [0], [1], [0, 0, 1, 1], [], []>} : vector<2x32xbf16>, vector<32x128xbf16>, vector<2x128xf32> -> vector<2x128xf32>
    %c0_191 = arith.constant 0 : index
    %c0_192 = arith.constant 0 : index
    %413 = vector.load %arg18[%c0_191, %c0_192] : memref<2x128xf32, #tpu.memory_space<vmem>>, vector<2x128xf32>
    tpu.vector_store %arg18[%c0_191, %c0_192], %412 {strides = array<i32>} : memref<2x128xf32, #tpu.memory_space<vmem>>, vector<2x128xf32>,
    return
  }
  func.func @transform_0(%arg0: i32) -> (i32, i32, i32) {
    %c0_i32 = arith.constant 0 : i32
    %c0_i32_0 = arith.constant 0 : i32
    %c0_i32_1 = arith.constant 0 : i32
    %c0_i32_2 = arith.constant 0 : i32
    return %c0_i32, %c0_i32_0, %c0_i32_1 : i32, i32, i32
  }
  func.func @transform_1(%arg0: i32) -> (i32, i32) {
    %c0_i32 = arith.constant 0 : i32
    %c0_i32_0 = arith.constant 0 : i32
    %c0_i32_1 = arith.constant 0 : i32
    return %c0_i32, %c0_i32_0 : i32, i32
  }
  func.func @transform_2(%arg0: i32) -> (i32, i32, i32) {
    %c0_i32 = arith.constant 0 : i32
    %c0_i32_0 = arith.constant 0 : i32
    %c0_i32_1 = arith.constant 0 : i32
    %c0_i32_2 = arith.constant 0 : i32
    return %c0_i32, %c0_i32_0, %c0_i32_1 : i32, i32, i32
  }
  func.func @transform_3(%arg0: i32) -> (i32, i32, i32) {
    %c0_i32 = arith.constant 0 : i32
    %c0_i32_0 = arith.constant 0 : i32
    %c0_i32_1 = arith.constant 0 : i32
    %c0_i32_2 = arith.constant 0 : i32
    return %c0_i32, %c0_i32_0, %c0_i32_1 : i32, i32, i32
  }
  func.func @transform_4(%arg0: i32) -> (i32, i32, i32) {
    %c0_i32 = arith.constant 0 : i32
    %c0_i32_0 = arith.constant 0 : i32
    %c0_i32_1 = arith.constant 0 : i32
    %c0_i32_2 = arith.constant 0 : i32
    return %c0_i32, %c0_i32_0, %c0_i32_1 : i32, i32, i32
  }
  func.func @transform_5(%arg0: i32) -> (i32, i32, i32) {
    %c0_i32 = arith.constant 0 : i32
    %c0_i32_0 = arith.constant 0 : i32
    %c0_i32_1 = arith.constant 0 : i32
    %c0_i32_2 = arith.constant 0 : i32
    return %c0_i32, %c0_i32_0, %c0_i32_1 : i32, i32, i32
  }
  func.func @transform_6(%arg0: i32) -> (i32, i32, i32) {
    %c0_i32 = arith.constant 0 : i32
    %c0_i32_0 = arith.constant 0 : i32
    %c0_i32_1 = arith.constant 0 : i32
    %c0_i32_2 = arith.constant 0 : i32
    return %c0_i32, %c0_i32_0, %c0_i32_1 : i32, i32, i32
  }
  func.func @transform_7(%arg0: i32) -> (i32, i32, i32) {
    %c0_i32 = arith.constant 0 : i32
    %c0_i32_0 = arith.constant 0 : i32
    %c0_i32_1 = arith.constant 0 : i32
    %c0_i32_2 = arith.constant 0 : i32
    return %c0_i32, %c0_i32_0, %c0_i32_1 : i32, i32, i32
  }
  func.func @transform_8(%arg0: i32) -> (i32, i32, i32) {
    %c0_i32 = arith.constant 0 : i32
    %c0_i32_0 = arith.constant 0 : i32
    %c0_i32_1 = arith.constant 0 : i32
    %c0_i32_2 = arith.constant 0 : i32
    return %c0_i32, %c0_i32_0, %c0_i32_1 : i32, i32, i32
  }
  func.func @transform_9(%arg0: i32) -> (i32, i32, i32) {
    %c0_i32 = arith.constant 0 : i32
    %c0_i32_0 = arith.constant 0 : i32
    %c0_i32_1 = arith.constant 0 : i32
    %c0_i32_2 = arith.constant 0 : i32
    return %c0_i32, %c0_i32_0, %c0_i32_1 : i32, i32, i32
  }
  func.func @transform_10(%arg0: i32) -> (i32, i32, i32) {
    %c0_i32 = arith.constant 0 : i32
    %c0_i32_0 = arith.constant 0 : i32
    %c0_i32_1 = arith.constant 0 : i32
    %c0_i32_2 = arith.constant 0 : i32
    return %c0_i32, %c0_i32_0, %c0_i32_1 : i32, i32, i32
  }
  func.func @transform_11(%arg0: i32) -> (i32, i32, i32) {
    %c0_i32 = arith.constant 0 : i32
    %c0_i32_0 = arith.constant 0 : i32
    %c0_i32_1 = arith.constant 0 : i32
    %c0_i32_2 = arith.constant 0 : i32
    return %c0_i32, %c0_i32_0, %c0_i32_1 : i32, i32, i32
  }
  func.func @transform_12(%arg0: i32) -> (i32, i32, i32) {
    %c0_i32 = arith.constant 0 : i32
    %c0_i32_0 = arith.constant 0 : i32
    %c0_i32_1 = arith.constant 0 : i32
    %c0_i32_2 = arith.constant 0 : i32
    return %c0_i32, %c0_i32_0, %c0_i32_1 : i32, i32, i32
  }
  func.func @transform_13(%arg0: i32) -> (i32, i32, i32) {
    %c0_i32 = arith.constant 0 : i32
    %c0_i32_0 = arith.constant 0 : i32
    %c0_i32_1 = arith.constant 0 : i32
    %c0_i32_2 = arith.constant 0 : i32
    return %c0_i32, %c0_i32_0, %c0_i32_1 : i32, i32, i32
  }
  func.func @transform_14(%arg0: i32) -> (i32, i32) {
    %c0_i32 = arith.constant 0 : i32
    %c0_i32_0 = arith.constant 0 : i32
    %c0_i32_1 = arith.constant 0 : i32
    return %c0_i32, %c0_i32_0 : i32, i32
  }
  func.func @transform_15(%arg0: i32) -> (i32, i32) {
    %c0_i32 = arith.constant 0 : i32
    %c0_i32_0 = arith.constant 0 : i32
    %c0_i32_1 = arith.constant 0 : i32
    return %c0_i32, %c0_i32_0 : i32, i32
  }
  func.func @transform_16(%arg0: i32) -> (i32, i32) {
    %c0_i32 = arith.constant 0 : i32
    %c0_i32_0 = arith.constant 0 : i32
    %c0_i32_1 = arith.constant 0 : i32
    return %c0_i32, %c0_i32_0 : i32, i32
  }
  func.func @transform_17(%arg0: i32) -> (i32, i32) {
    %c0_i32 = arith.constant 0 : i32
    %c0_i32_0 = arith.constant 0 : i32
    %c0_i32_1 = arith.constant 0 : i32
    return %c0_i32, %c0_i32_0 : i32, i32
  }
}

</mosaic_0001>

<llo_original>
// kernel: gpt_forward_pallas.1
$region0: #{gpt_forward_pallas.1}
  #allocation0 [shape = 'u32[]', space=smem, size = 0x4, offset = 0x4, fixed_abs, tag = 'smem constant byte address 0x4 - core index']
  #allocation1 [shape = 'u32[72,128]{1,0:T(1,128)}', space=vmem, size = 0x9000, scoped, tag = 'internal scratch']
  #allocation2 [shape = 'f32[2,8,32]{2,1,0:T(8,128)}', space=vmem, size = 0x2000, scoped, tag = 'scratch operand']
  %s0 = inlined_call_operand.vmem [shape: f32[2,8,32], index: 0, kind: input, shape index: {}]
  %s1 = inlined_call_operand.vmem [shape: f32[8,32], index: 1, kind: input, shape index: {}]
  %s2 = inlined_call_operand.vmem [shape: f32[2,1,32], index: 2, kind: input, shape index: {}]
  %s3 = inlined_call_operand.vmem [shape: f32[2,1,32], index: 3, kind: input, shape index: {}]
  %s4 = inlined_call_operand.vmem [shape: bf16[2,32,96], index: 4, kind: input, shape index: {}]
  %s5 = inlined_call_operand.vmem [shape: f32[2,1,96], index: 5, kind: input, shape index: {}]
  %s6 = inlined_call_operand.vmem [shape: bf16[2,32,32], index: 6, kind: input, shape index: {}]
  %s7 = inlined_call_operand.vmem [shape: f32[2,1,32], index: 7, kind: input, shape index: {}]
  %s8 = inlined_call_operand.vmem [shape: f32[2,1,32], index: 8, kind: input, shape index: {}]
  %s9 = inlined_call_operand.vmem [shape: f32[2,1,32], index: 9, kind: input, shape index: {}]
  %s10 = inlined_call_operand.vmem [shape: bf16[2,32,128], index: 10, kind: input, shape index: {}]
  %s11 = inlined_call_operand.vmem [shape: f32[2,1,128], index: 11, kind: input, shape index: {}]
  %s12 = inlined_call_operand.vmem [shape: bf16[2,128,32], index: 12, kind: input, shape index: {}]
  %s13 = inlined_call_operand.vmem [shape: f32[2,1,32], index: 13, kind: input, shape index: {}]
  %s14 = inlined_call_operand.vmem [shape: f32[1,32], index: 14, kind: input, shape index: {}]
  %s15 = inlined_call_operand.vmem [shape: f32[1,32], index: 15, kind: input, shape index: {}]
  %s16 = inlined_call_operand.vmem [shape: bf16[32,128], index: 16, kind: input, shape index: {}]
  %s17 = inlined_call_operand.hbm [shape: f32[2,128], index: 17, kind: output, shape index: {}]
  %s18 = sld [smem:[#allocation0]]
  $region78: #{gpt_forward_pallas.1} parent=0
    _
  %s20 = ssub.s32 1, %s18
  %s21 = scalar_select 0, %s20, %s18
  $region1: #{gpt_forward_pallas.1} parent=0
    #allocation3 [shape = 'u8[1024]{0}', space=vmem, size = 0x400, scoped, tag = 'output window, operand 0, single buffered']
    #allocation4 [shape = 's32[1]{0}', space=sflag, size = 0x4, scoped, tag = 'scoped memory for gpt_forward_pallas.1']
    %22 = vsyncpa [#allocation4], 0
    // Predicated region
    $region2: #{gpt_forward_pallas.1} parent=1 // pred_check
      _
    $region3: #{gpt_forward_pallas.1} parent=1 // pred_check_branch
      %24 = sbr.rel (0) target = $region5
    $region4: #{gpt_forward_pallas.1} parent=1 // pred_region
      _
    $region5: #{gpt_forward_pallas.1} parent=1 // pred_fallthru
      _
    // Predicated region
    $region6: #{gpt_forward_pallas.1} parent=1 // pred_check
      _
    $region7: #{gpt_forward_pallas.1} parent=1 // pred_check_branch
      %26 = sbr.rel (0) target = $region9
    $region8: #{gpt_forward_pallas.1} parent=1 // pred_region
      _
    $region9: #{gpt_forward_pallas.1} parent=1 // pred_fallthru
      _
    // Predicated region
    $region10: #{gpt_forward_pallas.1} parent=1 // pred_check
      _
    $region11: #{gpt_forward_pallas.1} parent=1 // pred_check_branch
      %28 = sbr.rel (0) target = $region13
    $region12: #{gpt_forward_pallas.1} parent=1 // pred_region
      _
    $region13: #{gpt_forward_pallas.1} parent=1 // pred_fallthru
      _
    // Predicated region
    $region14: #{gpt_forward_pallas.1} parent=1 // pred_check
      _
    $region15: #{gpt_forward_pallas.1} parent=1 // pred_check_branch
      %30 = sbr.rel (0) target = $region17
    $region16: #{gpt_forward_pallas.1} parent=1 // pred_region
      _
    $region17: #{gpt_forward_pallas.1} parent=1 // pred_fallthru
      _
    // Predicated region
    $region18: #{gpt_forward_pallas.1} parent=1 // pred_check
      _
    $region19: #{gpt_forward_pallas.1} parent=1 // pred_check_branch
      %32 = sbr.rel (0) target = $region21
    $region20: #{gpt_forward_pallas.1} parent=1 // pred_region
      _
    $region21: #{gpt_forward_pallas.1} parent=1 // pred_fallthru
      _
    // Predicated region
    $region22: #{gpt_forward_pallas.1} parent=1 // pred_check
      _
    $region23: #{gpt_forward_pallas.1} parent=1 // pred_check_branch
      %34 = sbr.rel (0) target = $region25
    $region24: #{gpt_forward_pallas.1} parent=1 // pred_region
      _
    $region25: #{gpt_forward_pallas.1} parent=1 // pred_fallthru
      _
    // Predicated region
    $region26: #{gpt_forward_pallas.1} parent=1 // pred_check
      _
    $region27: #{gpt_forward_pallas.1} parent=1 // pred_check_branch
      %36 = sbr.rel (0) target = $region29
    $region28: #{gpt_forward_pallas.1} parent=1 // pred_region
      _
    $region29: #{gpt_forward_pallas.1} parent=1 // pred_fallthru
      _
    // Predicated region
    $region30: #{gpt_forward_pallas.1} parent=1 // pred_check
      _
    $region31: #{gpt_forward_pallas.1} parent=1 // pred_check_branch
      %38 = sbr.rel (0) target = $region33
    $region32: #{gpt_forward_pallas.1} parent=1 // pred_region
      _
    $region33: #{gpt_forward_pallas.1} parent=1 // pred_fallthru
      _
    // Predicated region
    $region34: #{gpt_forward_pallas.1} parent=1 // pred_check
      _
    $region35: #{gpt_forward_pallas.1} parent=1 // pred_check_branch
      %40 = sbr.rel (0) target = $region37
    $region36: #{gpt_forward_pallas.1} parent=1 // pred_region
      _
    $region37: #{gpt_forward_pallas.1} parent=1 // pred_fallthru
      _
    // Predicated region
    $region38: #{gpt_forward_pallas.1} parent=1 // pred_check
      _
    $region39: #{gpt_forward_pallas.1} parent=1 // pred_check_branch
      %42 = sbr.rel (0) target = $region41
    $region40: #{gpt_forward_pallas.1} parent=1 // pred_region
      _
    $region41: #{gpt_forward_pallas.1} parent=1 // pred_fallthru
      _
    // Predicated region
    $region42: #{gpt_forward_pallas.1} parent=1 // pred_check
      _
    $region43: #{gpt_forward_pallas.1} parent=1 // pred_check_branch
      %44 = sbr.rel (0) target = $region45
    $region44: #{gpt_forward_pallas.1} parent=1 // pred_region
      _
    $region45: #{gpt_forward_pallas.1} parent=1 // pred_fallthru
      _
    // Predicated region
    $region46: #{gpt_forward_pallas.1} parent=1 // pred_check
      _
    $region47: #{gpt_forward_pallas.1} parent=1 // pred_check_branch
      %46 = sbr.rel (0) target = $region49
    $region48: #{gpt_forward_pallas.1} parent=1 // pred_region
      _
    $region49: #{gpt_forward_pallas.1} parent=1 // pred_fallthru
      _
    // Predicated region
    $region50: #{gpt_forward_pallas.1} parent=1 // pred_check
      _
    $region51: #{gpt_forward_pallas.1} parent=1 // pred_check_branch
      %48 = sbr.rel (0) target = $region53
    $region52: #{gpt_forward_pallas.1} parent=1 // pred_region
      _
    $region53: #{gpt_forward_pallas.1} parent=1 // pred_fallthru
      _
    // Predicated region
    $region54: #{gpt_forward_pallas.1} parent=1 // pred_check
      _
    $region55: #{gpt_forward_pallas.1} parent=1 // pred_check_branch
      %50 = sbr.rel (0) target = $region57
    $region56: #{gpt_forward_pallas.1} parent=1 // pred_region
      _
    $region57: #{gpt_forward_pallas.1} parent=1 // pred_fallthru
      _
    // Predicated region
    $region58: #{gpt_forward_pallas.1} parent=1 // pred_check
      _
    $region59: #{gpt_forward_pallas.1} parent=1 // pred_check_branch
      %52 = sbr.rel (0) target = $region61
    $region60: #{gpt_forward_pallas.1} parent=1 // pred_region
      _
    $region61: #{gpt_forward_pallas.1} parent=1 // pred_fallthru
      _
    // Predicated region
    $region62: #{gpt_forward_pallas.1} parent=1 // pred_check
      _
    $region63: #{gpt_forward_pallas.1} parent=1 // pred_check_branch
      %54 = sbr.rel (0) target = $region65
    $region64: #{gpt_forward_pallas.1} parent=1 // pred_region
      _
    $region65: #{gpt_forward_pallas.1} parent=1 // pred_fallthru
      _
    // Predicated region
    $region66: #{gpt_forward_pallas.1} parent=1 // pred_check
      _
    $region67: #{gpt_forward_pallas.1} parent=1 // pred_check_branch
      %56 = sbr.rel (0) target = $region69
    $region68: #{gpt_forward_pallas.1} parent=1 // pred_region
      _
    $region69: #{gpt_forward_pallas.1} parent=1 // pred_fallthru
      _
    %v58 = vld [vmem:[%s0] sm:$0xff]
    %v59 = vld [vmem:[%s0 + $0x8] sm:$0xff]
    %v60 = vld [vmem:[%s1] sm:$0xff]
    %v61 = vadd.f32 %v58, %v60
    %v62 = vadd.f32 %v59, %v60
    %v63 = vlaneseq
    %v64 = vshrl.u32 %v63, 7
    %v65 = vlaneseq
    %v66 = vand.u32 %v65, 127
    %vm67 = vcmp.ge.s32.totalorder %v64, %v66
    %v68 = vsel %vm67, 0.0, -inf
    %v69 = vld [vmem:[%s2] sm:$0x1]
    %v70 = vld [vmem:[%s3] sm:$0x1]
    %vm71 = vcmask 261120
    %v72 = vsel %vm71, %v61, 0.0
    %73 = vadd.xlane.f32.xlu0 %v72
    %v74 = vpop.xlane.xlu0 %73
    %v75 = vsel %vm71, %v62, 0.0
    %76 = vadd.xlane.f32.xlu0 %v75
    %v77 = vpop.xlane.xlu0 %76
    %v78 = vrcp.pop 32.0
    %v79 = vmul.f32 32.0, %v78
    %v80 = vsub.f32 1.0, %v79
    %v81 = vmul.f32 %v78, %v80
    %v82 = vadd.f32 %v78, %v81
    %vm83 = vweird.f32 %v78
    %v84 = vsel %vm83, %v78, %v82
    %v85 = vmul.f32 %v74, %v84
    %v86 = vmul.f32 %v77, %v84
    %v87 = vsub.f32 %v61, %v85
    %v88 = vsub.f32 %v62, %v86
    %v89 = vmul.f32 %v87, %v87
    %v90 = vmul.f32 %v88, %v88
    %v91 = vsel %vm71, %v89, 0.0
    %92 = vadd.xlane.f32.xlu0 %v91
    %v93 = vpop.xlane.xlu0 %92
    %v94 = vsel %vm71, %v90, 0.0
    %95 = vadd.xlane.f32.xlu0 %v94
    %v96 = vpop.xlane.xlu0 %95
    %v97 = vmul.f32 %v93, %v84
    %v98 = vmul.f32 %v96, %v84
    %v99 = vadd.f32 %v97, 1e-05
    %v100 = vadd.f32 %v98, 1e-05
    %v101 = vrsqrt.pop %v99
    %v102 = vmul.f32 %v101, %v99
    %v103 = vmul.f32 %v102, %v101
    %v104 = vmul.f32 0.5, %v103
    %v105 = vsub.f32 1.5, %v104
    %v106 = vmul.f32 %v101, %v105
    %vm107 = vweird.f32 %v99
    %vm108 = vweird.f32 %v101
    %vm109 = vmor %vm107, %vm108
    %v110 = vsel %vm109, %v101, %v106
    %v111 = vrsqrt.pop %v100
    %v112 = vmul.f32 %v111, %v100
    %v113 = vmul.f32 %v112, %v111
    %v114 = vmul.f32 0.5, %v113
    %v115 = vsub.f32 1.5, %v114
    %v116 = vmul.f32 %v111, %v115
    %vm117 = vweird.f32 %v100
    %vm118 = vweird.f32 %v111
    %vm119 = vmor %vm117, %vm118
    %v120 = vsel %vm119, %v111, %v116
    %v121 = vmul.f32 %v87, %v110
    %v122 = vmul.f32 %v88, %v120
    %v124 = vperm.slane %v69, 0
    %v126 = vmul.f32 %v121, %v124
    %v127 = vmul.f32 %v122, %v124
    %v129 = vperm.slane %v70, 0
    %v131 = vadd.f32 %v126, %v129
    %v132 = vadd.f32 %v127, %v129
    %v133 = vpack.c.bf16 %v132, %v131
    %v134 = vld [vmem:[%s4] sm:$0xf]
    %v135 = vld [vmem:[%s4 + $0x4] sm:$0xf]
    %v136 = vld [vmem:[%s4 + $0x8] sm:$0xf]
    %v137 = vld [vmem:[%s4 + $0xc] sm:$0xf]
    %v138 = vld [vmem:[%s5] sm:$0x1]
    %v140 = vperm.slane %v138, 0
    %v146 = vunpack.c.l.b16 %v134
    %v147 = vunpack.c.l.b16 %v135
    %v148 = vunpack.c.l.b16 %v136
    %v149 = vunpack.c.l.b16 %v137
    %v150 = vpack.c.b16 %v147, %v146
    %v151 = vpack.c.b16 %v149, %v148
    %v155 = vsel %vm71, %v133, 0
    %157 = vmatpush.bf16.msra.mxu0 0
    %158 = vmatpush.bf16.msra.mxu0 0
    %159 = vmatpush.bf16.msra.mxu0 0
    %160 = vmatpush.bf16.msra.mxu0 0
    %161 = vmatpush.bf16.msra.mxu0 0
    %162 = vmatpush.bf16.msra.mxu0 0
    %163 = vmatpush.bf16.msra.mxu0 %v151
    %164 = vmatpush.bf16.msra.mxu0 %v150
    %165 = vmatmul.bf16.gmra.mxu0 %v155
    %v166 = vpop.f32.mrf.mxu0
    %v167 = vadd.f32 %v140, %v166
    %v168 = vpop.f32.mrf.mxu0
    %v169 = vadd.f32 %v140, %v168
    %170 = vdwg.mxu0
    %v171 = vmul.f32 %v167, 0.35355338
    %v172 = vmul.f32 %v169, 0.35355338
    %v173 = vpack.c.bf16 %v171, %v171
    %v174 = vpack.c.bf16 %v172, %v172
    %v175 = vpack.c.bf16 %v167, %v167
    %v176 = vpack.c.bf16 %v169, %v169
    %v178 = vunpack.c.l.b16 %v175
    %v179 = vpack.c.b16 %v178, %v178
    %180 = vrot.lane.b32.xlu0 %v179, 96
    %v181 = vpop.permute.xlu0 %180
    %vm182 = vcmask 64512
    %v184 = vsel %vm182, %v173, 0
    %v187 = vsel %vm182, %v181, 0
    %189 = vmatpush.bf16.xpose.msra.mxu0 0
    %190 = vmatpush.bf16.xpose.msra.mxu0 0
    %191 = vmatpush.bf16.xpose.msra.mxu0 0
    %192 = vmatpush.bf16.xpose.msra.mxu0 0
    %193 = vmatpush.bf16.xpose.msra.mxu0 0
    %194 = vmatpush.bf16.xpose.msra.mxu0 0
    %195 = vmatpush.bf16.xpose.msra.mxu0 0
    %196 = vmatpush.bf16.xpose.msra.mxu0 %v187
    %197 = vmatmul.bf16.gmra.mxu0 %v184
    %v198 = vpop.f32.mrf.mxu0
    %v199 = vadd.f32 %v68, %v198
    %v200 = vpop.f32.mrf.mxu0
    %201 = vdwg.mxu0
    %v203 = vunpack.c.l.b16 %v176
    %v204 = vpack.c.b16 %v203, %v203
    %205 = vrot.lane.b32.xlu0 %v204, 96
    %v206 = vpop.permute.xlu0 %205
    %v208 = vsel %vm182, %v174, 0
    %v211 = vsel %vm182, %v206, 0
    %213 = vmatpush.bf16.xpose.msra.mxu0 0
    %214 = vmatpush.bf16.xpose.msra.mxu0 0
    %215 = vmatpush.bf16.xpose.msra.mxu0 0
    %216 = vmatpush.bf16.xpose.msra.mxu0 0
    %217 = vmatpush.bf16.xpose.msra.mxu0 0
    %218 = vmatpush.bf16.xpose.msra.mxu0 0
    %219 = vmatpush.bf16.xpose.msra.mxu0 0
    %220 = vmatpush.bf16.xpose.msra.mxu0 %v211
    %221 = vmatmul.bf16.gmra.mxu0 %v208
    %v222 = vpop.f32.mrf.mxu0
    %v223 = vadd.f32 %v68, %v222
    %v224 = vpop.f32.mrf.mxu0
    %225 = vdwg.mxu0
    %v226 = vsel %vm182, %v199, -inf
    %227 = vmax.xlane.f32.xlu0 %v226
    %v228 = vpop.xlane.xlu0 %227
    %v229 = vsel %vm182, %v223, -inf
    %230 = vmax.xlane.f32.xlu0 %v229
    %v231 = vpop.xlane.xlu0 %230
    %v232 = vsub.f32 %v199, %v228
    %v233 = vsub.f32 %v223, %v231
    %v234 = vmul.f32 %v232, 1.442695
    %v235 = vpow.pop %v234
    %v236 = vmul.f32 %v233, 1.442695
    %v237 = vpow.pop %v236
    %v238 = vsel %vm182, %v235, 0.0
    %239 = vadd.xlane.f32.xlu0 %v238
    %v240 = vpop.xlane.xlu0 %239
    %v241 = vsel %vm182, %v237, 0.0
    %242 = vadd.xlane.f32.xlu0 %v241
    %v243 = vpop.xlane.xlu0 %242
    %v244 = vrcp.pop %v240
    %v245 = vmul.f32 %v240, %v244
    %v246 = vsub.f32 1.0, %v245
    %v247 = vmul.f32 %v244, %v246
    %v248 = vadd.f32 %v244, %v247
    %vm249 = vweird.f32 %v240
    %vm250 = vweird.f32 %v244
    %vm251 = vmor %vm249, %vm250
    %v252 = vsel %vm251, %v244, %v248
    %v253 = vand.u32 2147483647, %v240
    %vm254 = vcmp.eq.f32.partialorder %v253, 8.507059e+37
    %v255 = vand.u32 %v240, 2147483648
    %v256 = vor.u32 1.1754944e-38, %v255
    %v257 = vsel %vm254, %v256, %v252
    %v258 = vmul.f32 %v235, %v257
    %v259 = vrcp.pop %v243
    %v260 = vmul.f32 %v243, %v259
    %v261 = vsub.f32 1.0, %v260
    %v262 = vmul.f32 %v259, %v261
    %v263 = vadd.f32 %v259, %v262
    %vm264 = vweird.f32 %v243
    %vm265 = vweird.f32 %v259
    %vm266 = vmor %vm264, %vm265
    %v267 = vsel %vm266, %v259, %v263
    %v268 = vand.u32 2147483647, %v243
    %vm269 = vcmp.eq.f32.partialorder %v268, 8.507059e+37
    %v270 = vand.u32 %v243, 2147483648
    %v271 = vor.u32 1.1754944e-38, %v270
    %v272 = vsel %vm269, %v271, %v267
    %v273 = vmul.f32 %v237, %v272
    %v274 = vpack.c.bf16 %v258, %v258
    %v275 = vpack.c.bf16 %v273, %v273
    %276 = vrot.lane.b32.xlu0 %v179, 64
    %v277 = vpop.permute.xlu0 %276
    %v279 = vsel %vm182, %v274, 0
    %vm281 = vcmask 1043456
    %v283 = vsel %vm281, %v277, 0
    %285 = vmatpush.bf16.msra.mxu0 0
    %286 = vmatpush.bf16.msra.mxu0 0
    %287 = vmatpush.bf16.msra.mxu0 0
    %288 = vmatpush.bf16.msra.mxu0 0
    %289 = vmatpush.bf16.msra.mxu0 0
    %290 = vmatpush.bf16.msra.mxu0 0
    %291 = vmatpush.bf16.msra.mxu0 0
    %292 = vmatpush.bf16.msra.mxu0 %v283
    %293 = vmatmul.bf16.gmra.mxu0 %v279
    %v294 = vpop.f32.mrf.mxu0
    %v295 = vadd.f32 0.0, %v294
    %v296 = vpop.f32.mrf.mxu0
    %297 = vdwg.mxu0
    %298 = vrot.lane.b32.xlu0 %v204, 64
    %v299 = vpop.permute.xlu0 %298
    %v301 = vsel %vm182, %v275, 0
    %v304 = vsel %vm281, %v299, 0
    %306 = vmatpush.bf16.msra.mxu0 0
    %307 = vmatpush.bf16.msra.mxu0 0
    %308 = vmatpush.bf16.msra.mxu0 0
    %309 = vmatpush.bf16.msra.mxu0 0
    %310 = vmatpush.bf16.msra.mxu0 0
    %311 = vmatpush.bf16.msra.mxu0 0
    %312 = vmatpush.bf16.msra.mxu0 0
    %313 = vmatpush.bf16.msra.mxu0 %v304
    %314 = vmatmul.bf16.gmra.mxu0 %v301
    %v315 = vpop.f32.mrf.mxu0
    %v316 = vadd.f32 0.0, %v315
    %v317 = vpop.f32.mrf.mxu0
    %318 = vdwg.mxu0
    %319 = vst.msk [vmem:[#allocation2] sm:$0xff] %vm182, %v295
    %320 = vst.msk [vmem:[#allocation2 + $0x8] sm:$0xff] %vm182, %v316
    %v322 = vunpack.c.l.b16 %v173
    %v323 = vpack.c.b16 %v322, %v322
    %324 = vrot.lane.b32.xlu0 %v323, 120
    %v325 = vpop.permute.xlu0 %324
    %326 = vrot.lane.b32.xlu0 %v179, 88
    %v327 = vpop.permute.xlu0 %326
    %v329 = vsel %vm182, %v325, 0
    %v332 = vsel %vm182, %v327, 0
    %334 = vmatpush.bf16.xpose.msra.mxu0 0
    %335 = vmatpush.bf16.xpose.msra.mxu0 0
    %336 = vmatpush.bf16.xpose.msra.mxu0 0
    %337 = vmatpush.bf16.xpose.msra.mxu0 0
    %338 = vmatpush.bf16.xpose.msra.mxu0 0
    %339 = vmatpush.bf16.xpose.msra.mxu0 0
    %340 = vmatpush.bf16.xpose.msra.mxu0 0
    %341 = vmatpush.bf16.xpose.msra.mxu0 %v332
    %342 = vmatmul.bf16.gmra.mxu0 %v329
    %v343 = vpop.f32.mrf.mxu0
    %v344 = vadd.f32 %v68, %v343
    %v345 = vpop.f32.mrf.mxu0
    %346 = vdwg.mxu0
    %v348 = vunpack.c.l.b16 %v174
    %v349 = vpack.c.b16 %v348, %v348
    %350 = vrot.lane.b32.xlu0 %v349, 120
    %v351 = vpop.permute.xlu0 %350
    %352 = vrot.lane.b32.xlu0 %v204, 88
    %v353 = vpop.permute.xlu0 %352
    %v355 = vsel %vm182, %v351, 0
    %v358 = vsel %vm182, %v353, 0
    %360 = vmatpush.bf16.xpose.msra.mxu0 0
    %361 = vmatpush.bf16.xpose.msra.mxu0 0
    %362 = vmatpush.bf16.xpose.msra.mxu0 0
    %363 = vmatpush.bf16.xpose.msra.mxu0 0
    %364 = vmatpush.bf16.xpose.msra.mxu0 0
    %365 = vmatpush.bf16.xpose.msra.mxu0 0
    %366 = vmatpush.bf16.xpose.msra.mxu0 0
    %367 = vmatpush.bf16.xpose.msra.mxu0 %v358
    %368 = vmatmul.bf16.gmra.mxu0 %v355
    %v369 = vpop.f32.mrf.mxu0
    %v370 = vadd.f32 %v68, %v369
    %v371 = vpop.f32.mrf.mxu0
    %372 = vdwg.mxu0
    %v373 = vsel %vm182, %v344, -inf
    %374 = vmax.xlane.f32.xlu0 %v373
    %v375 = vpop.xlane.xlu0 %374
    %v376 = vsel %vm182, %v370, -inf
    %377 = vmax.xlane.f32.xlu0 %v376
    %v378 = vpop.xlane.xlu0 %377
    %v379 = vsub.f32 %v344, %v375
    %v380 = vsub.f32 %v370, %v378
    %v381 = vmul.f32 %v379, 1.442695
    %v382 = vpow.pop %v381
    %v383 = vmul.f32 %v380, 1.442695
    %v384 = vpow.pop %v383
    %v385 = vsel %vm182, %v382, 0.0
    %386 = vadd.xlane.f32.xlu0 %v385
    %v387 = vpop.xlane.xlu0 %386
    %v388 = vsel %vm182, %v384, 0.0
    %389 = vadd.xlane.f32.xlu0 %v388
    %v390 = vpop.xlane.xlu0 %389
    %v391 = vrcp.pop %v387
    %v392 = vmul.f32 %v387, %v391
    %v393 = vsub.f32 1.0, %v392
    %v394 = vmul.f32 %v391, %v393
    %v395 = vadd.f32 %v391, %v394
    %vm396 = vweird.f32 %v387
    %vm397 = vweird.f32 %v391
    %vm398 = vmor %vm396, %vm397
    %v399 = vsel %vm398, %v391, %v395
    %v400 = vand.u32 2147483647, %v387
    %vm401 = vcmp.eq.f32.partialorder %v400, 8.507059e+37
    %v402 = vand.u32 %v387, 2147483648
    %v403 = vor.u32 1.1754944e-38, %v402
    %v404 = vsel %vm401, %v403, %v399
    %v405 = vmul.f32 %v382, %v404
    %v406 = vrcp.pop %v390
    %v407 = vmul.f32 %v390, %v406
    %v408 = vsub.f32 1.0, %v407
    %v409 = vmul.f32 %v406, %v408
    %v410 = vadd.f32 %v406, %v409
    %vm411 = vweird.f32 %v390
    %vm412 = vweird.f32 %v406
    %vm413 = vmor %vm411, %vm412
    %v414 = vsel %vm413, %v406, %v410
    %v415 = vand.u32 2147483647, %v390
    %vm416 = vcmp.eq.f32.partialorder %v415, 8.507059e+37
    %v417 = vand.u32 %v390, 2147483648
    %v418 = vor.u32 1.1754944e-38, %v417
    %v419 = vsel %vm416, %v418, %v414
    %v420 = vmul.f32 %v384, %v419
    %v421 = vpack.c.bf16 %v405, %v405
    %v422 = vpack.c.bf16 %v420, %v420
    %423 = vrot.lane.b32.xlu0 %v179, 56
    %v424 = vpop.permute.xlu0 %423
    %v426 = vsel %vm182, %v421, 0
    %v429 = vsel %vm281, %v424, 0
    %431 = vmatpush.bf16.msra.mxu0 0
    %432 = vmatpush.bf16.msra.mxu0 0
    %433 = vmatpush.bf16.msra.mxu0 0
    %434 = vmatpush.bf16.msra.mxu0 0
    %435 = vmatpush.bf16.msra.mxu0 0
    %436 = vmatpush.bf16.msra.mxu0 0
    %437 = vmatpush.bf16.msra.mxu0 0
    %438 = vmatpush.bf16.msra.mxu0 %v429
    %439 = vmatmul.bf16.gmra.mxu0 %v426
    %v440 = vpop.f32.mrf.mxu0
    %v441 = vadd.f32 0.0, %v440
    %v442 = vpop.f32.mrf.mxu0
    %443 = vdwg.mxu0
    %444 = vrot.lane.b32.xlu0 %v204, 56
    %v445 = vpop.permute.xlu0 %444
    %v447 = vsel %vm182, %v422, 0
    %v450 = vsel %vm281, %v445, 0
    %452 = vmatpush.bf16.msra.mxu0 0
    %453 = vmatpush.bf16.msra.mxu0 0
    %454 = vmatpush.bf16.msra.mxu0 0
    %455 = vmatpush.bf16.msra.mxu0 0
    %456 = vmatpush.bf16.msra.mxu0 0
    %457 = vmatpush.bf16.msra.mxu0 0
    %458 = vmatpush.bf16.msra.mxu0 0
    %459 = vmatpush.bf16.msra.mxu0 %v450
    %460 = vmatmul.bf16.gmra.mxu0 %v447
    %v461 = vpop.f32.mrf.mxu0
    %v462 = vadd.f32 0.0, %v461
    %v463 = vpop.f32.mrf.mxu0
    %464 = vdwg.mxu0
    %467 = vrot.lane.b32.xlu0 %v441, 8
    %v468 = vpop.permute.xlu0 %467
    %469 = vrot.lane.b32.xlu0 %v462, 8
    %v470 = vpop.permute.xlu0 %469
    %vm473 = vcmask 130112
    %474 = vst.msk [vmem:[#allocation2] sm:$0xff] %vm473, %v468
    %475 = vst.msk [vmem:[#allocation2 + $0x8] sm:$0xff] %vm473, %v470
    %476 = vrot.lane.b32.xlu0 %v323, 112
    %v477 = vpop.permute.xlu0 %476
    %478 = vrot.lane.b32.xlu0 %v179, 80
    %v479 = vpop.permute.xlu0 %478
    %v481 = vsel %vm182, %v477, 0
    %v484 = vsel %vm182, %v479, 0
    %486 = vmatpush.bf16.xpose.msra.mxu0 0
    %487 = vmatpush.bf16.xpose.msra.mxu0 0
    %488 = vmatpush.bf16.xpose.msra.mxu0 0
    %489 = vmatpush.bf16.xpose.msra.mxu0 0
    %490 = vmatpush.bf16.xpose.msra.mxu0 0
    %491 = vmatpush.bf16.xpose.msra.mxu0 0
    %492 = vmatpush.bf16.xpose.msra.mxu0 0
    %493 = vmatpush.bf16.xpose.msra.mxu0 %v484
    %494 = vmatmul.bf16.gmra.mxu0 %v481
    %v495 = vpop.f32.mrf.mxu0
    %v496 = vadd.f32 %v68, %v495
    %v497 = vpop.f32.mrf.mxu0
    %498 = vdwg.mxu0
    %499 = vrot.lane.b32.xlu0 %v349, 112
    %v500 = vpop.permute.xlu0 %499
    %501 = vrot.lane.b32.xlu0 %v204, 80
    %v502 = vpop.permute.xlu0 %501
    %v504 = vsel %vm182, %v500, 0
    %v507 = vsel %vm182, %v502, 0
    %509 = vmatpush.bf16.xpose.msra.mxu0 0
    %510 = vmatpush.bf16.xpose.msra.mxu0 0
    %511 = vmatpush.bf16.xpose.msra.mxu0 0
    %512 = vmatpush.bf16.xpose.msra.mxu0 0
    %513 = vmatpush.bf16.xpose.msra.mxu0 0
    %514 = vmatpush.bf16.xpose.msra.mxu0 0
    %515 = vmatpush.bf16.xpose.msra.mxu0 0
    %516 = vmatpush.bf16.xpose.msra.mxu0 %v507
    %517 = vmatmul.bf16.gmra.mxu0 %v504
    %v518 = vpop.f32.mrf.mxu0
    %v519 = vadd.f32 %v68, %v518
    %v520 = vpop.f32.mrf.mxu0
    %521 = vdwg.mxu0
    %v522 = vsel %vm182, %v496, -inf
    %523 = vmax.xlane.f32.xlu0 %v522
    %v524 = vpop.xlane.xlu0 %523
    %v525 = vsel %vm182, %v519, -inf
    %526 = vmax.xlane.f32.xlu0 %v525
    %v527 = vpop.xlane.xlu0 %526
    %v528 = vsub.f32 %v496, %v524
    %v529 = vsub.f32 %v519, %v527
    %v530 = vmul.f32 %v528, 1.442695
    %v531 = vpow.pop %v530
    %v532 = vmul.f32 %v529, 1.442695
    %v533 = vpow.pop %v532
    %v534 = vsel %vm182, %v531, 0.0
    %535 = vadd.xlane.f32.xlu0 %v534
    %v536 = vpop.xlane.xlu0 %535
    %v537 = vsel %vm182, %v533, 0.0
    %538 = vadd.xlane.f32.xlu0 %v537
    %v539 = vpop.xlane.xlu0 %538
    %v540 = vrcp.pop %v536
    %v541 = vmul.f32 %v536, %v540
    %v542 = vsub.f32 1.0, %v541
    %v543 = vmul.f32 %v540, %v542
    %v544 = vadd.f32 %v540, %v543
    %vm545 = vweird.f32 %v536
    %vm546 = vweird.f32 %v540
    %vm547 = vmor %vm545, %vm546
    %v548 = vsel %vm547, %v540, %v544
    %v549 = vand.u32 2147483647, %v536
    %vm550 = vcmp.eq.f32.partialorder %v549, 8.507059e+37
    %v551 = vand.u32 %v536, 2147483648
    %v552 = vor.u32 1.1754944e-38, %v551
    %v553 = vsel %vm550, %v552, %v548
    %v554 = vmul.f32 %v531, %v553
    %v555 = vrcp.pop %v539
    %v556 = vmul.f32 %v539, %v555
    %v557 = vsub.f32 1.0, %v556
    %v558 = vmul.f32 %v555, %v557
    %v559 = vadd.f32 %v555, %v558
    %vm560 = vweird.f32 %v539
    %vm561 = vweird.f32 %v555
    %vm562 = vmor %vm560, %vm561
    %v563 = vsel %vm562, %v555, %v559
    %v564 = vand.u32 2147483647, %v539
    %vm565 = vcmp.eq.f32.partialorder %v564, 8.507059e+37
    %v566 = vand.u32 %v539, 2147483648
    %v567 = vor.u32 1.1754944e-38, %v566
    %v568 = vsel %vm565, %v567, %v563
    %v569 = vmul.f32 %v533, %v568
    %v570 = vpack.c.bf16 %v554, %v554
    %v571 = vpack.c.bf16 %v569, %v569
    %572 = vrot.lane.b32.xlu0 %v179, 48
    %v573 = vpop.permute.xlu0 %572
    %v575 = vsel %vm182, %v570, 0
    %v578 = vsel %vm281, %v573, 0
    %580 = vmatpush.bf16.msra.mxu0 0
    %581 = vmatpush.bf16.msra.mxu0 0
    %582 = vmatpush.bf16.msra.mxu0 0
    %583 = vmatpush.bf16.msra.mxu0 0
    %584 = vmatpush.bf16.msra.mxu0 0
    %585 = vmatpush.bf16.msra.mxu0 0
    %586 = vmatpush.bf16.msra.mxu0 0
    %587 = vmatpush.bf16.msra.mxu0 %v578
    %588 = vmatmul.bf16.gmra.mxu0 %v575
    %v589 = vpop.f32.mrf.mxu0
    %v590 = vadd.f32 0.0, %v589
    %v591 = vpop.f32.mrf.mxu0
    %592 = vdwg.mxu0
    %593 = vrot.lane.b32.xlu0 %v204, 48
    %v594 = vpop.permute.xlu0 %593
    %v596 = vsel %vm182, %v571, 0
    %v599 = vsel %vm281, %v594, 0
    %601 = vmatpush.bf16.msra.mxu0 0
    %602 = vmatpush.bf16.msra.mxu0 0
    %603 = vmatpush.bf16.msra.mxu0 0
    %604 = vmatpush.bf16.msra.mxu0 0
    %605 = vmatpush.bf16.msra.mxu0 0
    %606 = vmatpush.bf16.msra.mxu0 0
    %607 = vmatpush.bf16.msra.mxu0 0
    %608 = vmatpush.bf16.msra.mxu0 %v599
    %609 = vmatmul.bf16.gmra.mxu0 %v596
    %v610 = vpop.f32.mrf.mxu0
    %v611 = vadd.f32 0.0, %v610
    %v612 = vpop.f32.mrf.mxu0
    %613 = vdwg.mxu0
    %616 = vrot.lane.b32.xlu0 %v590, 16
    %v617 = vpop.permute.xlu0 %616
    %618 = vrot.lane.b32.xlu0 %v611, 16
    %v619 = vpop.permute.xlu0 %618
    %vm622 = vcmask 195712
    %623 = vst.msk [vmem:[#allocation2] sm:$0xff] %vm622, %v617
    %624 = vst.msk [vmem:[#allocation2 + $0x8] sm:$0xff] %vm622, %v619
    %625 = vrot.lane.b32.xlu0 %v323, 104
    %v626 = vpop.permute.xlu0 %625
    %627 = vrot.lane.b32.xlu0 %v179, 72
    %v628 = vpop.permute.xlu0 %627
    %v630 = vsel %vm182, %v626, 0
    %v633 = vsel %vm182, %v628, 0
    %635 = vmatpush.bf16.xpose.msra.mxu0 0
    %636 = vmatpush.bf16.xpose.msra.mxu0 0
    %637 = vmatpush.bf16.xpose.msra.mxu0 0
    %638 = vmatpush.bf16.xpose.msra.mxu0 0
    %639 = vmatpush.bf16.xpose.msra.mxu0 0
    %640 = vmatpush.bf16.xpose.msra.mxu0 0
    %641 = vmatpush.bf16.xpose.msra.mxu0 0
    %642 = vmatpush.bf16.xpose.msra.mxu0 %v633
    %643 = vmatmul.bf16.gmra.mxu0 %v630
    %v644 = vpop.f32.mrf.mxu0
    %v645 = vadd.f32 %v68, %v644
    %v646 = vpop.f32.mrf.mxu0
    %647 = vdwg.mxu0
    %648 = vrot.lane.b32.xlu0 %v349, 104
    %v649 = vpop.permute.xlu0 %648
    %650 = vrot.lane.b32.xlu0 %v204, 72
    %v651 = vpop.permute.xlu0 %650
    %v653 = vsel %vm182, %v649, 0
    %v656 = vsel %vm182, %v651, 0
    %658 = vmatpush.bf16.xpose.msra.mxu0 0
    %659 = vmatpush.bf16.xpose.msra.mxu0 0
    %660 = vmatpush.bf16.xpose.msra.mxu0 0
    %661 = vmatpush.bf16.xpose.msra.mxu0 0
    %662 = vmatpush.bf16.xpose.msra.mxu0 0
    %663 = vmatpush.bf16.xpose.msra.mxu0 0
    %664 = vmatpush.bf16.xpose.msra.mxu0 0
    %665 = vmatpush.bf16.xpose.msra.mxu0 %v656
    %666 = vmatmul.bf16.gmra.mxu0 %v653
    %v667 = vpop.f32.mrf.mxu0
    %v668 = vadd.f32 %v68, %v667
    %v669 = vpop.f32.mrf.mxu0
    %670 = vdwg.mxu0
    %v671 = vsel %vm182, %v645, -inf
    %672 = vmax.xlane.f32.xlu0 %v671
    %v673 = vpop.xlane.xlu0 %672
    %v674 = vsel %vm182, %v668, -inf
    %675 = vmax.xlane.f32.xlu0 %v674
    %v676 = vpop.xlane.xlu0 %675
    %v677 = vsub.f32 %v645, %v673
    %v678 = vsub.f32 %v668, %v676
    %v679 = vmul.f32 %v677, 1.442695
    %v680 = vpow.pop %v679
    %v681 = vmul.f32 %v678, 1.442695
    %v682 = vpow.pop %v681
    %v683 = vsel %vm182, %v680, 0.0
    %684 = vadd.xlane.f32.xlu0 %v683
    %v685 = vpop.xlane.xlu0 %684
    %v686 = vsel %vm182, %v682, 0.0
    %687 = vadd.xlane.f32.xlu0 %v686
    %v688 = vpop.xlane.xlu0 %687
    %v689 = vrcp.pop %v685
    %v690 = vmul.f32 %v685, %v689
    %v691 = vsub.f32 1.0, %v690
    %v692 = vmul.f32 %v689, %v691
    %v693 = vadd.f32 %v689, %v692
    %vm694 = vweird.f32 %v685
    %vm695 = vweird.f32 %v689
    %vm696 = vmor %vm694, %vm695
    %v697 = vsel %vm696, %v689, %v693
    %v698 = vand.u32 2147483647, %v685
    %vm699 = vcmp.eq.f32.partialorder %v698, 8.507059e+37
    %v700 = vand.u32 %v685, 2147483648
    %v701 = vor.u32 1.1754944e-38, %v700
    %v702 = vsel %vm699, %v701, %v697
    %v703 = vmul.f32 %v680, %v702
    %v704 = vrcp.pop %v688
    %v705 = vmul.f32 %v688, %v704
    %v706 = vsub.f32 1.0, %v705
    %v707 = vmul.f32 %v704, %v706
    %v708 = vadd.f32 %v704, %v707
    %vm709 = vweird.f32 %v688
    %vm710 = vweird.f32 %v704
    %vm711 = vmor %vm709, %vm710
    %v712 = vsel %vm711, %v704, %v708
    %v713 = vand.u32 2147483647, %v688
    %vm714 = vcmp.eq.f32.partialorder %v713, 8.507059e+37
    %v715 = vand.u32 %v688, 2147483648
    %v716 = vor.u32 1.1754944e-38, %v715
    %v717 = vsel %vm714, %v716, %v712
    %v718 = vmul.f32 %v682, %v717
    %v719 = vpack.c.bf16 %v703, %v703
    %v720 = vpack.c.bf16 %v718, %v718
    %721 = vrot.lane.b32.xlu0 %v179, 40
    %v722 = vpop.permute.xlu0 %721
    %v724 = vsel %vm182, %v719, 0
    %v727 = vsel %vm281, %v722, 0
    %729 = vmatpush.bf16.msra.mxu0 0
    %730 = vmatpush.bf16.msra.mxu0 0
    %731 = vmatpush.bf16.msra.mxu0 0
    %732 = vmatpush.bf16.msra.mxu0 0
    %733 = vmatpush.bf16.msra.mxu0 0
    %734 = vmatpush.bf16.msra.mxu0 0
    %735 = vmatpush.bf16.msra.mxu0 0
    %736 = vmatpush.bf16.msra.mxu0 %v727
    %737 = vmatmul.bf16.gmra.mxu0 %v724
    %v738 = vpop.f32.mrf.mxu0
    %v739 = vadd.f32 0.0, %v738
    %v740 = vpop.f32.mrf.mxu0
    %741 = vdwg.mxu0
    %742 = vrot.lane.b32.xlu0 %v204, 40
    %v743 = vpop.permute.xlu0 %742
    %v745 = vsel %vm182, %v720, 0
    %v748 = vsel %vm281, %v743, 0
    %750 = vmatpush.bf16.msra.mxu0 0
    %751 = vmatpush.bf16.msra.mxu0 0
    %752 = vmatpush.bf16.msra.mxu0 0
    %753 = vmatpush.bf16.msra.mxu0 0
    %754 = vmatpush.bf16.msra.mxu0 0
    %755 = vmatpush.bf16.msra.mxu0 0
    %756 = vmatpush.bf16.msra.mxu0 0
    %757 = vmatpush.bf16.msra.mxu0 %v748
    %758 = vmatmul.bf16.gmra.mxu0 %v745
    %v759 = vpop.f32.mrf.mxu0
    %v760 = vadd.f32 0.0, %v759
    %v761 = vpop.f32.mrf.mxu0
    %762 = vdwg.mxu0
    %765 = vrot.lane.b32.xlu0 %v739, 24
    %v766 = vpop.permute.xlu0 %765
    %767 = vrot.lane.b32.xlu0 %v760, 24
    %v768 = vpop.permute.xlu0 %767
    %vm771 = vcmask 261312
    %772 = vst.msk [vmem:[#allocation2] sm:$0xff] %vm771, %v766
    %773 = vst.msk [vmem:[#allocation2 + $0x8] sm:$0xff] %vm771, %v768
    %v774 = vld [vmem:[#allocation2] sm:$0xff]
    %v775 = vld [vmem:[#allocation2 + $0x8] sm:$0xff]
    %v776 = vpack.c.bf16 %v775, %v774
    %v777 = vld [vmem:[%s6] sm:$0xf]
    %v778 = vld [vmem:[%s6 + $0x4] sm:$0xf]
    %v779 = vld [vmem:[%s6 + $0x8] sm:$0xf]
    %v780 = vld [vmem:[%s6 + $0xc] sm:$0xf]
    %v781 = vld [vmem:[%s7] sm:$0x1]
    %v783 = vperm.slane %v781, 0
    %v789 = vunpack.c.l.b16 %v777
    %v790 = vunpack.c.l.b16 %v778
    %v791 = vunpack.c.l.b16 %v779
    %v792 = vunpack.c.l.b16 %v780
    %v793 = vpack.c.b16 %v790, %v789
    %v794 = vpack.c.b16 %v792, %v791
    %v798 = vsel %vm71, %v776, 0
    %800 = vmatpush.bf16.msra.mxu0 0
    %801 = vmatpush.bf16.msra.mxu0 0
    %802 = vmatpush.bf16.msra.mxu0 0
    %803 = vmatpush.bf16.msra.mxu0 0
    %804 = vmatpush.bf16.msra.mxu0 0
    %805 = vmatpush.bf16.msra.mxu0 0
    %806 = vmatpush.bf16.msra.mxu0 %v794
    %807 = vmatpush.bf16.msra.mxu0 %v793
    %808 = vmatmul.bf16.gmra.mxu0 %v798
    %v809 = vpop.f32.mrf.mxu0
    %v810 = vadd.f32 %v783, %v809
    %v811 = vpop.f32.mrf.mxu0
    %v812 = vadd.f32 %v783, %v811
    %813 = vdwg.mxu0
    %v814 = vadd.f32 %v61, %v810
    %v815 = vadd.f32 %v62, %v812
    %v816 = vld [vmem:[%s8] sm:$0x1]
    %v817 = vld [vmem:[%s9] sm:$0x1]
    %v818 = vsel %vm71, %v814, 0.0
    %819 = vadd.xlane.f32.xlu0 %v818
    %v820 = vpop.xlane.xlu0 %819
    %v821 = vsel %vm71, %v815, 0.0
    %822 = vadd.xlane.f32.xlu0 %v821
    %v823 = vpop.xlane.xlu0 %822
    %v824 = vmul.f32 %v820, %v84
    %v825 = vmul.f32 %v823, %v84
    %v826 = vsub.f32 %v814, %v824
    %v827 = vsub.f32 %v815, %v825
    %v828 = vmul.f32 %v826, %v826
    %v829 = vmul.f32 %v827, %v827
    %v830 = vsel %vm71, %v828, 0.0
    %831 = vadd.xlane.f32.xlu0 %v830
    %v832 = vpop.xlane.xlu0 %831
    %v833 = vsel %vm71, %v829, 0.0
    %834 = vadd.xlane.f32.xlu0 %v833
    %v835 = vpop.xlane.xlu0 %834
    %v836 = vmul.f32 %v832, %v84
    %v837 = vmul.f32 %v835, %v84
    %v838 = vadd.f32 %v836, 1e-05
    %v839 = vadd.f32 %v837, 1e-05
    %v840 = vrsqrt.pop %v838
    %v841 = vmul.f32 %v840, %v838
    %v842 = vmul.f32 %v841, %v840
    %v843 = vmul.f32 0.5, %v842
    %v844 = vsub.f32 1.5, %v843
    %v845 = vmul.f32 %v840, %v844
    %vm846 = vweird.f32 %v838
    %vm847 = vweird.f32 %v840
    %vm848 = vmor %vm846, %vm847
    %v849 = vsel %vm848, %v840, %v845
    %v850 = vrsqrt.pop %v839
    %v851 = vmul.f32 %v850, %v839
    %v852 = vmul.f32 %v851, %v850
    %v853 = vmul.f32 0.5, %v852
    %v854 = vsub.f32 1.5, %v853
    %v855 = vmul.f32 %v850, %v854
    %vm856 = vweird.f32 %v839
    %vm857 = vweird.f32 %v850
    %vm858 = vmor %vm856, %vm857
    %v859 = vsel %vm858, %v850, %v855
    %v860 = vmul.f32 %v826, %v849
    %v861 = vmul.f32 %v827, %v859
    %v863 = vperm.slane %v816, 0
    %v865 = vmul.f32 %v860, %v863
    %v866 = vmul.f32 %v861, %v863
    %v868 = vperm.slane %v817, 0
    %v870 = vadd.f32 %v865, %v868
    %v871 = vadd.f32 %v866, %v868
    %v872 = vpack.c.bf16 %v871, %v870
    %v873 = vld [vmem:[%s10] sm:$0xf]
    %v874 = vld [vmem:[%s10 + $0x4] sm:$0xf]
    %v875 = vld [vmem:[%s10 + $0x8] sm:$0xf]
    %v876 = vld [vmem:[%s10 + $0xc] sm:$0xf]
    %v877 = vld [vmem:[%s11] sm:$0x1]
    %v879 = vperm.slane %v877, 0
    %v885 = vunpack.c.l.b16 %v873
    %v886 = vunpack.c.l.b16 %v874
    %v887 = vunpack.c.l.b16 %v875
    %v888 = vunpack.c.l.b16 %v876
    %v889 = vpack.c.b16 %v886, %v885
    %v890 = vpack.c.b16 %v888, %v887
    %v894 = vsel %vm71, %v872, 0
    %896 = vmatpush.bf16.msra.mxu0 0
    %897 = vmatpush.bf16.msra.mxu0 0
    %898 = vmatpush.bf16.msra.mxu0 0
    %899 = vmatpush.bf16.msra.mxu0 0
    %900 = vmatpush.bf16.msra.mxu0 0
    %901 = vmatpush.bf16.msra.mxu0 0
    %902 = vmatpush.bf16.msra.mxu0 %v890
    %903 = vmatpush.bf16.msra.mxu0 %v889
    %904 = vmatmul.bf16.gmra.mxu0 %v894
    %v905 = vpop.f32.mrf.mxu0
    %v906 = vadd.f32 %v879, %v905
    %v907 = vpop.f32.mrf.mxu0
    %v908 = vadd.f32 %v879, %v907
    %909 = vdwg.mxu0
    %v910 = vmul.f32 %v906, 0.5
    %v911 = vmul.f32 %v908, 0.5
    %v912 = vmul.f32 %v906, 0.70710677
    %v913 = vmul.f32 %v908, 0.70710677
    %v914 = vmul.f32 %v912, %v912
    %v915 = vmin.f32 16.0, %v914
    %v916 = vmul.f32 %v915, 2.1237322e-06
    %v917 = vadd.f32 %v916, 0.00028619796
    %v918 = vmul.f32 %v915, %v917
    %v919 = vadd.f32 %v918, 0.0036580483
    %v920 = vmul.f32 %v915, %v919
    %v921 = vadd.f32 %v920, 0.05243302
    %v922 = vmul.f32 %v915, %v921
    %v923 = vadd.f32 %v922, 0.18741608
    %v924 = vmul.f32 %v915, %v923
    %v925 = vadd.f32 %v924, 1.1283791
    %v926 = vmul.f32 %v912, %v925
    %v927 = vmul.f32 %v915, 3.8918573e-05
    %v928 = vadd.f32 %v927, 0.001143296
    %v929 = vmul.f32 %v915, %v928
    %v930 = vadd.f32 %v929, 0.014752088
    %v931 = vmul.f32 %v915, %v930
    %v932 = vadd.f32 %v931, 0.112945676
    %v933 = vmul.f32 %v915, %v932
    %v934 = vadd.f32 %v933, 0.4994258
    %v935 = vmul.f32 %v915, %v934
    %v936 = vadd.f32 %v935, 1.0
    %v937 = vrcp.pop %v936
    %v938 = vmul.f32 %v936, %v937
    %v939 = vsub.f32 1.0, %v938
    %v940 = vmul.f32 %v937, %v939
    %v941 = vadd.f32 %v937, %v940
    %vm942 = vweird.f32 %v936
    %vm943 = vweird.f32 %v937
    %vm944 = vmor %vm942, %vm943
    %v945 = vsel %vm944, %v937, %v941
    %v946 = vand.u32 2147483647, %v936
    %vm947 = vcmp.eq.f32.partialorder %v946, 8.507059e+37
    %v948 = vand.u32 %v936, 2147483648
    %v949 = vor.u32 1.1754944e-38, %v948
    %v950 = vsel %vm947, %v949, %v945
    %v951 = vmul.f32 %v926, %v950
    %v952 = vmin.f32 %v951, 1.0
    %v953 = vmax.f32 %v952, -1.0
    %v954 = vmul.f32 %v913, %v913
    %v955 = vmin.f32 16.0, %v954
    %v956 = vmul.f32 %v955, 2.1237322e-06
    %v957 = vadd.f32 %v956, 0.00028619796
    %v958 = vmul.f32 %v955, %v957
    %v959 = vadd.f32 %v958, 0.0036580483
    %v960 = vmul.f32 %v955, %v959
    %v961 = vadd.f32 %v960, 0.05243302
    %v962 = vmul.f32 %v955, %v961
    %v963 = vadd.f32 %v962, 0.18741608
    %v964 = vmul.f32 %v955, %v963
    %v965 = vadd.f32 %v964, 1.1283791
    %v966 = vmul.f32 %v913, %v965
    %v967 = vmul.f32 %v955, 3.8918573e-05
    %v968 = vadd.f32 %v967, 0.001143296
    %v969 = vmul.f32 %v955, %v968
    %v970 = vadd.f32 %v969, 0.014752088
    %v971 = vmul.f32 %v955, %v970
    %v972 = vadd.f32 %v971, 0.112945676
    %v973 = vmul.f32 %v955, %v972
    %v974 = vadd.f32 %v973, 0.4994258
    %v975 = vmul.f32 %v955, %v974
    %v976 = vadd.f32 %v975, 1.0
    %v977 = vrcp.pop %v976
    %v978 = vmul.f32 %v976, %v977
    %v979 = vsub.f32 1.0, %v978
    %v980 = vmul.f32 %v977, %v979
    %v981 = vadd.f32 %v977, %v980
    %vm982 = vweird.f32 %v976
    %vm983 = vweird.f32 %v977
    %vm984 = vmor %vm982, %vm983
    %v985 = vsel %vm984, %v977, %v981
    %v986 = vand.u32 2147483647, %v976
    %vm987 = vcmp.eq.f32.partialorder %v986, 8.507059e+37
    %v988 = vand.u32 %v976, 2147483648
    %v989 = vor.u32 1.1754944e-38, %v988
    %v990 = vsel %vm987, %v989, %v985
    %v991 = vmul.f32 %v966, %v990
    %v992 = vmin.f32 %v991, 1.0
    %v993 = vmax.f32 %v992, -1.0
    %v994 = vadd.f32 %v953, 1.0
    %v995 = vadd.f32 %v993, 1.0
    %v996 = vmul.f32 %v910, %v994
    %v997 = vmul.f32 %v911, %v995
    %v998 = vpack.c.bf16 %v997, %v996
    %v999 = vld [vmem:[%s12] sm:$0xf]
    %v1000 = vld [vmem:[%s12 + $0x4] sm:$0xf]
    %v1001 = vld [vmem:[%s12 + $0x8] sm:$0xf]
    %v1002 = vld [vmem:[%s12 + $0xc] sm:$0xf]
    %v1003 = vld [vmem:[%s12 + $0x10] sm:$0xf]
    %v1004 = vld [vmem:[%s12 + $0x14] sm:$0xf]
    %v1005 = vld [vmem:[%s12 + $0x18] sm:$0xf]
    %v1006 = vld [vmem:[%s12 + $0x1c] sm:$0xf]
    %v1007 = vld [vmem:[%s12 + $0x20] sm:$0xf]
    %v1008 = vld [vmem:[%s12 + $0x24] sm:$0xf]
    %v1009 = vld [vmem:[%s12 + $0x28] sm:$0xf]
    %v1010 = vld [vmem:[%s12 + $0x2c] sm:$0xf]
    %v1011 = vld [vmem:[%s12 + $0x30] sm:$0xf]
    %v1012 = vld [vmem:[%s12 + $0x34] sm:$0xf]
    %v1013 = vld [vmem:[%s12 + $0x38] sm:$0xf]
    %v1014 = vld [vmem:[%s12 + $0x3c] sm:$0xf]
    %v1015 = vld [vmem:[%s13] sm:$0x1]
    %v1017 = vperm.slane %v1015, 0
    %v1035 = vunpack.c.l.b16 %v999
    %v1036 = vunpack.c.l.b16 %v1000
    %v1037 = vunpack.c.l.b16 %v1001
    %v1038 = vunpack.c.l.b16 %v1002
    %v1039 = vunpack.c.l.b16 %v1003
    %v1040 = vunpack.c.l.b16 %v1004
    %v1041 = vunpack.c.l.b16 %v1005
    %v1042 = vunpack.c.l.b16 %v1006
    %v1043 = vunpack.c.l.b16 %v1007
    %v1044 = vunpack.c.l.b16 %v1008
    %v1045 = vunpack.c.l.b16 %v1009
    %v1046 = vunpack.c.l.b16 %v1010
    %v1047 = vunpack.c.l.b16 %v1011
    %v1048 = vunpack.c.l.b16 %v1012
    %v1049 = vunpack.c.l.b16 %v1013
    %v1050 = vunpack.c.l.b16 %v1014
    %v1051 = vpack.c.b16 %v1036, %v1035
    %v1052 = vpack.c.b16 %v1038, %v1037
    %v1053 = vpack.c.b16 %v1040, %v1039
    %v1054 = vpack.c.b16 %v1042, %v1041
    %v1055 = vpack.c.b16 %v1044, %v1043
    %v1056 = vpack.c.b16 %v1046, %v1045
    %v1057 = vpack.c.b16 %v1048, %v1047
    %v1058 = vpack.c.b16 %v1050, %v1049
    %1067 = vmatpush.bf16.msra.mxu0 %v1058
    %1068 = vmatpush.bf16.msra.mxu0 %v1057
    %1069 = vmatpush.bf16.msra.mxu0 %v1056
    %1070 = vmatpush.bf16.msra.mxu0 %v1055
    %1071 = vmatpush.bf16.msra.mxu0 %v1054
    %1072 = vmatpush.bf16.msra.mxu0 %v1053
    %1073 = vmatpush.bf16.msra.mxu0 %v1052
    %1074 = vmatpush.bf16.msra.mxu0 %v1051
    %1075 = vmatmul.bf16.gmra.mxu0 %v998
    %v1076 = vpop.f32.mrf.mxu0
    %v1077 = vadd.f32 %v1017, %v1076
    %v1078 = vpop.f32.mrf.mxu0
    %v1079 = vadd.f32 %v1017, %v1078
    %1080 = vdwg.mxu0
    %v1081 = vadd.f32 %v814, %v1077
    %v1082 = vadd.f32 %v815, %v1079
    %s1083 = scalar_lea.vmem %s2, 1
    %v1084 = vld [vmem:[%s1083] sm:$0x1]
    %s1085 = scalar_lea.vmem %s3, 1
    %v1086 = vld [vmem:[%s1085] sm:$0x1]
    %v1087 = vsel %vm71, %v1081, 0.0
    %1088 = vadd.xlane.f32.xlu0 %v1087
    %v1089 = vpop.xlane.xlu0 %1088
    %v1090 = vsel %vm71, %v1082, 0.0
    %1091 = vadd.xlane.f32.xlu0 %v1090
    %v1092 = vpop.xlane.xlu0 %1091
    %v1093 = vmul.f32 %v1089, %v84
    %v1094 = vmul.f32 %v1092, %v84
    %v1095 = vsub.f32 %v1081, %v1093
    %v1096 = vsub.f32 %v1082, %v1094
    %v1097 = vmul.f32 %v1095, %v1095
    %v1098 = vmul.f32 %v1096, %v1096
    %v1099 = vsel %vm71, %v1097, 0.0
    %1100 = vadd.xlane.f32.xlu0 %v1099
    %v1101 = vpop.xlane.xlu0 %1100
    %v1102 = vsel %vm71, %v1098, 0.0
    %1103 = vadd.xlane.f32.xlu0 %v1102
    %v1104 = vpop.xlane.xlu0 %1103
    %v1105 = vmul.f32 %v1101, %v84
    %v1106 = vmul.f32 %v1104, %v84
    %v1107 = vadd.f32 %v1105, 1e-05
    %v1108 = vadd.f32 %v1106, 1e-05
    %v1109 = vrsqrt.pop %v1107
    %v1110 = vmul.f32 %v1109, %v1107
    %v1111 = vmul.f32 %v1110, %v1109
    %v1112 = vmul.f32 0.5, %v1111
    %v1113 = vsub.f32 1.5, %v1112
    %v1114 = vmul.f32 %v1109, %v1113
    %vm1115 = vweird.f32 %v1107
    %vm1116 = vweird.f32 %v1109
    %vm1117 = vmor %vm1115, %vm1116
    %v1118 = vsel %vm1117, %v1109, %v1114
    %v1119 = vrsqrt.pop %v1108
    %v1120 = vmul.f32 %v1119, %v1108
    %v1121 = vmul.f32 %v1120, %v1119
    %v1122 = vmul.f32 0.5, %v1121
    %v1123 = vsub.f32 1.5, %v1122
    %v1124 = vmul.f32 %v1119, %v1123
    %vm1125 = vweird.f32 %v1108
    %vm1126 = vweird.f32 %v1119
    %vm1127 = vmor %vm1125, %vm1126
    %v1128 = vsel %vm1127, %v1119, %v1124
    %v1129 = vmul.f32 %v1095, %v1118
    %v1130 = vmul.f32 %v1096, %v1128
    %v1132 = vperm.slane %v1084, 0
    %v1134 = vmul.f32 %v1129, %v1132
    %v1135 = vmul.f32 %v1130, %v1132
    %v1137 = vperm.slane %v1086, 0
    %v1139 = vadd.f32 %v1134, %v1137
    %v1140 = vadd.f32 %v1135, %v1137
    %v1141 = vpack.c.bf16 %v1140, %v1139
    %s1142 = scalar_lea.vmem %s4, 16
    %v1143 = vld [vmem:[%s1142] sm:$0xf]
    %v1144 = vld [vmem:[%s1142 + $0x4] sm:$0xf]
    %v1145 = vld [vmem:[%s1142 + $0x8] sm:$0xf]
    %v1146 = vld [vmem:[%s1142 + $0xc] sm:$0xf]
    %s1147 = scalar_lea.vmem %s5, 1
    %v1148 = vld [vmem:[%s1147] sm:$0x1]
    %v1150 = vperm.slane %v1148, 0
    %v1156 = vunpack.c.l.b16 %v1143
    %v1157 = vunpack.c.l.b16 %v1144
    %v1158 = vunpack.c.l.b16 %v1145
    %v1159 = vunpack.c.l.b16 %v1146
    %v1160 = vpack.c.b16 %v1157, %v1156
    %v1161 = vpack.c.b16 %v1159, %v1158
    %v1165 = vsel %vm71, %v1141, 0
    %1167 = vmatpush.bf16.msra.mxu0 0
    %1168 = vmatpush.bf16.msra.mxu0 0
    %1169 = vmatpush.bf16.msra.mxu0 0
    %1170 = vmatpush.bf16.msra.mxu0 0
    %1171 = vmatpush.bf16.msra.mxu0 0
    %1172 = vmatpush.bf16.msra.mxu0 0
    %1173 = vmatpush.bf16.msra.mxu0 %v1161
    %1174 = vmatpush.bf16.msra.mxu0 %v1160
    %1175 = vmatmul.bf16.gmra.mxu0 %v1165
    %v1176 = vpop.f32.mrf.mxu0
    %v1177 = vadd.f32 %v1150, %v1176
    %v1178 = vpop.f32.mrf.mxu0
    %v1179 = vadd.f32 %v1150, %v1178
    %1180 = vdwg.mxu0
    %v1181 = vmul.f32 %v1177, 0.35355338
    %v1182 = vmul.f32 %v1179, 0.35355338
    %v1183 = vpack.c.bf16 %v1181, %v1181
    %v1184 = vpack.c.bf16 %v1182, %v1182
    %v1185 = vpack.c.bf16 %v1177, %v1177
    %v1186 = vpack.c.bf16 %v1179, %v1179
    %v1188 = vunpack.c.l.b16 %v1185
    %v1189 = vpack.c.b16 %v1188, %v1188
    %1190 = vrot.lane.b32.xlu0 %v1189, 96
    %v1191 = vpop.permute.xlu0 %1190
    %v1193 = vsel %vm182, %v1183, 0
    %v1196 = vsel %vm182, %v1191, 0
    %1198 = vmatpush.bf16.xpose.msra.mxu0 0
    %1199 = vmatpush.bf16.xpose.msra.mxu0 0
    %1200 = vmatpush.bf16.xpose.msra.mxu0 0
    %1201 = vmatpush.bf16.xpose.msra.mxu0 0
    %1202 = vmatpush.bf16.xpose.msra.mxu0 0
    %1203 = vmatpush.bf16.xpose.msra.mxu0 0
    %1204 = vmatpush.bf16.xpose.msra.mxu0 0
    %1205 = vmatpush.bf16.xpose.msra.mxu0 %v1196
    %1206 = vmatmul.bf16.gmra.mxu0 %v1193
    %v1207 = vpop.f32.mrf.mxu0
    %v1208 = vadd.f32 %v68, %v1207
    %v1209 = vpop.f32.mrf.mxu0
    %1210 = vdwg.mxu0
    %v1212 = vunpack.c.l.b16 %v1186
    %v1213 = vpack.c.b16 %v1212, %v1212
    %1214 = vrot.lane.b32.xlu0 %v1213, 96
    %v1215 = vpop.permute.xlu0 %1214
    %v1217 = vsel %vm182, %v1184, 0
    %v1220 = vsel %vm182, %v1215, 0
    %1222 = vmatpush.bf16.xpose.msra.mxu0 0
    %1223 = vmatpush.bf16.xpose.msra.mxu0 0
    %1224 = vmatpush.bf16.xpose.msra.mxu0 0
    %1225 = vmatpush.bf16.xpose.msra.mxu0 0
    %1226 = vmatpush.bf16.xpose.msra.mxu0 0
    %1227 = vmatpush.bf16.xpose.msra.mxu0 0
    %1228 = vmatpush.bf16.xpose.msra.mxu0 0
    %1229 = vmatpush.bf16.xpose.msra.mxu0 %v1220
    %1230 = vmatmul.bf16.gmra.mxu0 %v1217
    %v1231 = vpop.f32.mrf.mxu0
    %v1232 = vadd.f32 %v68, %v1231
    %v1233 = vpop.f32.mrf.mxu0
    %1234 = vdwg.mxu0
    %v1235 = vsel %vm182, %v1208, -inf
    %1236 = vmax.xlane.f32.xlu0 %v1235
    %v1237 = vpop.xlane.xlu0 %1236
    %v1238 = vsel %vm182, %v1232, -inf
    %1239 = vmax.xlane.f32.xlu0 %v1238
    %v1240 = vpop.xlane.xlu0 %1239
    %v1241 = vsub.f32 %v1208, %v1237
    %v1242 = vsub.f32 %v1232, %v1240
    %v1243 = vmul.f32 %v1241, 1.442695
    %v1244 = vpow.pop %v1243
    %v1245 = vmul.f32 %v1242, 1.442695
    %v1246 = vpow.pop %v1245
    %v1247 = vsel %vm182, %v1244, 0.0
    %1248 = vadd.xlane.f32.xlu0 %v1247
    %v1249 = vpop.xlane.xlu0 %1248
    %v1250 = vsel %vm182, %v1246, 0.0
    %1251 = vadd.xlane.f32.xlu0 %v1250
    %v1252 = vpop.xlane.xlu0 %1251
    %v1253 = vrcp.pop %v1249
    %v1254 = vmul.f32 %v1249, %v1253
    %v1255 = vsub.f32 1.0, %v1254
    %v1256 = vmul.f32 %v1253, %v1255
    %v1257 = vadd.f32 %v1253, %v1256
    %vm1258 = vweird.f32 %v1249
    %vm1259 = vweird.f32 %v1253
    %vm1260 = vmor %vm1258, %vm1259
    %v1261 = vsel %vm1260, %v1253, %v1257
    %v1262 = vand.u32 2147483647, %v1249
    %vm1263 = vcmp.eq.f32.partialorder %v1262, 8.507059e+37
    %v1264 = vand.u32 %v1249, 2147483648
    %v1265 = vor.u32 1.1754944e-38, %v1264
    %v1266 = vsel %vm1263, %v1265, %v1261
    %v1267 = vmul.f32 %v1244, %v1266
    %v1268 = vrcp.pop %v1252
    %v1269 = vmul.f32 %v1252, %v1268
    %v1270 = vsub.f32 1.0, %v1269
    %v1271 = vmul.f32 %v1268, %v1270
    %v1272 = vadd.f32 %v1268, %v1271
    %vm1273 = vweird.f32 %v1252
    %vm1274 = vweird.f32 %v1268
    %vm1275 = vmor %vm1273, %vm1274
    %v1276 = vsel %vm1275, %v1268, %v1272
    %v1277 = vand.u32 2147483647, %v1252
    %vm1278 = vcmp.eq.f32.partialorder %v1277, 8.507059e+37
    %v1279 = vand.u32 %v1252, 2147483648
    %v1280 = vor.u32 1.1754944e-38, %v1279
    %v1281 = vsel %vm1278, %v1280, %v1276
    %v1282 = vmul.f32 %v1246, %v1281
    %v1283 = vpack.c.bf16 %v1267, %v1267
    %v1284 = vpack.c.bf16 %v1282, %v1282
    %1285 = vrot.lane.b32.xlu0 %v1189, 64
    %v1286 = vpop.permute.xlu0 %1285
    %v1288 = vsel %vm182, %v1283, 0
    %v1291 = vsel %vm281, %v1286, 0
    %1293 = vmatpush.bf16.msra.mxu0 0
    %1294 = vmatpush.bf16.msra.mxu0 0
    %1295 = vmatpush.bf16.msra.mxu0 0
    %1296 = vmatpush.bf16.msra.mxu0 0
    %1297 = vmatpush.bf16.msra.mxu0 0
    %1298 = vmatpush.bf16.msra.mxu0 0
    %1299 = vmatpush.bf16.msra.mxu0 0
    %1300 = vmatpush.bf16.msra.mxu0 %v1291
    %1301 = vmatmul.bf16.gmra.mxu0 %v1288
    %v1302 = vpop.f32.mrf.mxu0
    %v1303 = vadd.f32 0.0, %v1302
    %v1304 = vpop.f32.mrf.mxu0
    %1305 = vdwg.mxu0
    %1306 = vrot.lane.b32.xlu0 %v1213, 64
    %v1307 = vpop.permute.xlu0 %1306
    %v1309 = vsel %vm182, %v1284, 0
    %v1312 = vsel %vm281, %v1307, 0
    %1314 = vmatpush.bf16.msra.mxu0 0
    %1315 = vmatpush.bf16.msra.mxu0 0
    %1316 = vmatpush.bf16.msra.mxu0 0
    %1317 = vmatpush.bf16.msra.mxu0 0
    %1318 = vmatpush.bf16.msra.mxu0 0
    %1319 = vmatpush.bf16.msra.mxu0 0
    %1320 = vmatpush.bf16.msra.mxu0 0
    %1321 = vmatpush.bf16.msra.mxu0 %v1312
    %1322 = vmatmul.bf16.gmra.mxu0 %v1309
    %v1323 = vpop.f32.mrf.mxu0
    %v1324 = vadd.f32 0.0, %v1323
    %v1325 = vpop.f32.mrf.mxu0
    %1326 = vdwg.mxu0
    %1327 = vst.msk [vmem:[#allocation2] sm:$0xff] %vm182, %v1303
    %1328 = vst.msk [vmem:[#allocation2 + $0x8] sm:$0xff] %vm182, %v1324
    %v1330 = vunpack.c.l.b16 %v1183
    %v1331 = vpack.c.b16 %v1330, %v1330
    %1332 = vrot.lane.b32.xlu0 %v1331, 120
    %v1333 = vpop.permute.xlu0 %1332
    %1334 = vrot.lane.b32.xlu0 %v1189, 88
    %v1335 = vpop.permute.xlu0 %1334
    %v1337 = vsel %vm182, %v1333, 0
    %v1340 = vsel %vm182, %v1335, 0
    %1342 = vmatpush.bf16.xpose.msra.mxu0 0
    %1343 = vmatpush.bf16.xpose.msra.mxu0 0
    %1344 = vmatpush.bf16.xpose.msra.mxu0 0
    %1345 = vmatpush.bf16.xpose.msra.mxu0 0
    %1346 = vmatpush.bf16.xpose.msra.mxu0 0
    %1347 = vmatpush.bf16.xpose.msra.mxu0 0
    %1348 = vmatpush.bf16.xpose.msra.mxu0 0
    %1349 = vmatpush.bf16.xpose.msra.mxu0 %v1340
    %1350 = vmatmul.bf16.gmra.mxu0 %v1337
    %v1351 = vpop.f32.mrf.mxu0
    %v1352 = vadd.f32 %v68, %v1351
    %v1353 = vpop.f32.mrf.mxu0
    %1354 = vdwg.mxu0
    %v1356 = vunpack.c.l.b16 %v1184
    %v1357 = vpack.c.b16 %v1356, %v1356
    %1358 = vrot.lane.b32.xlu0 %v1357, 120
    %v1359 = vpop.permute.xlu0 %1358
    %1360 = vrot.lane.b32.xlu0 %v1213, 88
    %v1361 = vpop.permute.xlu0 %1360
    %v1363 = vsel %vm182, %v1359, 0
    %v1366 = vsel %vm182, %v1361, 0
    %1368 = vmatpush.bf16.xpose.msra.mxu0 0
    %1369 = vmatpush.bf16.xpose.msra.mxu0 0
    %1370 = vmatpush.bf16.xpose.msra.mxu0 0
    %1371 = vmatpush.bf16.xpose.msra.mxu0 0
    %1372 = vmatpush.bf16.xpose.msra.mxu0 0
    %1373 = vmatpush.bf16.xpose.msra.mxu0 0
    %1374 = vmatpush.bf16.xpose.msra.mxu0 0
    %1375 = vmatpush.bf16.xpose.msra.mxu0 %v1366
    %1376 = vmatmul.bf16.gmra.mxu0 %v1363
    %v1377 = vpop.f32.mrf.mxu0
    %v1378 = vadd.f32 %v68, %v1377
    %v1379 = vpop.f32.mrf.mxu0
    %1380 = vdwg.mxu0
    %v1381 = vsel %vm182, %v1352, -inf
    %1382 = vmax.xlane.f32.xlu0 %v1381
    %v1383 = vpop.xlane.xlu0 %1382
    %v1384 = vsel %vm182, %v1378, -inf
    %1385 = vmax.xlane.f32.xlu0 %v1384
    %v1386 = vpop.xlane.xlu0 %1385
    %v1387 = vsub.f32 %v1352, %v1383
    %v1388 = vsub.f32 %v1378, %v1386
    %v1389 = vmul.f32 %v1387, 1.442695
    %v1390 = vpow.pop %v1389
    %v1391 = vmul.f32 %v1388, 1.442695
    %v1392 = vpow.pop %v1391
    %v1393 = vsel %vm182, %v1390, 0.0
    %1394 = vadd.xlane.f32.xlu0 %v1393
    %v1395 = vpop.xlane.xlu0 %1394
    %v1396 = vsel %vm182, %v1392, 0.0
    %1397 = vadd.xlane.f32.xlu0 %v1396
    %v1398 = vpop.xlane.xlu0 %1397
    %v1399 = vrcp.pop %v1395
    %v1400 = vmul.f32 %v1395, %v1399
    %v1401 = vsub.f32 1.0, %v1400
    %v1402 = vmul.f32 %v1399, %v1401
    %v1403 = vadd.f32 %v1399, %v1402
    %vm1404 = vweird.f32 %v1395
    %vm1405 = vweird.f32 %v1399
    %vm1406 = vmor %vm1404, %vm1405
    %v1407 = vsel %vm1406, %v1399, %v1403
    %v1408 = vand.u32 2147483647, %v1395
    %vm1409 = vcmp.eq.f32.partialorder %v1408, 8.507059e+37
    %v1410 = vand.u32 %v1395, 2147483648
    %v1411 = vor.u32 1.1754944e-38, %v1410
    %v1412 = vsel %vm1409, %v1411, %v1407
    %v1413 = vmul.f32 %v1390, %v1412
    %v1414 = vrcp.pop %v1398
    %v1415 = vmul.f32 %v1398, %v1414
    %v1416 = vsub.f32 1.0, %v1415
    %v1417 = vmul.f32 %v1414, %v1416
    %v1418 = vadd.f32 %v1414, %v1417
    %vm1419 = vweird.f32 %v1398
    %vm1420 = vweird.f32 %v1414
    %vm1421 = vmor %vm1419, %vm1420
    %v1422 = vsel %vm1421, %v1414, %v1418
    %v1423 = vand.u32 2147483647, %v1398
    %vm1424 = vcmp.eq.f32.partialorder %v1423, 8.507059e+37
    %v1425 = vand.u32 %v1398, 2147483648
    %v1426 = vor.u32 1.1754944e-38, %v1425
    %v1427 = vsel %vm1424, %v1426, %v1422
    %v1428 = vmul.f32 %v1392, %v1427
    %v1429 = vpack.c.bf16 %v1413, %v1413
    %v1430 = vpack.c.bf16 %v1428, %v1428
    %1431 = vrot.lane.b32.xlu0 %v1189, 56
    %v1432 = vpop.permute.xlu0 %1431
    %v1434 = vsel %vm182, %v1429, 0
    %v1437 = vsel %vm281, %v1432, 0
    %1439 = vmatpush.bf16.msra.mxu0 0
    %1440 = vmatpush.bf16.msra.mxu0 0
    %1441 = vmatpush.bf16.msra.mxu0 0
    %1442 = vmatpush.bf16.msra.mxu0 0
    %1443 = vmatpush.bf16.msra.mxu0 0
    %1444 = vmatpush.bf16.msra.mxu0 0
    %1445 = vmatpush.bf16.msra.mxu0 0
    %1446 = vmatpush.bf16.msra.mxu0 %v1437
    %1447 = vmatmul.bf16.gmra.mxu0 %v1434
    %v1448 = vpop.f32.mrf.mxu0
    %v1449 = vadd.f32 0.0, %v1448
    %v1450 = vpop.f32.mrf.mxu0
    %1451 = vdwg.mxu0
    %1452 = vrot.lane.b32.xlu0 %v1213, 56
    %v1453 = vpop.permute.xlu0 %1452
    %v1455 = vsel %vm182, %v1430, 0
    %v1458 = vsel %vm281, %v1453, 0
    %1460 = vmatpush.bf16.msra.mxu0 0
    %1461 = vmatpush.bf16.msra.mxu0 0
    %1462 = vmatpush.bf16.msra.mxu0 0
    %1463 = vmatpush.bf16.msra.mxu0 0
    %1464 = vmatpush.bf16.msra.mxu0 0
    %1465 = vmatpush.bf16.msra.mxu0 0
    %1466 = vmatpush.bf16.msra.mxu0 0
    %1467 = vmatpush.bf16.msra.mxu0 %v1458
    %1468 = vmatmul.bf16.gmra.mxu0 %v1455
    %v1469 = vpop.f32.mrf.mxu0
    %v1470 = vadd.f32 0.0, %v1469
    %v1471 = vpop.f32.mrf.mxu0
    %1472 = vdwg.mxu0
    %1475 = vrot.lane.b32.xlu0 %v1449, 8
    %v1476 = vpop.permute.xlu0 %1475
    %1477 = vrot.lane.b32.xlu0 %v1470, 8
    %v1478 = vpop.permute.xlu0 %1477
    %1481 = vst.msk [vmem:[#allocation2] sm:$0xff] %vm473, %v1476
    %1482 = vst.msk [vmem:[#allocation2 + $0x8] sm:$0xff] %vm473, %v1478
    %1483 = vrot.lane.b32.xlu0 %v1331, 112
    %v1484 = vpop.permute.xlu0 %1483
    %1485 = vrot.lane.b32.xlu0 %v1189, 80
    %v1486 = vpop.permute.xlu0 %1485
    %v1488 = vsel %vm182, %v1484, 0
    %v1491 = vsel %vm182, %v1486, 0
    %1493 = vmatpush.bf16.xpose.msra.mxu0 0
    %1494 = vmatpush.bf16.xpose.msra.mxu0 0
    %1495 = vmatpush.bf16.xpose.msra.mxu0 0
    %1496 = vmatpush.bf16.xpose.msra.mxu0 0
    %1497 = vmatpush.bf16.xpose.msra.mxu0 0
    %1498 = vmatpush.bf16.xpose.msra.mxu0 0
    %1499 = vmatpush.bf16.xpose.msra.mxu0 0
    %1500 = vmatpush.bf16.xpose.msra.mxu0 %v1491
    %1501 = vmatmul.bf16.gmra.mxu0 %v1488
    %v1502 = vpop.f32.mrf.mxu0
    %v1503 = vadd.f32 %v68, %v1502
    %v1504 = vpop.f32.mrf.mxu0
    %1505 = vdwg.mxu0
    %1506 = vrot.lane.b32.xlu0 %v1357, 112
    %v1507 = vpop.permute.xlu0 %1506
    %1508 = vrot.lane.b32.xlu0 %v1213, 80
    %v1509 = vpop.permute.xlu0 %1508
    %v1511 = vsel %vm182, %v1507, 0
    %v1514 = vsel %vm182, %v1509, 0
    %1516 = vmatpush.bf16.xpose.msra.mxu0 0
    %1517 = vmatpush.bf16.xpose.msra.mxu0 0
    %1518 = vmatpush.bf16.xpose.msra.mxu0 0
    %1519 = vmatpush.bf16.xpose.msra.mxu0 0
    %1520 = vmatpush.bf16.xpose.msra.mxu0 0
    %1521 = vmatpush.bf16.xpose.msra.mxu0 0
    %1522 = vmatpush.bf16.xpose.msra.mxu0 0
    %1523 = vmatpush.bf16.xpose.msra.mxu0 %v1514
    %1524 = vmatmul.bf16.gmra.mxu0 %v1511
    %v1525 = vpop.f32.mrf.mxu0
    %v1526 = vadd.f32 %v68, %v1525
    %v1527 = vpop.f32.mrf.mxu0
    %1528 = vdwg.mxu0
    %v1529 = vsel %vm182, %v1503, -inf
    %1530 = vmax.xlane.f32.xlu0 %v1529
    %v1531 = vpop.xlane.xlu0 %1530
    %v1532 = vsel %vm182, %v1526, -inf
    %1533 = vmax.xlane.f32.xlu0 %v1532
    %v1534 = vpop.xlane.xlu0 %1533
    %v1535 = vsub.f32 %v1503, %v1531
    %v1536 = vsub.f32 %v1526, %v1534
    %v1537 = vmul.f32 %v1535, 1.442695
    %v1538 = vpow.pop %v1537
    %v1539 = vmul.f32 %v1536, 1.442695
    %v1540 = vpow.pop %v1539
    %v1541 = vsel %vm182, %v1538, 0.0
    %1542 = vadd.xlane.f32.xlu0 %v1541
    %v1543 = vpop.xlane.xlu0 %1542
    %v1544 = vsel %vm182, %v1540, 0.0
    %1545 = vadd.xlane.f32.xlu0 %v1544
    %v1546 = vpop.xlane.xlu0 %1545
    %v1547 = vrcp.pop %v1543
    %v1548 = vmul.f32 %v1543, %v1547
    %v1549 = vsub.f32 1.0, %v1548
    %v1550 = vmul.f32 %v1547, %v1549
    %v1551 = vadd.f32 %v1547, %v1550
    %vm1552 = vweird.f32 %v1543
    %vm1553 = vweird.f32 %v1547
    %vm1554 = vmor %vm1552, %vm1553
    %v1555 = vsel %vm1554, %v1547, %v1551
    %v1556 = vand.u32 2147483647, %v1543
    %vm1557 = vcmp.eq.f32.partialorder %v1556, 8.507059e+37
    %v1558 = vand.u32 %v1543, 2147483648
    %v1559 = vor.u32 1.1754944e-38, %v1558
    %v1560 = vsel %vm1557, %v1559, %v1555
    %v1561 = vmul.f32 %v1538, %v1560
    %v1562 = vrcp.pop %v1546
    %v1563 = vmul.f32 %v1546, %v1562
    %v1564 = vsub.f32 1.0, %v1563
    %v1565 = vmul.f32 %v1562, %v1564
    %v1566 = vadd.f32 %v1562, %v1565
    %vm1567 = vweird.f32 %v1546
    %vm1568 = vweird.f32 %v1562
    %vm1569 = vmor %vm1567, %vm1568
    %v1570 = vsel %vm1569, %v1562, %v1566
    %v1571 = vand.u32 2147483647, %v1546
    %vm1572 = vcmp.eq.f32.partialorder %v1571, 8.507059e+37
    %v1573 = vand.u32 %v1546, 2147483648
    %v1574 = vor.u32 1.1754944e-38, %v1573
    %v1575 = vsel %vm1572, %v1574, %v1570
    %v1576 = vmul.f32 %v1540, %v1575
    %v1577 = vpack.c.bf16 %v1561, %v1561
    %v1578 = vpack.c.bf16 %v1576, %v1576
    %1579 = vrot.lane.b32.xlu0 %v1189, 48
    %v1580 = vpop.permute.xlu0 %1579
    %v1582 = vsel %vm182, %v1577, 0
    %v1585 = vsel %vm281, %v1580, 0
    %1587 = vmatpush.bf16.msra.mxu0 0
    %1588 = vmatpush.bf16.msra.mxu0 0
    %1589 = vmatpush.bf16.msra.mxu0 0
    %1590 = vmatpush.bf16.msra.mxu0 0
    %1591 = vmatpush.bf16.msra.mxu0 0
    %1592 = vmatpush.bf16.msra.mxu0 0
    %1593 = vmatpush.bf16.msra.mxu0 0
    %1594 = vmatpush.bf16.msra.mxu0 %v1585
    %1595 = vmatmul.bf16.gmra.mxu0 %v1582
    %v1596 = vpop.f32.mrf.mxu0
    %v1597 = vadd.f32 0.0, %v1596
    %v1598 = vpop.f32.mrf.mxu0
    %1599 = vdwg.mxu0
    %1600 = vrot.lane.b32.xlu0 %v1213, 48
    %v1601 = vpop.permute.xlu0 %1600
    %v1603 = vsel %vm182, %v1578, 0
    %v1606 = vsel %vm281, %v1601, 0
    %1608 = vmatpush.bf16.msra.mxu0 0
    %1609 = vmatpush.bf16.msra.mxu0 0
    %1610 = vmatpush.bf16.msra.mxu0 0
    %1611 = vmatpush.bf16.msra.mxu0 0
    %1612 = vmatpush.bf16.msra.mxu0 0
    %1613 = vmatpush.bf16.msra.mxu0 0
    %1614 = vmatpush.bf16.msra.mxu0 0
    %1615 = vmatpush.bf16.msra.mxu0 %v1606
    %1616 = vmatmul.bf16.gmra.mxu0 %v1603
    %v1617 = vpop.f32.mrf.mxu0
    %v1618 = vadd.f32 0.0, %v1617
    %v1619 = vpop.f32.mrf.mxu0
    %1620 = vdwg.mxu0
    %1623 = vrot.lane.b32.xlu0 %v1597, 16
    %v1624 = vpop.permute.xlu0 %1623
    %1625 = vrot.lane.b32.xlu0 %v1618, 16
    %v1626 = vpop.permute.xlu0 %1625
    %1629 = vst.msk [vmem:[#allocation2] sm:$0xff] %vm622, %v1624
    %1630 = vst.msk [vmem:[#allocation2 + $0x8] sm:$0xff] %vm622, %v1626
    %1631 = vrot.lane.b32.xlu0 %v1331, 104
    %v1632 = vpop.permute.xlu0 %1631
    %1633 = vrot.lane.b32.xlu0 %v1189, 72
    %v1634 = vpop.permute.xlu0 %1633
    %v1636 = vsel %vm182, %v1632, 0
    %v1639 = vsel %vm182, %v1634, 0
    %1641 = vmatpush.bf16.xpose.msra.mxu0 0
    %1642 = vmatpush.bf16.xpose.msra.mxu0 0
    %1643 = vmatpush.bf16.xpose.msra.mxu0 0
    %1644 = vmatpush.bf16.xpose.msra.mxu0 0
    %1645 = vmatpush.bf16.xpose.msra.mxu0 0
    %1646 = vmatpush.bf16.xpose.msra.mxu0 0
    %1647 = vmatpush.bf16.xpose.msra.mxu0 0
    %1648 = vmatpush.bf16.xpose.msra.mxu0 %v1639
    %1649 = vmatmul.bf16.gmra.mxu0 %v1636
    %v1650 = vpop.f32.mrf.mxu0
    %v1651 = vadd.f32 %v68, %v1650
    %v1652 = vpop.f32.mrf.mxu0
    %1653 = vdwg.mxu0
    %1654 = vrot.lane.b32.xlu0 %v1357, 104
    %v1655 = vpop.permute.xlu0 %1654
    %1656 = vrot.lane.b32.xlu0 %v1213, 72
    %v1657 = vpop.permute.xlu0 %1656
    %v1659 = vsel %vm182, %v1655, 0
    %v1662 = vsel %vm182, %v1657, 0
    %1664 = vmatpush.bf16.xpose.msra.mxu0 0
    %1665 = vmatpush.bf16.xpose.msra.mxu0 0
    %1666 = vmatpush.bf16.xpose.msra.mxu0 0
    %1667 = vmatpush.bf16.xpose.msra.mxu0 0
    %1668 = vmatpush.bf16.xpose.msra.mxu0 0
    %1669 = vmatpush.bf16.xpose.msra.mxu0 0
    %1670 = vmatpush.bf16.xpose.msra.mxu0 0
    %1671 = vmatpush.bf16.xpose.msra.mxu0 %v1662
    %1672 = vmatmul.bf16.gmra.mxu0 %v1659
    %v1673 = vpop.f32.mrf.mxu0
    %v1674 = vadd.f32 %v68, %v1673
    %v1675 = vpop.f32.mrf.mxu0
    %1676 = vdwg.mxu0
    %v1677 = vsel %vm182, %v1651, -inf
    %1678 = vmax.xlane.f32.xlu0 %v1677
    %v1679 = vpop.xlane.xlu0 %1678
    %v1680 = vsel %vm182, %v1674, -inf
    %1681 = vmax.xlane.f32.xlu0 %v1680
    %v1682 = vpop.xlane.xlu0 %1681
    %v1683 = vsub.f32 %v1651, %v1679
    %v1684 = vsub.f32 %v1674, %v1682
    %v1685 = vmul.f32 %v1683, 1.442695
    %v1686 = vpow.pop %v1685
    %v1687 = vmul.f32 %v1684, 1.442695
    %v1688 = vpow.pop %v1687
    %v1689 = vsel %vm182, %v1686, 0.0
    %1690 = vadd.xlane.f32.xlu0 %v1689
    %v1691 = vpop.xlane.xlu0 %1690
    %v1692 = vsel %vm182, %v1688, 0.0
    %1693 = vadd.xlane.f32.xlu0 %v1692
    %v1694 = vpop.xlane.xlu0 %1693
    %v1695 = vrcp.pop %v1691
    %v1696 = vmul.f32 %v1691, %v1695
    %v1697 = vsub.f32 1.0, %v1696
    %v1698 = vmul.f32 %v1695, %v1697
    %v1699 = vadd.f32 %v1695, %v1698
    %vm1700 = vweird.f32 %v1691
    %vm1701 = vweird.f32 %v1695
    %vm1702 = vmor %vm1700, %vm1701
    %v1703 = vsel %vm1702, %v1695, %v1699
    %v1704 = vand.u32 2147483647, %v1691
    %vm1705 = vcmp.eq.f32.partialorder %v1704, 8.507059e+37
    %v1706 = vand.u32 %v1691, 2147483648
    %v1707 = vor.u32 1.1754944e-38, %v1706
    %v1708 = vsel %vm1705, %v1707, %v1703
    %v1709 = vmul.f32 %v1686, %v1708
    %v1710 = vrcp.pop %v1694
    %v1711 = vmul.f32 %v1694, %v1710
    %v1712 = vsub.f32 1.0, %v1711
    %v1713 = vmul.f32 %v1710, %v1712
    %v1714 = vadd.f32 %v1710, %v1713
    %vm1715 = vweird.f32 %v1694
    %vm1716 = vweird.f32 %v1710
    %vm1717 = vmor %vm1715, %vm1716
    %v1718 = vsel %vm1717, %v1710, %v1714
    %v1719 = vand.u32 2147483647, %v1694
    %vm1720 = vcmp.eq.f32.partialorder %v1719, 8.507059e+37
    %v1721 = vand.u32 %v1694, 2147483648
    %v1722 = vor.u32 1.1754944e-38, %v1721
    %v1723 = vsel %vm1720, %v1722, %v1718
    %v1724 = vmul.f32 %v1688, %v1723
    %v1725 = vpack.c.bf16 %v1709, %v1709
    %v1726 = vpack.c.bf16 %v1724, %v1724
    %1727 = vrot.lane.b32.xlu0 %v1189, 40
    %v1728 = vpop.permute.xlu0 %1727
    %v1730 = vsel %vm182, %v1725, 0
    %v1733 = vsel %vm281, %v1728, 0
    %1735 = vmatpush.bf16.msra.mxu0 0
    %1736 = vmatpush.bf16.msra.mxu0 0
    %1737 = vmatpush.bf16.msra.mxu0 0
    %1738 = vmatpush.bf16.msra.mxu0 0
    %1739 = vmatpush.bf16.msra.mxu0 0
    %1740 = vmatpush.bf16.msra.mxu0 0
    %1741 = vmatpush.bf16.msra.mxu0 0
    %1742 = vmatpush.bf16.msra.mxu0 %v1733
    %1743 = vmatmul.bf16.gmra.mxu0 %v1730
    %v1744 = vpop.f32.mrf.mxu0
    %v1745 = vadd.f32 0.0, %v1744
    %v1746 = vpop.f32.mrf.mxu0
    %1747 = vdwg.mxu0
    %1748 = vrot.lane.b32.xlu0 %v1213, 40
    %v1749 = vpop.permute.xlu0 %1748
    %v1751 = vsel %vm182, %v1726, 0
    %v1754 = vsel %vm281, %v1749, 0
    %1756 = vmatpush.bf16.msra.mxu0 0
    %1757 = vmatpush.bf16.msra.mxu0 0
    %1758 = vmatpush.bf16.msra.mxu0 0
    %1759 = vmatpush.bf16.msra.mxu0 0
    %1760 = vmatpush.bf16.msra.mxu0 0
    %1761 = vmatpush.bf16.msra.mxu0 0
    %1762 = vmatpush.bf16.msra.mxu0 0
    %1763 = vmatpush.bf16.msra.mxu0 %v1754
    %1764 = vmatmul.bf16.gmra.mxu0 %v1751
    %v1765 = vpop.f32.mrf.mxu0
    %v1766 = vadd.f32 0.0, %v1765
    %v1767 = vpop.f32.mrf.mxu0
    %1768 = vdwg.mxu0
    %1771 = vrot.lane.b32.xlu0 %v1745, 24
    %v1772 = vpop.permute.xlu0 %1771
    %1773 = vrot.lane.b32.xlu0 %v1766, 24
    %v1774 = vpop.permute.xlu0 %1773
    %1777 = vst.msk [vmem:[#allocation2] sm:$0xff] %vm771, %v1772
    %1778 = vst.msk [vmem:[#allocation2 + $0x8] sm:$0xff] %vm771, %v1774
    %v1779 = vld [vmem:[#allocation2] sm:$0xff]
    %v1780 = vld [vmem:[#allocation2 + $0x8] sm:$0xff]
    %v1781 = vpack.c.bf16 %v1780, %v1779
    %s1782 = scalar_lea.vmem %s6, 16
    %v1783 = vld [vmem:[%s1782] sm:$0xf]
    %v1784 = vld [vmem:[%s1782 + $0x4] sm:$0xf]
    %v1785 = vld [vmem:[%s1782 + $0x8] sm:$0xf]
    %v1786 = vld [vmem:[%s1782 + $0xc] sm:$0xf]
    %s1787 = scalar_lea.vmem %s7, 1
    %v1788 = vld [vmem:[%s1787] sm:$0x1]
    %v1790 = vperm.slane %v1788, 0
    %v1796 = vunpack.c.l.b16 %v1783
    %v1797 = vunpack.c.l.b16 %v1784
    %v1798 = vunpack.c.l.b16 %v1785
    %v1799 = vunpack.c.l.b16 %v1786
    %v1800 = vpack.c.b16 %v1797, %v1796
    %v1801 = vpack.c.b16 %v1799, %v1798
    %v1805 = vsel %vm71, %v1781, 0
    %1807 = vmatpush.bf16.msra.mxu0 0
    %1808 = vmatpush.bf16.msra.mxu0 0
    %1809 = vmatpush.bf16.msra.mxu0 0
    %1810 = vmatpush.bf16.msra.mxu0 0
    %1811 = vmatpush.bf16.msra.mxu0 0
    %1812 = vmatpush.bf16.msra.mxu0 0
    %1813 = vmatpush.bf16.msra.mxu0 %v1801
    %1814 = vmatpush.bf16.msra.mxu0 %v1800
    %1815 = vmatmul.bf16.gmra.mxu0 %v1805
    %v1816 = vpop.f32.mrf.mxu0
    %v1817 = vadd.f32 %v1790, %v1816
    %v1818 = vpop.f32.mrf.mxu0
    %v1819 = vadd.f32 %v1790, %v1818
    %1820 = vdwg.mxu0
    %v1821 = vadd.f32 %v1081, %v1817
    %v1822 = vadd.f32 %v1082, %v1819
    %s1823 = scalar_lea.vmem %s8, 1
    %v1824 = vld [vmem:[%s1823] sm:$0x1]
    %s1825 = scalar_lea.vmem %s9, 1
    %v1826 = vld [vmem:[%s1825] sm:$0x1]
    %v1827 = vsel %vm71, %v1821, 0.0
    %1828 = vadd.xlane.f32.xlu0 %v1827
    %v1829 = vpop.xlane.xlu0 %1828
    %v1830 = vsel %vm71, %v1822, 0.0
    %1831 = vadd.xlane.f32.xlu0 %v1830
    %v1832 = vpop.xlane.xlu0 %1831
    %v1833 = vmul.f32 %v1829, %v84
    %v1834 = vmul.f32 %v1832, %v84
    %v1835 = vsub.f32 %v1821, %v1833
    %v1836 = vsub.f32 %v1822, %v1834
    %v1837 = vmul.f32 %v1835, %v1835
    %v1838 = vmul.f32 %v1836, %v1836
    %v1839 = vsel %vm71, %v1837, 0.0
    %1840 = vadd.xlane.f32.xlu0 %v1839
    %v1841 = vpop.xlane.xlu0 %1840
    %v1842 = vsel %vm71, %v1838, 0.0
    %1843 = vadd.xlane.f32.xlu0 %v1842
    %v1844 = vpop.xlane.xlu0 %1843
    %v1845 = vmul.f32 %v1841, %v84
    %v1846 = vmul.f32 %v1844, %v84
    %v1847 = vadd.f32 %v1845, 1e-05
    %v1848 = vadd.f32 %v1846, 1e-05
    %v1849 = vrsqrt.pop %v1847
    %v1850 = vmul.f32 %v1849, %v1847
    %v1851 = vmul.f32 %v1850, %v1849
    %v1852 = vmul.f32 0.5, %v1851
    %v1853 = vsub.f32 1.5, %v1852
    %v1854 = vmul.f32 %v1849, %v1853
    %vm1855 = vweird.f32 %v1847
    %vm1856 = vweird.f32 %v1849
    %vm1857 = vmor %vm1855, %vm1856
    %v1858 = vsel %vm1857, %v1849, %v1854
    %v1859 = vrsqrt.pop %v1848
    %v1860 = vmul.f32 %v1859, %v1848
    %v1861 = vmul.f32 %v1860, %v1859
    %v1862 = vmul.f32 0.5, %v1861
    %v1863 = vsub.f32 1.5, %v1862
    %v1864 = vmul.f32 %v1859, %v1863
    %vm1865 = vweird.f32 %v1848
    %vm1866 = vweird.f32 %v1859
    %vm1867 = vmor %vm1865, %vm1866
    %v1868 = vsel %vm1867, %v1859, %v1864
    %v1869 = vmul.f32 %v1835, %v1858
    %v1870 = vmul.f32 %v1836, %v1868
    %v1872 = vperm.slane %v1824, 0
    %v1874 = vmul.f32 %v1869, %v1872
    %v1875 = vmul.f32 %v1870, %v1872
    %v1877 = vperm.slane %v1826, 0
    %v1879 = vadd.f32 %v1874, %v1877
    %v1880 = vadd.f32 %v1875, %v1877
    %v1881 = vpack.c.bf16 %v1880, %v1879
    %s1882 = scalar_lea.vmem %s10, 16
    %v1883 = vld [vmem:[%s1882] sm:$0xf]
    %v1884 = vld [vmem:[%s1882 + $0x4] sm:$0xf]
    %v1885 = vld [vmem:[%s1882 + $0x8] sm:$0xf]
    %v1886 = vld [vmem:[%s1882 + $0xc] sm:$0xf]
    %s1887 = scalar_lea.vmem %s11, 1
    %v1888 = vld [vmem:[%s1887] sm:$0x1]
    %v1890 = vperm.slane %v1888, 0
    %v1896 = vunpack.c.l.b16 %v1883
    %v1897 = vunpack.c.l.b16 %v1884
    %v1898 = vunpack.c.l.b16 %v1885
    %v1899 = vunpack.c.l.b16 %v1886
    %v1900 = vpack.c.b16 %v1897, %v1896
    %v1901 = vpack.c.b16 %v1899, %v1898
    %v1905 = vsel %vm71, %v1881, 0
    %1907 = vmatpush.bf16.msra.mxu0 0
    %1908 = vmatpush.bf16.msra.mxu0 0
    %1909 = vmatpush.bf16.msra.mxu0 0
    %1910 = vmatpush.bf16.msra.mxu0 0
    %1911 = vmatpush.bf16.msra.mxu0 0
    %1912 = vmatpush.bf16.msra.mxu0 0
    %1913 = vmatpush.bf16.msra.mxu0 %v1901
    %1914 = vmatpush.bf16.msra.mxu0 %v1900
    %1915 = vmatmul.bf16.gmra.mxu0 %v1905
    %v1916 = vpop.f32.mrf.mxu0
    %v1917 = vadd.f32 %v1890, %v1916
    %v1918 = vpop.f32.mrf.mxu0
    %v1919 = vadd.f32 %v1890, %v1918
    %1920 = vdwg.mxu0
    %v1921 = vmul.f32 %v1917, 0.5
    %v1922 = vmul.f32 %v1919, 0.5
    %v1923 = vmul.f32 %v1917, 0.70710677
    %v1924 = vmul.f32 %v1919, 0.70710677
    %v1925 = vmul.f32 %v1923, %v1923
    %v1926 = vmin.f32 16.0, %v1925
    %v1927 = vmul.f32 %v1926, 2.1237322e-06
    %v1928 = vadd.f32 %v1927, 0.00028619796
    %v1929 = vmul.f32 %v1926, %v1928
    %v1930 = vadd.f32 %v1929, 0.0036580483
    %v1931 = vmul.f32 %v1926, %v1930
    %v1932 = vadd.f32 %v1931, 0.05243302
    %v1933 = vmul.f32 %v1926, %v1932
    %v1934 = vadd.f32 %v1933, 0.18741608
    %v1935 = vmul.f32 %v1926, %v1934
    %v1936 = vadd.f32 %v1935, 1.1283791
    %v1937 = vmul.f32 %v1923, %v1936
    %v1938 = vmul.f32 %v1926, 3.8918573e-05
    %v1939 = vadd.f32 %v1938, 0.001143296
    %v1940 = vmul.f32 %v1926, %v1939
    %v1941 = vadd.f32 %v1940, 0.014752088
    %v1942 = vmul.f32 %v1926, %v1941
    %v1943 = vadd.f32 %v1942, 0.112945676
    %v1944 = vmul.f32 %v1926, %v1943
    %v1945 = vadd.f32 %v1944, 0.4994258
    %v1946 = vmul.f32 %v1926, %v1945
    %v1947 = vadd.f32 %v1946, 1.0
    %v1948 = vrcp.pop %v1947
    %v1949 = vmul.f32 %v1947, %v1948
    %v1950 = vsub.f32 1.0, %v1949
    %v1951 = vmul.f32 %v1948, %v1950
    %v1952 = vadd.f32 %v1948, %v1951
    %vm1953 = vweird.f32 %v1947
    %vm1954 = vweird.f32 %v1948
    %vm1955 = vmor %vm1953, %vm1954
    %v1956 = vsel %vm1955, %v1948, %v1952
    %v1957 = vand.u32 2147483647, %v1947
    %vm1958 = vcmp.eq.f32.partialorder %v1957, 8.507059e+37
    %v1959 = vand.u32 %v1947, 2147483648
    %v1960 = vor.u32 1.1754944e-38, %v1959
    %v1961 = vsel %vm1958, %v1960, %v1956
    %v1962 = vmul.f32 %v1937, %v1961
    %v1963 = vmin.f32 %v1962, 1.0
    %v1964 = vmax.f32 %v1963, -1.0
    %v1965 = vmul.f32 %v1924, %v1924
    %v1966 = vmin.f32 16.0, %v1965
    %v1967 = vmul.f32 %v1966, 2.1237322e-06
    %v1968 = vadd.f32 %v1967, 0.00028619796
    %v1969 = vmul.f32 %v1966, %v1968
    %v1970 = vadd.f32 %v1969, 0.0036580483
    %v1971 = vmul.f32 %v1966, %v1970
    %v1972 = vadd.f32 %v1971, 0.05243302
    %v1973 = vmul.f32 %v1966, %v1972
    %v1974 = vadd.f32 %v1973, 0.18741608
    %v1975 = vmul.f32 %v1966, %v1974
    %v1976 = vadd.f32 %v1975, 1.1283791
    %v1977 = vmul.f32 %v1924, %v1976
    %v1978 = vmul.f32 %v1966, 3.8918573e-05
    %v1979 = vadd.f32 %v1978, 0.001143296
    %v1980 = vmul.f32 %v1966, %v1979
    %v1981 = vadd.f32 %v1980, 0.014752088
    %v1982 = vmul.f32 %v1966, %v1981
    %v1983 = vadd.f32 %v1982, 0.112945676
    %v1984 = vmul.f32 %v1966, %v1983
    %v1985 = vadd.f32 %v1984, 0.4994258
    %v1986 = vmul.f32 %v1966, %v1985
    %v1987 = vadd.f32 %v1986, 1.0
    %v1988 = vrcp.pop %v1987
    %v1989 = vmul.f32 %v1987, %v1988
    %v1990 = vsub.f32 1.0, %v1989
    %v1991 = vmul.f32 %v1988, %v1990
    %v1992 = vadd.f32 %v1988, %v1991
    %vm1993 = vweird.f32 %v1987
    %vm1994 = vweird.f32 %v1988
    %vm1995 = vmor %vm1993, %vm1994
    %v1996 = vsel %vm1995, %v1988, %v1992
    %v1997 = vand.u32 2147483647, %v1987
    %vm1998 = vcmp.eq.f32.partialorder %v1997, 8.507059e+37
    %v1999 = vand.u32 %v1987, 2147483648
    %v2000 = vor.u32 1.1754944e-38, %v1999
    %v2001 = vsel %vm1998, %v2000, %v1996
    %v2002 = vmul.f32 %v1977, %v2001
    %v2003 = vmin.f32 %v2002, 1.0
    %v2004 = vmax.f32 %v2003, -1.0
    %v2005 = vadd.f32 %v1964, 1.0
    %v2006 = vadd.f32 %v2004, 1.0
    %v2007 = vmul.f32 %v1921, %v2005
    %v2008 = vmul.f32 %v1922, %v2006
    %v2009 = vpack.c.bf16 %v2008, %v2007
    %s2010 = scalar_lea.vmem %s12, 64
    %v2011 = vld [vmem:[%s2010] sm:$0xf]
    %v2012 = vld [vmem:[%s2010 + $0x4] sm:$0xf]
    %v2013 = vld [vmem:[%s2010 + $0x8] sm:$0xf]
    %v2014 = vld [vmem:[%s2010 + $0xc] sm:$0xf]
    %v2015 = vld [vmem:[%s2010 + $0x10] sm:$0xf]
    %v2016 = vld [vmem:[%s2010 + $0x14] sm:$0xf]
    %v2017 = vld [vmem:[%s2010 + $0x18] sm:$0xf]
    %v2018 = vld [vmem:[%s2010 + $0x1c] sm:$0xf]
    %v2019 = vld [vmem:[%s2010 + $0x20] sm:$0xf]
    %v2020 = vld [vmem:[%s2010 + $0x24] sm:$0xf]
    %v2021 = vld [vmem:[%s2010 + $0x28] sm:$0xf]
    %v2022 = vld [vmem:[%s2010 + $0x2c] sm:$0xf]
    %v2023 = vld [vmem:[%s2010 + $0x30] sm:$0xf]
    %v2024 = vld [vmem:[%s2010 + $0x34] sm:$0xf]
    %v2025 = vld [vmem:[%s2010 + $0x38] sm:$0xf]
    %v2026 = vld [vmem:[%s2010 + $0x3c] sm:$0xf]
    %s2027 = scalar_lea.vmem %s13, 1
    %v2028 = vld [vmem:[%s2027] sm:$0x1]
    %v2030 = vperm.slane %v2028, 0
    %v2048 = vunpack.c.l.b16 %v2011
    %v2049 = vunpack.c.l.b16 %v2012
    %v2050 = vunpack.c.l.b16 %v2013
    %v2051 = vunpack.c.l.b16 %v2014
    %v2052 = vunpack.c.l.b16 %v2015
    %v2053 = vunpack.c.l.b16 %v2016
    %v2054 = vunpack.c.l.b16 %v2017
    %v2055 = vunpack.c.l.b16 %v2018
    %v2056 = vunpack.c.l.b16 %v2019
    %v2057 = vunpack.c.l.b16 %v2020
    %v2058 = vunpack.c.l.b16 %v2021
    %v2059 = vunpack.c.l.b16 %v2022
    %v2060 = vunpack.c.l.b16 %v2023
    %v2061 = vunpack.c.l.b16 %v2024
    %v2062 = vunpack.c.l.b16 %v2025
    %v2063 = vunpack.c.l.b16 %v2026
    %v2064 = vpack.c.b16 %v2049, %v2048
    %v2065 = vpack.c.b16 %v2051, %v2050
    %v2066 = vpack.c.b16 %v2053, %v2052
    %v2067 = vpack.c.b16 %v2055, %v2054
    %v2068 = vpack.c.b16 %v2057, %v2056
    %v2069 = vpack.c.b16 %v2059, %v2058
    %v2070 = vpack.c.b16 %v2061, %v2060
    %v2071 = vpack.c.b16 %v2063, %v2062
    %2080 = vmatpush.bf16.msra.mxu0 %v2071
    %2081 = vmatpush.bf16.msra.mxu0 %v2070
    %2082 = vmatpush.bf16.msra.mxu0 %v2069
    %2083 = vmatpush.bf16.msra.mxu0 %v2068
    %2084 = vmatpush.bf16.msra.mxu0 %v2067
    %2085 = vmatpush.bf16.msra.mxu0 %v2066
    %2086 = vmatpush.bf16.msra.mxu0 %v2065
    %2087 = vmatpush.bf16.msra.mxu0 %v2064
    %2088 = vmatmul.bf16.gmra.mxu0 %v2009
    %v2089 = vpop.f32.mrf.mxu0
    %v2090 = vadd.f32 %v2030, %v2089
    %v2091 = vpop.f32.mrf.mxu0
    %v2092 = vadd.f32 %v2030, %v2091
    %2093 = vdwg.mxu0
    %v2094 = vadd.f32 %v1821, %v2090
    %v2095 = vadd.f32 %v1822, %v2092
    %v2096 = vld [vmem:[%s14] sm:$0x1]
    %v2097 = vld [vmem:[%s15] sm:$0x1]
    %v2100 = vrot.slane %v2095, 7
    %vm2103 = vcmask 261127
    %v2104 = vsel %vm2103, %v2094, 0.0
    %2105 = vadd.xlane.f32.xlu0 %v2104
    %v2106 = vpop.xlane.xlu0 %2105
    %vm2107 = vcmask 253952
    %v2108 = vsel %vm2107, %v2100, 0.0
    %2109 = vadd.xlane.f32.xlu0 %v2108
    %v2110 = vpop.xlane.xlu0 %2109
    %v2111 = vmul.f32 %v2106, %v84
    %v2112 = vmul.f32 %v2110, %v84
    %v2115 = vrot.slane %v2112, 1
    %v2118 = vsub.f32 %v2094, %v2111
    %v2119 = vsub.f32 %v2095, %v2115
    %v2120 = vmul.f32 %v2118, %v2118
    %v2121 = vmul.f32 %v2119, %v2119
    %v2124 = vrot.slane %v2121, 7
    %v2127 = vsel %vm2103, %v2120, 0.0
    %2128 = vadd.xlane.f32.xlu0 %v2127
    %v2129 = vpop.xlane.xlu0 %2128
    %v2130 = vsel %vm2107, %v2124, 0.0
    %2131 = vadd.xlane.f32.xlu0 %v2130
    %v2132 = vpop.xlane.xlu0 %2131
    %v2133 = vmul.f32 %v2129, %v84
    %v2134 = vmul.f32 %v2132, %v84
    %v2135 = vadd.f32 %v2133, 1e-05
    %v2136 = vadd.f32 %v2134, 1e-05
    %v2137 = vrsqrt.pop %v2135
    %v2138 = vmul.f32 %v2137, %v2135
    %v2139 = vmul.f32 %v2138, %v2137
    %v2140 = vmul.f32 0.5, %v2139
    %v2141 = vsub.f32 1.5, %v2140
    %v2142 = vmul.f32 %v2137, %v2141
    %vm2143 = vweird.f32 %v2135
    %vm2144 = vweird.f32 %v2137
    %vm2145 = vmor %vm2143, %vm2144
    %v2146 = vsel %vm2145, %v2137, %v2142
    %v2147 = vrsqrt.pop %v2136
    %v2148 = vmul.f32 %v2147, %v2136
    %v2149 = vmul.f32 %v2148, %v2147
    %v2150 = vmul.f32 0.5, %v2149
    %v2151 = vsub.f32 1.5, %v2150
    %v2152 = vmul.f32 %v2147, %v2151
    %vm2153 = vweird.f32 %v2136
    %vm2154 = vweird.f32 %v2147
    %vm2155 = vmor %vm2153, %vm2154
    %v2156 = vsel %vm2155, %v2147, %v2152
    %v2159 = vrot.slane %v2156, 1
    %v2162 = vmul.f32 %v2118, %v2146
    %v2163 = vmul.f32 %v2119, %v2159
    %v2165 = vperm.slane %v2096, 0
    %v2167 = vmul.f32 %v2162, %v2165
    %v2168 = vmul.f32 %v2163, %v2165
    %v2170 = vperm.slane %v2097, 0
    %v2172 = vadd.f32 %v2167, %v2170
    %v2173 = vadd.f32 %v2168, %v2170
    %v2174 = vpack.c.bf16 %v2172, %v2172
    %v2175 = vpack.c.bf16 %v2173, %v2173
    %v2176 = vld [vmem:[%s16] sm:$0xf]
    %v2177 = vld [vmem:[%s16 + $0x4] sm:$0xf]
    %v2178 = vld [vmem:[%s16 + $0x8] sm:$0xf]
    %v2179 = vld [vmem:[%s16 + $0xc] sm:$0xf]
    %v2182 = vunpack.c.l.b16 %v2174
    %v2183 = vunpack.c.l.b16 %v2175
    %v2184 = vrot.slane %v2182, 7
    %v2185 = vrot.slane %v2183, 6
    %vm2186 = vcmask 1041409
    %v2187 = vsel %vm2186, %v2185, %v2184
    %v2188 = vpack.c.b16 %v2187, %v2187
    %v2193 = vunpack.c.l.b16 %v2176
    %v2194 = vunpack.c.l.b16 %v2177
    %v2195 = vunpack.c.l.b16 %v2178
    %v2196 = vunpack.c.l.b16 %v2179
    %v2197 = vpack.c.b16 %v2194, %v2193
    %v2198 = vpack.c.b16 %v2196, %v2195
    %v2202 = vsel %vm71, %v2188, 0
    %2204 = vmatpush.bf16.msra.mxu0 0
    %2205 = vmatpush.bf16.msra.mxu0 0
    %2206 = vmatpush.bf16.msra.mxu0 0
    %2207 = vmatpush.bf16.msra.mxu0 0
    %2208 = vmatpush.bf16.msra.mxu0 0
    %2209 = vmatpush.bf16.msra.mxu0 0
    %2210 = vmatpush.bf16.msra.mxu0 %v2198
    %2211 = vmatpush.bf16.msra.mxu0 %v2197
    %2212 = vmatmul.bf16.gmra.mxu0 %v2202
    %v2213 = vpop.f32.mrf.mxu0
    %v2214 = vadd.f32 0.0, %v2213
    %v2215 = vpop.f32.mrf.mxu0
    %2216 = vdwg.mxu0
    %2217 = vst [vmem:[#allocation3] sm:$0x3] %v2214
    // Predicated region
    $region70: #{gpt_forward_pallas.1} parent=1 // pred_check
      _
    $region71: #{gpt_forward_pallas.1} parent=1 // pred_check_branch
      %2219 = sbr.rel (0) target = $region73
    $region72: #{gpt_forward_pallas.1} parent=1 // pred_region
      %2221 = vsyncadd [#allocation4], 0
      %s2223 = sshll.u32 [#allocation3], 4
      %s2224 = int_to_ptr.vmem [resolvable:$true] %s2223
      %s2225 = sshll.u32 %s17, 4
      %s2226 = int_to_ptr.hbm [resolvable:$true] %s2225
      %2228 = dma.vmem_to_hbm [thread:$0]  %s2224, 32, %s2226, [#allocation4]
    $region73: #{gpt_forward_pallas.1} parent=1 // pred_fallthru
      _
    // Predicated region
    $region74: #{gpt_forward_pallas.1} parent=1 // pred_check
      _
    $region75: #{gpt_forward_pallas.1} parent=1 // pred_check_branch
      %2230 = sbr.rel (0) target = $region77
    $region76: #{gpt_forward_pallas.1} parent=1 // pred_region
      %2232 = dma.done [#allocation4], 32
    $region77: #{gpt_forward_pallas.1} parent=1 // pred_fallthru
      _
    %2233 = vsyncpa [#allocation4], 1

</llo_original>
